<compile_context>
chip_gen: v7x
topology: tpu7x:2x2x1
jax: 0.10.0
libtpu: 0.0.40
codegen_flags: <defaults>
</compile_context>

<pallas_src>
import functools

import jax
import jax.numpy as jnp
from jax.experimental import pallas as pl
from jax.experimental.pallas import tpu as pltpu


# -----------------------------------------------------------------------------
# Single fused kernel: grid = (batch, layer)
# -----------------------------------------------------------------------------

def _dals_kernel(x_ref, y_ref,
                 wx_ref, bx_ref, wy_ref, by_ref,
                 wo_xy_ref, bo_xy_ref, wo_yx_ref, bo_yx_ref,
                 gx_ref, bxl_ref, gy_ref, byl_ref,
                 out_ref,
                 xs, ys, *, num_heads):
    l = pl.program_id(1)
    n_layers = pl.num_programs(1)

    # Load this batch element's activations into resident VMEM scratch once.
    @pl.when(l == 0)
    def _():
        xs[...] = x_ref[0]
        ys[...] = y_ref[0]

    x = xs[...]                       # (S, H)
    y = ys[...]
    H = x.shape[1]
    D = H // num_heads

    # Fused projections: one lane-dense (S, 3H) MXU matmul per stream.
    #   x_proj = [ q_{x->y} (pre-scaled) | k_{y->x} | v_{y->x} ]
    #   y_proj = [ q_{y->x} (pre-scaled) | k_{x->y} | v_{x->y} ]
    x_proj = (jnp.dot(x, wx_ref[0], preferred_element_type=jnp.float32)
              + bx_ref[0])
    y_proj = (jnp.dot(y, wy_ref[0], preferred_element_type=jnp.float32)
              + by_ref[0])

    def cross_attn_out_ln(q_proj, kv_proj, wo_t, bo, residual, gamma, beta):
        # Per-head attention; contexts are merged along lanes into one (S, H)
        # block so the output projection is a SINGLE (S,H)@(H,H) MXU matmul
        # (instead of num_heads K=D matmuls).  1/sqrt(D) is already folded
        # into the q weights.  Softmax uses an exact divide (f32 parity).
        ctxs = []
        for h in range(num_heads):
            q_h = q_proj[:, h * D:(h + 1) * D]                     # (S, D)
            k_h = kv_proj[:, H + h * D:H + (h + 1) * D]            # (S, D)
            v_h = kv_proj[:, 2 * H + h * D:2 * H + (h + 1) * D]    # (S, D)
            # q @ k^T by contracting the last dims — no in-kernel transpose.
            s = jax.lax.dot_general(
                q_h, k_h, (((1,), (1,)), ((), ())),
                preferred_element_type=jnp.float32)                # (S, S)
            m = jnp.max(s, axis=-1, keepdims=True)
            p = jnp.exp(s - m)
            denom = jnp.sum(p, axis=-1, keepdims=True)
            o_h = jnp.dot(p, v_h, preferred_element_type=jnp.float32) / denom
            ctxs.append(o_h)
        ctx = jnp.concatenate(ctxs, axis=-1)                        # (S, H)
        acc = residual + bo + jnp.dot(ctx, wo_t,
                                      preferred_element_type=jnp.float32)
        # Fused LayerNorm epilogue (f32 statistics, eps matches PyTorch).
        mean = jnp.mean(acc, axis=-1, keepdims=True)
        var = jnp.mean((acc - mean) ** 2, axis=-1, keepdims=True)
        return (acc - mean) * jax.lax.rsqrt(var + 1e-5) * gamma + beta

    x_new = cross_attn_out_ln(x_proj, y_proj, wo_xy_ref[0], bo_xy_ref[0],
                              x, gx_ref[0], bxl_ref[0])
    y_new = cross_attn_out_ln(y_proj, x_proj, wo_yx_ref[0], bo_yx_ref[0],
                              y, gy_ref[0], byl_ref[0])

    xs[...] = x_new
    ys[...] = y_new

    # Fused torch.cat([x, y], dim=1): both streams land in one contiguous
    # (1, 2, S, H) output block, written back to HBM once per batch element.
    @pl.when(l == n_layers - 1)
    def _():
        out_ref[0, 0, :, :] = x_new
        out_ref[0, 1, :, :] = y_new


@functools.partial(jax.jit, static_argnames=("num_heads",))
def dals_forward(x, y, packed, num_heads):
    B, S, H = x.shape
    L = packed["wx"].shape[0]
    kern = functools.partial(_dals_kernel, num_heads=num_heads)

    act_spec = pl.BlockSpec((1, S, H), lambda b, l: (b, 0, 0))
    w3_spec = pl.BlockSpec((1, H, 3 * H), lambda b, l: (l, 0, 0))
    b3_spec = pl.BlockSpec((1, 1, 3 * H), lambda b, l: (l, 0, 0))
    w1_spec = pl.BlockSpec((1, H, H), lambda b, l: (l, 0, 0))
    v1_spec = pl.BlockSpec((1, 1, H), lambda b, l: (l, 0, 0))
    out_spec = pl.BlockSpec((1, 2, S, H), lambda b, l: (b, 0, 0, 0))

    out = pl.pallas_call(
        kern,
        out_shape=jax.ShapeDtypeStruct((B, 2, S, H), jnp.float32),
        grid=(B, L),
        in_specs=[
            act_spec, act_spec,        # x, y
            w3_spec, b3_spec,          # fused projection (x stream)
            w3_spec, b3_spec,          # fused projection (y stream)
            w1_spec, v1_spec,          # out-proj (W^T, b) x->y branch
            w1_spec, v1_spec,          # out-proj (W^T, b) y->x branch
            v1_spec, v1_spec,          # LN gamma/beta for x
            v1_spec, v1_spec,          # LN gamma/beta for y
        ],
        out_specs=out_spec,
        scratch_shapes=[pltpu.VMEM((S, H), jnp.float32),
                        pltpu.VMEM((S, H), jnp.float32)],
        compiler_params=pltpu.CompilerParams(
            dimension_semantics=("parallel", "arbitrary")),
    )(x, y,
      packed["wx"], packed["bx"], packed["wy"], packed["by"],
      packed["wo_xy"], packed["bo_xy"], packed["wo_yx"], packed["bo_yx"],
      packed["ln_x_g"], packed["ln_x_b"], packed["ln_y_g"], packed["ln_y_b"])

    # Free row-major view: (B, 2, S, H) -> (B, 2S, H) == torch.cat(dim=1).
    return out.reshape(B, 2 * S, H)


# -----------------------------------------------------------------------------
# PyTorch-style parameter init + packing into the fused-kernel layout
# -----------------------------------------------------------------------------

def init_mha_params(key, hidden):
    k1, k2 = jax.random.split(key)
    bound = (1.0 / hidden) ** 0.5
    return {
        "in_proj_w": jax.random.uniform(k1, (3 * hidden, hidden), jnp.float32,
                                        -bound, bound),
        "in_proj_b": jnp.zeros((3 * hidden,), jnp.float32),
        "out_w": jax.random.uniform(k2, (hidden, hidden), jnp.float32,
                                    -bound, bound),
        "out_b": jnp.zeros((hidden,), jnp.float32),
    }


def init_params(key, hidden, n_layers):
    params = []
    for i in range(n_layers):
        k1, k2 = jax.random.split(jax.random.fold_in(key, i))
        params.append({
            "attn_xy": init_mha_params(k1, hidden),
            "attn_yx": init_mha_params(k2, hidden),
            "ln_x_g": jnp.ones((hidden,), jnp.float32),
            "ln_x_b": jnp.zeros((hidden,), jnp.float32),
            "ln_y_g": jnp.ones((hidden,), jnp.float32),
            "ln_y_b": jnp.zeros((hidden,), jnp.float32),
        })
    return params


def pack_params(params, hidden, num_heads):
    """Stack all layers' PyTorch-layout weights into the fused-kernel layout.

    The 1/sqrt(D) softmax scale is folded into the q slice of the packed
    projection weight and bias (static weight transform, zero runtime cost).
    """
    H = hidden
    D = H // num_heads
    scale = 1.0 / float(D) ** 0.5
    wx, bx, wy, by = [], [], [], []
    wo_xy, bo_xy, wo_yx, bo_yx = [], [], [], []
    gx, bxl, gy, byl = [], [], [], []
    for lp in params:
        wq_xy, wk_xy, wv_xy = jnp.split(lp["attn_xy"]["in_proj_w"], 3, axis=0)
        bq_xy, bk_xy, bv_xy = jnp.split(lp["attn_xy"]["in_proj_b"], 3, axis=0)
        wq_yx, wk_yx, wv_yx = jnp.split(lp["attn_yx"]["in_proj_w"], 3, axis=0)
        bq_yx, bk_yx, bv_yx = jnp.split(lp["attn_yx"]["in_proj_b"], 3, axis=0)
        # x stream produces: scaled q for the x->y branch, plus k, v for y->x.
        wx.append(jnp.concatenate([wq_xy.T * scale, wk_yx.T, wv_yx.T], axis=1))
        bx.append(jnp.concatenate([bq_xy * scale, bk_yx, bv_yx]).reshape(1, 3 * H))
        # y stream produces: scaled q for the y->x branch, plus k, v for x->y.
        wy.append(jnp.concatenate([wq_yx.T * scale, wk_xy.T, wv_xy.T], axis=1))
        by.append(jnp.concatenate([bq_yx * scale, bk_xy, bv_xy]).reshape(1, 3 * H))
        wo_xy.append(lp["attn_xy"]["out_w"].T)
        bo_xy.append(lp["attn_xy"]["out_b"].reshape(1, H))
        wo_yx.append(lp["attn_yx"]["out_w"].T)
        bo_yx.append(lp["attn_yx"]["out_b"].reshape(1, H))
        gx.append(lp["ln_x_g"].reshape(1, H))
        bxl.append(lp["ln_x_b"].reshape(1, H))
        gy.append(lp["ln_y_g"].reshape(1, H))
        byl.append(lp["ln_y_b"].reshape(1, H))
    stk = lambda xs: jnp.stack(xs, axis=0)
    return {
        "wx": stk(wx), "bx": stk(bx), "wy": stk(wy), "by": stk(by),
        "wo_xy": stk(wo_xy), "bo_xy": stk(bo_xy),
        "wo_yx": stk(wo_yx), "bo_yx": stk(bo_yx),
        "ln_x_g": stk(gx), "ln_x_b": stk(bxl),
        "ln_y_g": stk(gy), "ln_y_b": stk(byl),
    }


if __name__ == "__main__":
    B, S, HIDDEN, HEADS, N_LAYERS = 2, 8, 32, 4, 2

    key = jax.random.PRNGKey(0)
    kx, ky, kp = jax.random.split(key, 3)
    x = jax.random.normal(kx, (B, S, HIDDEN), jnp.float32)
    y = jax.random.normal(ky, (B, S, HIDDEN), jnp.float32)
    params = init_params(kp, HIDDEN, N_LAYERS)
    packed = pack_params(params, HIDDEN, HEADS)

    out = dals_forward(x, y, packed, num_heads=HEADS)
    out = jax.block_until_ready(out)

    assert out.shape == (B, 2 * S, HIDDEN), out.shape
    assert bool(jnp.all(jnp.isfinite(out)))
    print("KERNEL_OK")
</pallas_src>

<mosaic_0001>
module attributes {stable_mosaic.version = 11 : i64} {
  func.func @_dals_kernel(%arg0: i32, %arg1: i32, %arg2: memref<1x8x32xf32, #tpu.memory_space<vmem>>, %arg3: memref<1x8x32xf32, #tpu.memory_space<vmem>>, %arg4: memref<1x32x96xf32, #tpu.memory_space<vmem>>, %arg5: memref<1x1x96xf32, #tpu.memory_space<vmem>>, %arg6: memref<1x32x96xf32, #tpu.memory_space<vmem>>, %arg7: memref<1x1x96xf32, #tpu.memory_space<vmem>>, %arg8: memref<1x32x32xf32, #tpu.memory_space<vmem>>, %arg9: memref<1x1x32xf32, #tpu.memory_space<vmem>>, %arg10: memref<1x32x32xf32, #tpu.memory_space<vmem>>, %arg11: memref<1x1x32xf32, #tpu.memory_space<vmem>>, %arg12: memref<1x1x32xf32, #tpu.memory_space<vmem>>, %arg13: memref<1x1x32xf32, #tpu.memory_space<vmem>>, %arg14: memref<1x1x32xf32, #tpu.memory_space<vmem>>, %arg15: memref<1x1x32xf32, #tpu.memory_space<vmem>>, %arg16: memref<1x2x8x32xf32, #tpu.memory_space<vmem>>, %arg17: memref<8x32xf32, #tpu.memory_space<vmem>>, %arg18: memref<8x32xf32, #tpu.memory_space<vmem>>) attributes {dimension_semantics = [#tpu.dimension_semantics<parallel>, #tpu.dimension_semantics<arbitrary>], iteration_bounds = array<i64: 2, 2>, scalar_prefetch = 0 : i64, scratch_operands = 2 : i64, tpu.core_type = #tpu.core_type<tc>, window_params = [{transform_indices = @transform_0, window_bounds = array<i64: 1, 8, 32>}, {transform_indices = @transform_1, window_bounds = array<i64: 1, 8, 32>}, {transform_indices = @transform_2, window_bounds = array<i64: 1, 32, 96>}, {transform_indices = @transform_3, window_bounds = array<i64: 1, 1, 96>}, {transform_indices = @transform_4, window_bounds = array<i64: 1, 32, 96>}, {transform_indices = @transform_5, window_bounds = array<i64: 1, 1, 96>}, {transform_indices = @transform_6, window_bounds = array<i64: 1, 32, 32>}, {transform_indices = @transform_7, window_bounds = array<i64: 1, 1, 32>}, {transform_indices = @transform_8, window_bounds = array<i64: 1, 32, 32>}, {transform_indices = @transform_9, window_bounds = array<i64: 1, 1, 32>}, {transform_indices = @transform_10, window_bounds = array<i64: 1, 1, 32>}, {transform_indices = @transform_11, window_bounds = array<i64: 1, 1, 32>}, {transform_indices = @transform_12, window_bounds = array<i64: 1, 1, 32>}, {transform_indices = @transform_13, window_bounds = array<i64: 1, 1, 32>}, {transform_indices = @transform_14, window_bounds = array<i64: 1, 2, 8, 32>}]} {
    %c0_i32 = arith.constant 0 : i32
    %0 = arith.cmpi eq, %arg1, %c0_i32 : i32
    %1 = arith.extui %0 : i1 to i32
    %c0_i32_0 = arith.constant 0 : i32
    %2 = arith.cmpi ne, %1, %c0_i32_0 : i32
    scf.if %2 {
      %c0_90 = arith.constant 0 : index
      %c0_91 = arith.constant 0 : index
      %c0_92 = arith.constant 0 : index
      %206 = vector.load %arg2[%c0_90, %c0_91, %c0_92] : memref<1x8x32xf32, #tpu.memory_space<vmem>>, vector<1x8x32xf32>
      %207 = vector.shape_cast %206 : vector<1x8x32xf32> to vector<8x32xf32>
      %c0_93 = arith.constant 0 : index
      %c0_94 = arith.constant 0 : index
      %208 = vector.load %arg17[%c0_93, %c0_94] : memref<8x32xf32, #tpu.memory_space<vmem>>, vector<8x32xf32>
      tpu.vector_store %arg17[%c0_93, %c0_94], %207 {strides = array<i32>} : memref<8x32xf32, #tpu.memory_space<vmem>>, vector<8x32xf32>,
      %c0_95 = arith.constant 0 : index
      %c0_96 = arith.constant 0 : index
      %c0_97 = arith.constant 0 : index
      %209 = vector.load %arg3[%c0_95, %c0_96, %c0_97] : memref<1x8x32xf32, #tpu.memory_space<vmem>>, vector<1x8x32xf32>
      %210 = vector.shape_cast %209 : vector<1x8x32xf32> to vector<8x32xf32>
      %c0_98 = arith.constant 0 : index
      %c0_99 = arith.constant 0 : index
      %211 = vector.load %arg18[%c0_98, %c0_99] : memref<8x32xf32, #tpu.memory_space<vmem>>, vector<8x32xf32>
      tpu.vector_store %arg18[%c0_98, %c0_99], %210 {strides = array<i32>} : memref<8x32xf32, #tpu.memory_space<vmem>>, vector<8x32xf32>,
    } else {
    }
    %c0 = arith.constant 0 : index
    %c0_1 = arith.constant 0 : index
    %3 = vector.load %arg17[%c0, %c0_1] : memref<8x32xf32, #tpu.memory_space<vmem>>, vector<8x32xf32>
    %c0_2 = arith.constant 0 : index
    %c0_3 = arith.constant 0 : index
    %4 = vector.load %arg18[%c0_2, %c0_3] : memref<8x32xf32, #tpu.memory_space<vmem>>, vector<8x32xf32>
    %c0_4 = arith.constant 0 : index
    %c0_5 = arith.constant 0 : index
    %c0_6 = arith.constant 0 : index
    %5 = vector.load %arg4[%c0_4, %c0_5, %c0_6] : memref<1x32x96xf32, #tpu.memory_space<vmem>>, vector<1x32x96xf32>
    %6 = vector.shape_cast %5 : vector<1x32x96xf32> to vector<32x96xf32>
    %cst = arith.constant dense<0.000000e+00> : vector<8x96xf32>
    %7 = tpu.matmul %3, %6, %cst {dimension_numbers = #tpu.dot_dimension_numbers<[1], [0], [0], [1], [0, 0, 1, 1], [], []>} : vector<8x32xf32>, vector<32x96xf32>, vector<8x96xf32> -> vector<8x96xf32>
    %c0_7 = arith.constant 0 : index
    %c0_8 = arith.constant 0 : index
    %c0_9 = arith.constant 0 : index
    %8 = vector.load %arg5[%c0_7, %c0_8, %c0_9] : memref<1x1x96xf32, #tpu.memory_space<vmem>>, vector<1x1x96xf32>
    %9 = vector.shape_cast %8 : vector<1x1x96xf32> to vector<1x96xf32>
    %10 = vector.broadcast %9 : vector<1x96xf32> to vector<8x96xf32>
    %11 = arith.addf %7, %10 : vector<8x96xf32>
    %c0_10 = arith.constant 0 : index
    %c0_11 = arith.constant 0 : index
    %c0_12 = arith.constant 0 : index
    %12 = vector.load %arg6[%c0_10, %c0_11, %c0_12] : memref<1x32x96xf32, #tpu.memory_space<vmem>>, vector<1x32x96xf32>
    %13 = vector.shape_cast %12 : vector<1x32x96xf32> to vector<32x96xf32>
    %cst_13 = arith.constant dense<0.000000e+00> : vector<8x96xf32>
    %14 = tpu.matmul %4, %13, %cst_13 {dimension_numbers = #tpu.dot_dimension_numbers<[1], [0], [0], [1], [0, 0, 1, 1], [], []>} : vector<8x32xf32>, vector<32x96xf32>, vector<8x96xf32> -> vector<8x96xf32>
    %c0_14 = arith.constant 0 : index
    %c0_15 = arith.constant 0 : index
    %c0_16 = arith.constant 0 : index
    %15 = vector.load %arg7[%c0_14, %c0_15, %c0_16] : memref<1x1x96xf32, #tpu.memory_space<vmem>>, vector<1x1x96xf32>
    %16 = vector.shape_cast %15 : vector<1x1x96xf32> to vector<1x96xf32>
    %17 = vector.broadcast %16 : vector<1x96xf32> to vector<8x96xf32>
    %18 = arith.addf %14, %17 : vector<8x96xf32>
    %c0_17 = arith.constant 0 : index
    %c0_18 = arith.constant 0 : index
    %c0_19 = arith.constant 0 : index
    %19 = vector.load %arg8[%c0_17, %c0_18, %c0_19] : memref<1x32x32xf32, #tpu.memory_space<vmem>>, vector<1x32x32xf32>
    %20 = vector.shape_cast %19 : vector<1x32x32xf32> to vector<32x32xf32>
    %c0_20 = arith.constant 0 : index
    %c0_21 = arith.constant 0 : index
    %c0_22 = arith.constant 0 : index
    %21 = vector.load %arg9[%c0_20, %c0_21, %c0_22] : memref<1x1x32xf32, #tpu.memory_space<vmem>>, vector<1x1x32xf32>
    %22 = vector.shape_cast %21 : vector<1x1x32xf32> to vector<1x32xf32>
    %c0_23 = arith.constant 0 : index
    %c0_24 = arith.constant 0 : index
    %c0_25 = arith.constant 0 : index
    %23 = vector.load %arg12[%c0_23, %c0_24, %c0_25] : memref<1x1x32xf32, #tpu.memory_space<vmem>>, vector<1x1x32xf32>
    %24 = vector.shape_cast %23 : vector<1x1x32xf32> to vector<1x32xf32>
    %c0_26 = arith.constant 0 : index
    %c0_27 = arith.constant 0 : index
    %c0_28 = arith.constant 0 : index
    %25 = vector.load %arg13[%c0_26, %c0_27, %c0_28] : memref<1x1x32xf32, #tpu.memory_space<vmem>>, vector<1x1x32xf32>
    %26 = vector.shape_cast %25 : vector<1x1x32xf32> to vector<1x32xf32>
    %27 = vector.extract_strided_slice %11 {offsets = [0, 0], sizes = [8, 8], strides = [1, 1]} : vector<8x96xf32> to vector<8x8xf32>
    %28 = vector.extract_strided_slice %18 {offsets = [0, 32], sizes = [8, 8], strides = [1, 1]} : vector<8x96xf32> to vector<8x8xf32>
    %29 = vector.extract_strided_slice %18 {offsets = [0, 64], sizes = [8, 8], strides = [1, 1]} : vector<8x96xf32> to vector<8x8xf32>
    %cst_29 = arith.constant dense<0.000000e+00> : vector<8x8xf32>
    %30 = tpu.matmul %27, %28, %cst_29 {dimension_numbers = #tpu.dot_dimension_numbers<[1], [1], [0], [0], [0, 0, 1, 0], [], []>} : vector<8x8xf32>, vector<8x8xf32>, vector<8x8xf32> -> vector<8x8xf32>
    %cst_30 = arith.constant dense<0xFF800000> : vector<8xf32>
    %31 = vector.multi_reduction <maximumf>, %30, %cst_30 [1] : vector<8x8xf32> to vector<8xf32>
    %32 = vector.shape_cast %31 : vector<8xf32> to vector<8x1xf32>
    %33 = vector.broadcast %32 : vector<8x1xf32> to vector<8x8xf32>
    %34 = arith.subf %30, %33 : vector<8x8xf32>
    %35 = math.exp %34 : vector<8x8xf32>
    %cst_31 = arith.constant dense<0.000000e+00> : vector<8xf32>
    %36 = vector.multi_reduction <add>, %35, %cst_31 [1] : vector<8x8xf32> to vector<8xf32>
    %37 = vector.shape_cast %36 : vector<8xf32> to vector<8x1xf32>
    %cst_32 = arith.constant dense<0.000000e+00> : vector<8x8xf32>
    %38 = tpu.matmul %35, %29, %cst_32 {dimension_numbers = #tpu.dot_dimension_numbers<[1], [0], [0], [1], [0, 0, 1, 1], [], []>} : vector<8x8xf32>, vector<8x8xf32>, vector<8x8xf32> -> vector<8x8xf32>
    %39 = vector.broadcast %37 : vector<8x1xf32> to vector<8x8xf32>
    %40 = arith.divf %38, %39 : vector<8x8xf32>
    %41 = vector.extract_strided_slice %11 {offsets = [0, 8], sizes = [8, 8], strides = [1, 1]} : vector<8x96xf32> to vector<8x8xf32>
    %42 = vector.extract_strided_slice %18 {offsets = [0, 40], sizes = [8, 8], strides = [1, 1]} : vector<8x96xf32> to vector<8x8xf32>
    %43 = vector.extract_strided_slice %18 {offsets = [0, 72], sizes = [8, 8], strides = [1, 1]} : vector<8x96xf32> to vector<8x8xf32>
    %cst_33 = arith.constant dense<0.000000e+00> : vector<8x8xf32>
    %44 = tpu.matmul %41, %42, %cst_33 {dimension_numbers = #tpu.dot_dimension_numbers<[1], [1], [0], [0], [0, 0, 1, 0], [], []>} : vector<8x8xf32>, vector<8x8xf32>, vector<8x8xf32> -> vector<8x8xf32>
    %cst_34 = arith.constant dense<0xFF800000> : vector<8xf32>
    %45 = vector.multi_reduction <maximumf>, %44, %cst_34 [1] : vector<8x8xf32> to vector<8xf32>
    %46 = vector.shape_cast %45 : vector<8xf32> to vector<8x1xf32>
    %47 = vector.broadcast %46 : vector<8x1xf32> to vector<8x8xf32>
    %48 = arith.subf %44, %47 : vector<8x8xf32>
    %49 = math.exp %48 : vector<8x8xf32>
    %cst_35 = arith.constant dense<0.000000e+00> : vector<8xf32>
    %50 = vector.multi_reduction <add>, %49, %cst_35 [1] : vector<8x8xf32> to vector<8xf32>
    %51 = vector.shape_cast %50 : vector<8xf32> to vector<8x1xf32>
    %cst_36 = arith.constant dense<0.000000e+00> : vector<8x8xf32>
    %52 = tpu.matmul %49, %43, %cst_36 {dimension_numbers = #tpu.dot_dimension_numbers<[1], [0], [0], [1], [0, 0, 1, 1], [], []>} : vector<8x8xf32>, vector<8x8xf32>, vector<8x8xf32> -> vector<8x8xf32>
    %53 = vector.broadcast %51 : vector<8x1xf32> to vector<8x8xf32>
    %54 = arith.divf %52, %53 : vector<8x8xf32>
    %55 = vector.extract_strided_slice %11 {offsets = [0, 16], sizes = [8, 8], strides = [1, 1]} : vector<8x96xf32> to vector<8x8xf32>
    %56 = vector.extract_strided_slice %18 {offsets = [0, 48], sizes = [8, 8], strides = [1, 1]} : vector<8x96xf32> to vector<8x8xf32>
    %57 = vector.extract_strided_slice %18 {offsets = [0, 80], sizes = [8, 8], strides = [1, 1]} : vector<8x96xf32> to vector<8x8xf32>
    %cst_37 = arith.constant dense<0.000000e+00> : vector<8x8xf32>
    %58 = tpu.matmul %55, %56, %cst_37 {dimension_numbers = #tpu.dot_dimension_numbers<[1], [1], [0], [0], [0, 0, 1, 0], [], []>} : vector<8x8xf32>, vector<8x8xf32>, vector<8x8xf32> -> vector<8x8xf32>
    %cst_38 = arith.constant dense<0xFF800000> : vector<8xf32>
    %59 = vector.multi_reduction <maximumf>, %58, %cst_38 [1] : vector<8x8xf32> to vector<8xf32>
    %60 = vector.shape_cast %59 : vector<8xf32> to vector<8x1xf32>
    %61 = vector.broadcast %60 : vector<8x1xf32> to vector<8x8xf32>
    %62 = arith.subf %58, %61 : vector<8x8xf32>
    %63 = math.exp %62 : vector<8x8xf32>
    %cst_39 = arith.constant dense<0.000000e+00> : vector<8xf32>
    %64 = vector.multi_reduction <add>, %63, %cst_39 [1] : vector<8x8xf32> to vector<8xf32>
    %65 = vector.shape_cast %64 : vector<8xf32> to vector<8x1xf32>
    %cst_40 = arith.constant dense<0.000000e+00> : vector<8x8xf32>
    %66 = tpu.matmul %63, %57, %cst_40 {dimension_numbers = #tpu.dot_dimension_numbers<[1], [0], [0], [1], [0, 0, 1, 1], [], []>} : vector<8x8xf32>, vector<8x8xf32>, vector<8x8xf32> -> vector<8x8xf32>
    %67 = vector.broadcast %65 : vector<8x1xf32> to vector<8x8xf32>
    %68 = arith.divf %66, %67 : vector<8x8xf32>
    %69 = vector.extract_strided_slice %11 {offsets = [0, 24], sizes = [8, 8], strides = [1, 1]} : vector<8x96xf32> to vector<8x8xf32>
    %70 = vector.extract_strided_slice %18 {offsets = [0, 56], sizes = [8, 8], strides = [1, 1]} : vector<8x96xf32> to vector<8x8xf32>
    %71 = vector.extract_strided_slice %18 {offsets = [0, 88], sizes = [8, 8], strides = [1, 1]} : vector<8x96xf32> to vector<8x8xf32>
    %cst_41 = arith.constant dense<0.000000e+00> : vector<8x8xf32>
    %72 = tpu.matmul %69, %70, %cst_41 {dimension_numbers = #tpu.dot_dimension_numbers<[1], [1], [0], [0], [0, 0, 1, 0], [], []>} : vector<8x8xf32>, vector<8x8xf32>, vector<8x8xf32> -> vector<8x8xf32>
    %cst_42 = arith.constant dense<0xFF800000> : vector<8xf32>
    %73 = vector.multi_reduction <maximumf>, %72, %cst_42 [1] : vector<8x8xf32> to vector<8xf32>
    %74 = vector.shape_cast %73 : vector<8xf32> to vector<8x1xf32>
    %75 = vector.broadcast %74 : vector<8x1xf32> to vector<8x8xf32>
    %76 = arith.subf %72, %75 : vector<8x8xf32>
    %77 = math.exp %76 : vector<8x8xf32>
    %cst_43 = arith.constant dense<0.000000e+00> : vector<8xf32>
    %78 = vector.multi_reduction <add>, %77, %cst_43 [1] : vector<8x8xf32> to vector<8xf32>
    %79 = vector.shape_cast %78 : vector<8xf32> to vector<8x1xf32>
    %cst_44 = arith.constant dense<0.000000e+00> : vector<8x8xf32>
    %80 = tpu.matmul %77, %71, %cst_44 {dimension_numbers = #tpu.dot_dimension_numbers<[1], [0], [0], [1], [0, 0, 1, 1], [], []>} : vector<8x8xf32>, vector<8x8xf32>, vector<8x8xf32> -> vector<8x8xf32>
    %81 = vector.broadcast %79 : vector<8x1xf32> to vector<8x8xf32>
    %82 = arith.divf %80, %81 : vector<8x8xf32>
    %83 = tpu.concatenate %40, %54, %68, %82 in 1 : vector<8x8xf32>, vector<8x8xf32>, vector<8x8xf32>, vector<8x8xf32> -> vector<8x32xf32>
    %84 = vector.broadcast %22 : vector<1x32xf32> to vector<8x32xf32>
    %85 = arith.addf %3, %84 : vector<8x32xf32>
    %cst_45 = arith.constant dense<0.000000e+00> : vector<8x32xf32>
    %86 = tpu.matmul %83, %20, %cst_45 {dimension_numbers = #tpu.dot_dimension_numbers<[1], [0], [0], [1], [0, 0, 1, 1], [], []>} : vector<8x32xf32>, vector<32x32xf32>, vector<8x32xf32> -> vector<8x32xf32>
    %87 = arith.addf %85, %86 : vector<8x32xf32>
    %cst_46 = arith.constant dense<0.000000e+00> : vector<8xf32>
    %88 = vector.multi_reduction <add>, %87, %cst_46 [1] : vector<8x32xf32> to vector<8xf32>
    %89 = vector.shape_cast %88 : vector<8xf32> to vector<8x1xf32>
    %cst_47 = arith.constant 3.200000e+01 : f32
    %90 = vector.broadcast %cst_47 : f32 to vector<8x1xf32>
    %91 = arith.divf %89, %90 : vector<8x1xf32>
    %92 = vector.broadcast %91 : vector<8x1xf32> to vector<8x32xf32>
    %93 = arith.subf %87, %92 : vector<8x32xf32>
    %94 = arith.mulf %93, %93 : vector<8x32xf32>
    %cst_48 = arith.constant dense<0.000000e+00> : vector<8xf32>
    %95 = vector.multi_reduction <add>, %94, %cst_48 [1] : vector<8x32xf32> to vector<8xf32>
    %96 = vector.shape_cast %95 : vector<8xf32> to vector<8x1xf32>
    %cst_49 = arith.constant 3.200000e+01 : f32
    %97 = vector.broadcast %cst_49 : f32 to vector<8x1xf32>
    %98 = arith.divf %96, %97 : vector<8x1xf32>
    %99 = vector.broadcast %91 : vector<8x1xf32> to vector<8x32xf32>
    %100 = arith.subf %87, %99 : vector<8x32xf32>
    %cst_50 = arith.constant 9.99999974E-6 : f32
    %101 = vector.broadcast %cst_50 : f32 to vector<8x1xf32>
    %102 = arith.addf %98, %101 : vector<8x1xf32>
    %103 = math.rsqrt %102 : vector<8x1xf32>
    %104 = vector.broadcast %103 : vector<8x1xf32> to vector<8x32xf32>
    %105 = arith.mulf %100, %104 : vector<8x32xf32>
    %106 = vector.broadcast %24 : vector<1x32xf32> to vector<8x32xf32>
    %107 = arith.mulf %105, %106 : vector<8x32xf32>
    %108 = vector.broadcast %26 : vector<1x32xf32> to vector<8x32xf32>
    %109 = arith.addf %107, %108 : vector<8x32xf32>
    %c0_51 = arith.constant 0 : index
    %c0_52 = arith.constant 0 : index
    %c0_53 = arith.constant 0 : index
    %110 = vector.load %arg10[%c0_51, %c0_52, %c0_53] : memref<1x32x32xf32, #tpu.memory_space<vmem>>, vector<1x32x32xf32>
    %111 = vector.shape_cast %110 : vector<1x32x32xf32> to vector<32x32xf32>
    %c0_54 = arith.constant 0 : index
    %c0_55 = arith.constant 0 : index
    %c0_56 = arith.constant 0 : index
    %112 = vector.load %arg11[%c0_54, %c0_55, %c0_56] : memref<1x1x32xf32, #tpu.memory_space<vmem>>, vector<1x1x32xf32>
    %113 = vector.shape_cast %112 : vector<1x1x32xf32> to vector<1x32xf32>
    %c0_57 = arith.constant 0 : index
    %c0_58 = arith.constant 0 : index
    %c0_59 = arith.constant 0 : index
    %114 = vector.load %arg14[%c0_57, %c0_58, %c0_59] : memref<1x1x32xf32, #tpu.memory_space<vmem>>, vector<1x1x32xf32>
    %115 = vector.shape_cast %114 : vector<1x1x32xf32> to vector<1x32xf32>
    %c0_60 = arith.constant 0 : index
    %c0_61 = arith.constant 0 : index
    %c0_62 = arith.constant 0 : index
    %116 = vector.load %arg15[%c0_60, %c0_61, %c0_62] : memref<1x1x32xf32, #tpu.memory_space<vmem>>, vector<1x1x32xf32>
    %117 = vector.shape_cast %116 : vector<1x1x32xf32> to vector<1x32xf32>
    %118 = vector.extract_strided_slice %18 {offsets = [0, 0], sizes = [8, 8], strides = [1, 1]} : vector<8x96xf32> to vector<8x8xf32>
    %119 = vector.extract_strided_slice %11 {offsets = [0, 32], sizes = [8, 8], strides = [1, 1]} : vector<8x96xf32> to vector<8x8xf32>
    %120 = vector.extract_strided_slice %11 {offsets = [0, 64], sizes = [8, 8], strides = [1, 1]} : vector<8x96xf32> to vector<8x8xf32>
    %cst_63 = arith.constant dense<0.000000e+00> : vector<8x8xf32>
    %121 = tpu.matmul %118, %119, %cst_63 {dimension_numbers = #tpu.dot_dimension_numbers<[1], [1], [0], [0], [0, 0, 1, 0], [], []>} : vector<8x8xf32>, vector<8x8xf32>, vector<8x8xf32> -> vector<8x8xf32>
    %cst_64 = arith.constant dense<0xFF800000> : vector<8xf32>
    %122 = vector.multi_reduction <maximumf>, %121, %cst_64 [1] : vector<8x8xf32> to vector<8xf32>
    %123 = vector.shape_cast %122 : vector<8xf32> to vector<8x1xf32>
    %124 = vector.broadcast %123 : vector<8x1xf32> to vector<8x8xf32>
    %125 = arith.subf %121, %124 : vector<8x8xf32>
    %126 = math.exp %125 : vector<8x8xf32>
    %cst_65 = arith.constant dense<0.000000e+00> : vector<8xf32>
    %127 = vector.multi_reduction <add>, %126, %cst_65 [1] : vector<8x8xf32> to vector<8xf32>
    %128 = vector.shape_cast %127 : vector<8xf32> to vector<8x1xf32>
    %cst_66 = arith.constant dense<0.000000e+00> : vector<8x8xf32>
    %129 = tpu.matmul %126, %120, %cst_66 {dimension_numbers = #tpu.dot_dimension_numbers<[1], [0], [0], [1], [0, 0, 1, 1], [], []>} : vector<8x8xf32>, vector<8x8xf32>, vector<8x8xf32> -> vector<8x8xf32>
    %130 = vector.broadcast %128 : vector<8x1xf32> to vector<8x8xf32>
    %131 = arith.divf %129, %130 : vector<8x8xf32>
    %132 = vector.extract_strided_slice %18 {offsets = [0, 8], sizes = [8, 8], strides = [1, 1]} : vector<8x96xf32> to vector<8x8xf32>
    %133 = vector.extract_strided_slice %11 {offsets = [0, 40], sizes = [8, 8], strides = [1, 1]} : vector<8x96xf32> to vector<8x8xf32>
    %134 = vector.extract_strided_slice %11 {offsets = [0, 72], sizes = [8, 8], strides = [1, 1]} : vector<8x96xf32> to vector<8x8xf32>
    %cst_67 = arith.constant dense<0.000000e+00> : vector<8x8xf32>
    %135 = tpu.matmul %132, %133, %cst_67 {dimension_numbers = #tpu.dot_dimension_numbers<[1], [1], [0], [0], [0, 0, 1, 0], [], []>} : vector<8x8xf32>, vector<8x8xf32>, vector<8x8xf32> -> vector<8x8xf32>
    %cst_68 = arith.constant dense<0xFF800000> : vector<8xf32>
    %136 = vector.multi_reduction <maximumf>, %135, %cst_68 [1] : vector<8x8xf32> to vector<8xf32>
    %137 = vector.shape_cast %136 : vector<8xf32> to vector<8x1xf32>
    %138 = vector.broadcast %137 : vector<8x1xf32> to vector<8x8xf32>
    %139 = arith.subf %135, %138 : vector<8x8xf32>
    %140 = math.exp %139 : vector<8x8xf32>
    %cst_69 = arith.constant dense<0.000000e+00> : vector<8xf32>
    %141 = vector.multi_reduction <add>, %140, %cst_69 [1] : vector<8x8xf32> to vector<8xf32>
    %142 = vector.shape_cast %141 : vector<8xf32> to vector<8x1xf32>
    %cst_70 = arith.constant dense<0.000000e+00> : vector<8x8xf32>
    %143 = tpu.matmul %140, %134, %cst_70 {dimension_numbers = #tpu.dot_dimension_numbers<[1], [0], [0], [1], [0, 0, 1, 1], [], []>} : vector<8x8xf32>, vector<8x8xf32>, vector<8x8xf32> -> vector<8x8xf32>
    %144 = vector.broadcast %142 : vector<8x1xf32> to vector<8x8xf32>
    %145 = arith.divf %143, %144 : vector<8x8xf32>
    %146 = vector.extract_strided_slice %18 {offsets = [0, 16], sizes = [8, 8], strides = [1, 1]} : vector<8x96xf32> to vector<8x8xf32>
    %147 = vector.extract_strided_slice %11 {offsets = [0, 48], sizes = [8, 8], strides = [1, 1]} : vector<8x96xf32> to vector<8x8xf32>
    %148 = vector.extract_strided_slice %11 {offsets = [0, 80], sizes = [8, 8], strides = [1, 1]} : vector<8x96xf32> to vector<8x8xf32>
    %cst_71 = arith.constant dense<0.000000e+00> : vector<8x8xf32>
    %149 = tpu.matmul %146, %147, %cst_71 {dimension_numbers = #tpu.dot_dimension_numbers<[1], [1], [0], [0], [0, 0, 1, 0], [], []>} : vector<8x8xf32>, vector<8x8xf32>, vector<8x8xf32> -> vector<8x8xf32>
    %cst_72 = arith.constant dense<0xFF800000> : vector<8xf32>
    %150 = vector.multi_reduction <maximumf>, %149, %cst_72 [1] : vector<8x8xf32> to vector<8xf32>
    %151 = vector.shape_cast %150 : vector<8xf32> to vector<8x1xf32>
    %152 = vector.broadcast %151 : vector<8x1xf32> to vector<8x8xf32>
    %153 = arith.subf %149, %152 : vector<8x8xf32>
    %154 = math.exp %153 : vector<8x8xf32>
    %cst_73 = arith.constant dense<0.000000e+00> : vector<8xf32>
    %155 = vector.multi_reduction <add>, %154, %cst_73 [1] : vector<8x8xf32> to vector<8xf32>
    %156 = vector.shape_cast %155 : vector<8xf32> to vector<8x1xf32>
    %cst_74 = arith.constant dense<0.000000e+00> : vector<8x8xf32>
    %157 = tpu.matmul %154, %148, %cst_74 {dimension_numbers = #tpu.dot_dimension_numbers<[1], [0], [0], [1], [0, 0, 1, 1], [], []>} : vector<8x8xf32>, vector<8x8xf32>, vector<8x8xf32> -> vector<8x8xf32>
    %158 = vector.broadcast %156 : vector<8x1xf32> to vector<8x8xf32>
    %159 = arith.divf %157, %158 : vector<8x8xf32>
    %160 = vector.extract_strided_slice %18 {offsets = [0, 24], sizes = [8, 8], strides = [1, 1]} : vector<8x96xf32> to vector<8x8xf32>
    %161 = vector.extract_strided_slice %11 {offsets = [0, 56], sizes = [8, 8], strides = [1, 1]} : vector<8x96xf32> to vector<8x8xf32>
    %162 = vector.extract_strided_slice %11 {offsets = [0, 88], sizes = [8, 8], strides = [1, 1]} : vector<8x96xf32> to vector<8x8xf32>
    %cst_75 = arith.constant dense<0.000000e+00> : vector<8x8xf32>
    %163 = tpu.matmul %160, %161, %cst_75 {dimension_numbers = #tpu.dot_dimension_numbers<[1], [1], [0], [0], [0, 0, 1, 0], [], []>} : vector<8x8xf32>, vector<8x8xf32>, vector<8x8xf32> -> vector<8x8xf32>
    %cst_76 = arith.constant dense<0xFF800000> : vector<8xf32>
    %164 = vector.multi_reduction <maximumf>, %163, %cst_76 [1] : vector<8x8xf32> to vector<8xf32>
    %165 = vector.shape_cast %164 : vector<8xf32> to vector<8x1xf32>
    %166 = vector.broadcast %165 : vector<8x1xf32> to vector<8x8xf32>
    %167 = arith.subf %163, %166 : vector<8x8xf32>
    %168 = math.exp %167 : vector<8x8xf32>
    %cst_77 = arith.constant dense<0.000000e+00> : vector<8xf32>
    %169 = vector.multi_reduction <add>, %168, %cst_77 [1] : vector<8x8xf32> to vector<8xf32>
    %170 = vector.shape_cast %169 : vector<8xf32> to vector<8x1xf32>
    %cst_78 = arith.constant dense<0.000000e+00> : vector<8x8xf32>
    %171 = tpu.matmul %168, %162, %cst_78 {dimension_numbers = #tpu.dot_dimension_numbers<[1], [0], [0], [1], [0, 0, 1, 1], [], []>} : vector<8x8xf32>, vector<8x8xf32>, vector<8x8xf32> -> vector<8x8xf32>
    %172 = vector.broadcast %170 : vector<8x1xf32> to vector<8x8xf32>
    %173 = arith.divf %171, %172 : vector<8x8xf32>
    %174 = tpu.concatenate %131, %145, %159, %173 in 1 : vector<8x8xf32>, vector<8x8xf32>, vector<8x8xf32>, vector<8x8xf32> -> vector<8x32xf32>
    %175 = vector.broadcast %113 : vector<1x32xf32> to vector<8x32xf32>
    %176 = arith.addf %4, %175 : vector<8x32xf32>
    %cst_79 = arith.constant dense<0.000000e+00> : vector<8x32xf32>
    %177 = tpu.matmul %174, %111, %cst_79 {dimension_numbers = #tpu.dot_dimension_numbers<[1], [0], [0], [1], [0, 0, 1, 1], [], []>} : vector<8x32xf32>, vector<32x32xf32>, vector<8x32xf32> -> vector<8x32xf32>
    %178 = arith.addf %176, %177 : vector<8x32xf32>
    %cst_80 = arith.constant dense<0.000000e+00> : vector<8xf32>
    %179 = vector.multi_reduction <add>, %178, %cst_80 [1] : vector<8x32xf32> to vector<8xf32>
    %180 = vector.shape_cast %179 : vector<8xf32> to vector<8x1xf32>
    %cst_81 = arith.constant 3.200000e+01 : f32
    %181 = vector.broadcast %cst_81 : f32 to vector<8x1xf32>
    %182 = arith.divf %180, %181 : vector<8x1xf32>
    %183 = vector.broadcast %182 : vector<8x1xf32> to vector<8x32xf32>
    %184 = arith.subf %178, %183 : vector<8x32xf32>
    %185 = arith.mulf %184, %184 : vector<8x32xf32>
    %cst_82 = arith.constant dense<0.000000e+00> : vector<8xf32>
    %186 = vector.multi_reduction <add>, %185, %cst_82 [1] : vector<8x32xf32> to vector<8xf32>
    %187 = vector.shape_cast %186 : vector<8xf32> to vector<8x1xf32>
    %cst_83 = arith.constant 3.200000e+01 : f32
    %188 = vector.broadcast %cst_83 : f32 to vector<8x1xf32>
    %189 = arith.divf %187, %188 : vector<8x1xf32>
    %190 = vector.broadcast %182 : vector<8x1xf32> to vector<8x32xf32>
    %191 = arith.subf %178, %190 : vector<8x32xf32>
    %cst_84 = arith.constant 9.99999974E-6 : f32
    %192 = vector.broadcast %cst_84 : f32 to vector<8x1xf32>
    %193 = arith.addf %189, %192 : vector<8x1xf32>
    %194 = math.rsqrt %193 : vector<8x1xf32>
    %195 = vector.broadcast %194 : vector<8x1xf32> to vector<8x32xf32>
    %196 = arith.mulf %191, %195 : vector<8x32xf32>
    %197 = vector.broadcast %115 : vector<1x32xf32> to vector<8x32xf32>
    %198 = arith.mulf %196, %197 : vector<8x32xf32>
    %199 = vector.broadcast %117 : vector<1x32xf32> to vector<8x32xf32>
    %200 = arith.addf %198, %199 : vector<8x32xf32>
    %c0_85 = arith.constant 0 : index
    %c0_86 = arith.constant 0 : index
    %201 = vector.load %arg17[%c0_85, %c0_86] : memref<8x32xf32, #tpu.memory_space<vmem>>, vector<8x32xf32>
    tpu.vector_store %arg17[%c0_85, %c0_86], %109 {strides = array<i32>} : memref<8x32xf32, #tpu.memory_space<vmem>>, vector<8x32xf32>,
    %c0_87 = arith.constant 0 : index
    %c0_88 = arith.constant 0 : index
    %202 = vector.load %arg18[%c0_87, %c0_88] : memref<8x32xf32, #tpu.memory_space<vmem>>, vector<8x32xf32>
    tpu.vector_store %arg18[%c0_87, %c0_88], %200 {strides = array<i32>} : memref<8x32xf32, #tpu.memory_space<vmem>>, vector<8x32xf32>,
    %c1_i32 = arith.constant 1 : i32
    %203 = arith.cmpi eq, %arg1, %c1_i32 : i32
    %204 = arith.extui %203 : i1 to i32
    %c0_i32_89 = arith.constant 0 : i32
    %205 = arith.cmpi ne, %204, %c0_i32_89 : i32
    scf.if %205 {
      %c0_90 = arith.constant 0 : index
      %c0_91 = arith.constant 0 : index
      %c0_92 = arith.constant 0 : index
      %c0_93 = arith.constant 0 : index
      %206 = vector.load %arg16[%c0_90, %c0_91, %c0_92, %c0_93] : memref<1x2x8x32xf32, #tpu.memory_space<vmem>>, vector<1x1x8x32xf32>
      %207 = vector.shape_cast %206 : vector<1x1x8x32xf32> to vector<8x32xf32>
      %208 = vector.shape_cast %109 : vector<8x32xf32> to vector<1x1x8x32xf32>
      tpu.vector_store %arg16[%c0_90, %c0_91, %c0_92, %c0_93], %208 {strides = array<i32>} : memref<1x2x8x32xf32, #tpu.memory_space<vmem>>, vector<1x1x8x32xf32>,
      %c0_94 = arith.constant 0 : index
      %c1 = arith.constant 1 : index
      %c0_95 = arith.constant 0 : index
      %c0_96 = arith.constant 0 : index
      %209 = vector.load %arg16[%c0_94, %c1, %c0_95, %c0_96] : memref<1x2x8x32xf32, #tpu.memory_space<vmem>>, vector<1x1x8x32xf32>
      %210 = vector.shape_cast %209 : vector<1x1x8x32xf32> to vector<8x32xf32>
      %211 = vector.shape_cast %200 : vector<8x32xf32> to vector<1x1x8x32xf32>
      tpu.vector_store %arg16[%c0_94, %c1, %c0_95, %c0_96], %211 {strides = array<i32>} : memref<1x2x8x32xf32, #tpu.memory_space<vmem>>, vector<1x1x8x32xf32>,
    } else {
    }
    return
  }
  func.func @transform_0(%arg0: i32, %arg1: i32) -> (i32, i32, i32) {
    %c0_i32 = arith.constant 0 : i32
    %c0_i32_0 = arith.constant 0 : i32
    %c0_i32_1 = arith.constant 0 : i32
    return %arg0, %c0_i32, %c0_i32_0 : i32, i32, i32
  }
  func.func @transform_1(%arg0: i32, %arg1: i32) -> (i32, i32, i32) {
    %c0_i32 = arith.constant 0 : i32
    %c0_i32_0 = arith.constant 0 : i32
    %c0_i32_1 = arith.constant 0 : i32
    return %arg0, %c0_i32, %c0_i32_0 : i32, i32, i32
  }
  func.func @transform_2(%arg0: i32, %arg1: i32) -> (i32, i32, i32) {
    %c0_i32 = arith.constant 0 : i32
    %c0_i32_0 = arith.constant 0 : i32
    %c0_i32_1 = arith.constant 0 : i32
    return %arg1, %c0_i32, %c0_i32_0 : i32, i32, i32
  }
  func.func @transform_3(%arg0: i32, %arg1: i32) -> (i32, i32, i32) {
    %c0_i32 = arith.constant 0 : i32
    %c0_i32_0 = arith.constant 0 : i32
    %c0_i32_1 = arith.constant 0 : i32
    return %arg1, %c0_i32, %c0_i32_0 : i32, i32, i32
  }
  func.func @transform_4(%arg0: i32, %arg1: i32) -> (i32, i32, i32) {
    %c0_i32 = arith.constant 0 : i32
    %c0_i32_0 = arith.constant 0 : i32
    %c0_i32_1 = arith.constant 0 : i32
    return %arg1, %c0_i32, %c0_i32_0 : i32, i32, i32
  }
  func.func @transform_5(%arg0: i32, %arg1: i32) -> (i32, i32, i32) {
    %c0_i32 = arith.constant 0 : i32
    %c0_i32_0 = arith.constant 0 : i32
    %c0_i32_1 = arith.constant 0 : i32
    return %arg1, %c0_i32, %c0_i32_0 : i32, i32, i32
  }
  func.func @transform_6(%arg0: i32, %arg1: i32) -> (i32, i32, i32) {
    %c0_i32 = arith.constant 0 : i32
    %c0_i32_0 = arith.constant 0 : i32
    %c0_i32_1 = arith.constant 0 : i32
    return %arg1, %c0_i32, %c0_i32_0 : i32, i32, i32
  }
  func.func @transform_7(%arg0: i32, %arg1: i32) -> (i32, i32, i32) {
    %c0_i32 = arith.constant 0 : i32
    %c0_i32_0 = arith.constant 0 : i32
    %c0_i32_1 = arith.constant 0 : i32
    return %arg1, %c0_i32, %c0_i32_0 : i32, i32, i32
  }
  func.func @transform_8(%arg0: i32, %arg1: i32) -> (i32, i32, i32) {
    %c0_i32 = arith.constant 0 : i32
    %c0_i32_0 = arith.constant 0 : i32
    %c0_i32_1 = arith.constant 0 : i32
    return %arg1, %c0_i32, %c0_i32_0 : i32, i32, i32
  }
  func.func @transform_9(%arg0: i32, %arg1: i32) -> (i32, i32, i32) {
    %c0_i32 = arith.constant 0 : i32
    %c0_i32_0 = arith.constant 0 : i32
    %c0_i32_1 = arith.constant 0 : i32
    return %arg1, %c0_i32, %c0_i32_0 : i32, i32, i32
  }
  func.func @transform_10(%arg0: i32, %arg1: i32) -> (i32, i32, i32) {
    %c0_i32 = arith.constant 0 : i32
    %c0_i32_0 = arith.constant 0 : i32
    %c0_i32_1 = arith.constant 0 : i32
    return %arg1, %c0_i32, %c0_i32_0 : i32, i32, i32
  }
  func.func @transform_11(%arg0: i32, %arg1: i32) -> (i32, i32, i32) {
    %c0_i32 = arith.constant 0 : i32
    %c0_i32_0 = arith.constant 0 : i32
    %c0_i32_1 = arith.constant 0 : i32
    return %arg1, %c0_i32, %c0_i32_0 : i32, i32, i32
  }
  func.func @transform_12(%arg0: i32, %arg1: i32) -> (i32, i32, i32) {
    %c0_i32 = arith.constant 0 : i32
    %c0_i32_0 = arith.constant 0 : i32
    %c0_i32_1 = arith.constant 0 : i32
    return %arg1, %c0_i32, %c0_i32_0 : i32, i32, i32
  }
  func.func @transform_13(%arg0: i32, %arg1: i32) -> (i32, i32, i32) {
    %c0_i32 = arith.constant 0 : i32
    %c0_i32_0 = arith.constant 0 : i32
    %c0_i32_1 = arith.constant 0 : i32
    return %arg1, %c0_i32, %c0_i32_0 : i32, i32, i32
  }
  func.func @transform_14(%arg0: i32, %arg1: i32) -> (i32, i32, i32, i32) {
    %c0_i32 = arith.constant 0 : i32
    %c0_i32_0 = arith.constant 0 : i32
    %c0_i32_1 = arith.constant 0 : i32
    %c0_i32_2 = arith.constant 0 : i32
    return %arg0, %c0_i32, %c0_i32_0, %c0_i32_1 : i32, i32, i32, i32
  }
}

</mosaic_0001>

<llo_original>
// kernel: dals_forward.1
$region0: #{dals_forward.1}
  #allocation0 [shape = 'u32[]', space=smem, size = 0x4, offset = 0x4, fixed_abs, tag = 'smem constant byte address 0x4 - core index']
  #allocation1 [shape = 'u32[144,128]{1,0:T(1,128)}', space=vmem, size = 0x12000, scoped, tag = 'internal scratch']
  #allocation2 [shape = 'f32[8,32]{1,0:T(8,128)}', space=vmem, size = 0x1000, scoped, tag = 'scratch operand']
  #allocation3 [shape = 'f32[8,32]{1,0:T(8,128)}', space=vmem, size = 0x1000, scoped, tag = 'scratch operand']
  %s0 = inlined_call_operand.hbm [shape: f32[2,8,32], index: 0, kind: input, shape index: {}]
  %s1 = inlined_call_operand.hbm [shape: f32[2,8,32], index: 1, kind: input, shape index: {}]
  %s2 = inlined_call_operand.hbm [shape: f32[2,32,96], index: 2, kind: input, shape index: {}]
  %s3 = inlined_call_operand.vmem [shape: f32[2,1,96], index: 3, kind: input, shape index: {}]
  %s4 = inlined_call_operand.hbm [shape: f32[2,32,96], index: 4, kind: input, shape index: {}]
  %s5 = inlined_call_operand.vmem [shape: f32[2,1,96], index: 5, kind: input, shape index: {}]
  %s6 = inlined_call_operand.hbm [shape: f32[2,32,32], index: 6, kind: input, shape index: {}]
  %s7 = inlined_call_operand.vmem [shape: f32[2,1,32], index: 7, kind: input, shape index: {}]
  %s8 = inlined_call_operand.hbm [shape: f32[2,32,32], index: 8, kind: input, shape index: {}]
  %s9 = inlined_call_operand.vmem [shape: f32[2,1,32], index: 9, kind: input, shape index: {}]
  %s10 = inlined_call_operand.vmem [shape: f32[2,1,32], index: 10, kind: input, shape index: {}]
  %s11 = inlined_call_operand.vmem [shape: f32[2,1,32], index: 11, kind: input, shape index: {}]
  %s12 = inlined_call_operand.vmem [shape: f32[2,1,32], index: 12, kind: input, shape index: {}]
  %s13 = inlined_call_operand.vmem [shape: f32[2,1,32], index: 13, kind: input, shape index: {}]
  %s14 = inlined_call_operand.hbm [shape: f32[2,2,8,32], index: 14, kind: output, shape index: {}]
  %s15 = sld [smem:[#allocation0]]
  $region121: #{dals_forward.1} parent=0
    _
  %s17 = ssub.s32 1, %s15
  %s18 = scalar_select 0, %s17, %s15
  $region1: #{dals_forward.1} parent=0
    #allocation4 [shape = 'u8[8192]{0}', space=vmem, size = 0x2000, scoped, tag = 'input window, operand 0']
    #allocation5 [shape = 's32[2]{0}', space=sflag, size = 0x8, scoped, tag = 'scoped memory for dals_forward.1']
    #allocation6 [shape = 's32[2]{0}', space=sflag, size = 0x8, scoped, tag = 'scoped memory for dals_forward.1']
    #allocation7 [shape = 'u8[8192]{0}', space=vmem, size = 0x2000, scoped, tag = 'input window, operand 1']
    #allocation8 [shape = 's32[2]{0}', space=sflag, size = 0x8, scoped, tag = 'scoped memory for dals_forward.1']
    #allocation9 [shape = 'u8[32768]{0}', space=vmem, size = 0x8000, scoped, tag = 'input window, operand 2']
    #allocation10 [shape = 'u8[32768]{0}', space=vmem, size = 0x8000, scoped, tag = 'input window, operand 4']
    #allocation11 [shape = 's32[2]{0}', space=sflag, size = 0x8, scoped, tag = 'scoped memory for dals_forward.1']
    #allocation12 [shape = 'u8[32768]{0}', space=vmem, size = 0x8000, scoped, tag = 'input window, operand 6']
    #allocation13 [shape = 'u8[32768]{0}', space=vmem, size = 0x8000, scoped, tag = 'input window, operand 8']
    #allocation14 [shape = 's32[2]{0}', space=sflag, size = 0x8, scoped, tag = 'scoped memory for dals_forward.1']
    #allocation15 [shape = 'u8[16384]{0}', space=vmem, size = 0x4000, scoped, tag = 'output window, operand 0']
    %19 = vsyncpa [#allocation5], 0
    %s20 = scalar_lea.sflag [#allocation5], 1
    %21 = vsyncpa %s20, 0
    %22 = vsyncpa [#allocation8], 0
    %s23 = scalar_lea.sflag [#allocation8], 1
    %24 = vsyncpa %s23, 0
    %25 = vsyncpa [#allocation11], 0
    %s26 = scalar_lea.sflag [#allocation11], 1
    %27 = vsyncpa %s26, 0
    %28 = vsyncpa [#allocation14], 0
    %s29 = scalar_lea.sflag [#allocation14], 1
    %30 = vsyncpa %s29, 0
    %31 = vsyncpa [#allocation6], 0
    %s32 = scalar_lea.sflag [#allocation6], 1
    %33 = vsyncpa %s32, 0
    loop: start=0, step=1, limit=6
    $region2: #{dals_forward.1} parent=1 // loop_pre_header
      _
    $region3: #{dals_forward.1} parent=1 // loop_header
      %s35 = sphi 0, %s39
      %p36 = scmp.ge.s32.totalorder %s35, 6
      %s42 = sphi 0, %s54
      %s43 = sphi 0, %s50
      %s44 = sphi 0, %s42
      %s45 = sphi 0, %s43
      %s46 = sphi 0, %s44
      %s47 = sphi 0, %s45
      %s57 = sphi 0, %s59
      %s60 = sphi 0, %s57
      %s61 = sphi 0, %s60
      %s77 = sphi 0, %s61
      %s83 = sphi 0, %s85
      %s86 = sphi 0, %s83
      %s87 = sphi 0, %s86
      %s103 = sphi 0, %s87
      %s109 = sphi 0, %s111
      %s112 = sphi 0, %s109
      %s113 = sphi 0, %s112
      %s129 = sphi 0, %s113
      %s135 = sphi 0, %s137
      %s138 = sphi 0, %s135
      %s139 = sphi 0, %s138
      %s155 = sphi 0, %s139
      %s161 = sphi 0, %s163
      %s164 = sphi 0, %s161
      %s165 = sphi 0, %s164
      %s181 = sphi 0, %s165
      %s187 = sphi 0, %s189
      %s190 = sphi 0, %s187
      %s191 = sphi 0, %s190
      %s207 = sphi 0, %s191
      %s213 = sphi 0, %s215
      %s216 = sphi 0, %s213
      %s217 = sphi 0, %s216
      %s233 = sphi 0, %s217
      %s239 = sphi 0, %s241
      %s242 = sphi 0, %s239
      %s243 = sphi 0, %s242
      %s259 = sphi 0, %s243
      %s265 = sphi 0, %s267
      %s268 = sphi 0, %s265
      %s269 = sphi 0, %s268
      %s285 = sphi 0, %s269
      %s291 = sphi 0, %s293
      %s294 = sphi 0, %s291
      %s295 = sphi 0, %s294
      %s311 = sphi 0, %s295
      %s317 = sphi 0, %s319
      %s320 = sphi 0, %s317
      %s321 = sphi 0, %s320
      %s337 = sphi 0, %s321
      %s343 = sphi 0, %s345
      %s346 = sphi 0, %s343
      %s347 = sphi 0, %s346
      %s363 = sphi 0, %s347
      %s369 = sphi 0, %s371
      %s372 = sphi 0, %s369
      %s373 = sphi 0, %s372
      %s389 = sphi 0, %s373
      %s395 = sphi 0, %s397
      %s398 = sphi 0, %s395
      %s399 = sphi 0, %s398
      %s415 = sphi 0, %s399
      %s421 = sphi 0, %s423
      %s424 = sphi 0, %s421
      %s425 = sphi 0, %s424
      %s441 = sphi 0, %s425
    $region4: #{dals_forward.1} parent=1 // loop_header_branch
      %38 = sbr.rel (%p36) target = $region8
    $region5: #{dals_forward.1} parent=1 // loop_body
      %s40 = ssub.s32 %s35, 1
      %s41 = ssub.s32 %s35, 2
      %s48 = sadd.s32 1, %s43
      %p49 = scmp.ge.s32.totalorder %s48, 2
      %s50 = scalar_select %p49, 0, %s48
      %s51 = sadd.s32 1, %s42
      %s52 = scalar_select %p49, %s51, %s42
      %p53 = scmp.ge.s32.totalorder %s52, 2
      %s54 = scalar_select %p53, 0, %s52
      %s55 = ssub.s32 %s42, %s54
      %p56 = scmp.eq.s32.totalorder %s55, 0
      %s58 = sadd.s32 %s57, 1
      %s59 = scalar_select %p56, %s57, %s58
      %p62 = pneg %p56
      %p63 = scmp.eq.s32.totalorder %s35, 3
      %p64 = por %p62, %p63
      %p65 = scmp.ne.s32.totalorder %s57, %s60
      %p66 = scmp.eq.s32.totalorder %s35, 0
      %p67 = por %p65, %p66
      %p68 = scmp.ne.s32.totalorder %s57, %s60
      %p69 = scmp.eq.s32.totalorder %s40, 3
      %p70 = por %p68, %p69
      %p71 = scmp.ne.s32.totalorder %s60, %s61
      %p72 = scmp.eq.s32.totalorder %s40, 0
      %p73 = por %p71, %p72
      %p74 = scmp.ne.s32.totalorder %s60, %s61
      %p75 = scmp.eq.s32.totalorder %s41, 3
      %p76 = por %p74, %p75
      %p78 = scmp.ne.s32.totalorder %s61, %s77
      %p79 = scmp.eq.s32.totalorder %s41, 0
      %p80 = por %p78, %p79
      %s81 = ssub.s32 %s42, %s54
      %p82 = scmp.eq.s32.totalorder %s81, 0
      %s84 = sadd.s32 %s83, 1
      %s85 = scalar_select %p82, %s83, %s84
      %p88 = pneg %p82
      %p89 = scmp.eq.s32.totalorder %s35, 3
      %p90 = por %p88, %p89
      %p91 = scmp.ne.s32.totalorder %s83, %s86
      %p92 = scmp.eq.s32.totalorder %s35, 0
      %p93 = por %p91, %p92
      %p94 = scmp.ne.s32.totalorder %s83, %s86
      %p95 = scmp.eq.s32.totalorder %s40, 3
      %p96 = por %p94, %p95
      %p97 = scmp.ne.s32.totalorder %s86, %s87
      %p98 = scmp.eq.s32.totalorder %s40, 0
      %p99 = por %p97, %p98
      %p100 = scmp.ne.s32.totalorder %s86, %s87
      %p101 = scmp.eq.s32.totalorder %s41, 3
      %p102 = por %p100, %p101
      %p104 = scmp.ne.s32.totalorder %s87, %s103
      %p105 = scmp.eq.s32.totalorder %s41, 0
      %p106 = por %p104, %p105
      %s107 = ssub.s32 %s43, %s50
      %p108 = scmp.eq.s32.totalorder %s107, 0
      %s110 = sadd.s32 %s109, 1
      %s111 = scalar_select %p108, %s109, %s110
      %p114 = pneg %p108
      %p115 = scmp.eq.s32.totalorder %s35, 3
      %p116 = por %p114, %p115
      %p117 = scmp.ne.s32.totalorder %s109, %s112
      %p118 = scmp.eq.s32.totalorder %s35, 0
      %p119 = por %p117, %p118
      %p120 = scmp.ne.s32.totalorder %s109, %s112
      %p121 = scmp.eq.s32.totalorder %s40, 3
      %p122 = por %p120, %p121
      %p123 = scmp.ne.s32.totalorder %s112, %s113
      %p124 = scmp.eq.s32.totalorder %s40, 0
      %p125 = por %p123, %p124
      %p126 = scmp.ne.s32.totalorder %s112, %s113
      %p127 = scmp.eq.s32.totalorder %s41, 3
      %p128 = por %p126, %p127
      %p130 = scmp.ne.s32.totalorder %s113, %s129
      %p131 = scmp.eq.s32.totalorder %s41, 0
      %p132 = por %p130, %p131
      %s133 = ssub.s32 %s43, %s50
      %p134 = scmp.eq.s32.totalorder %s133, 0
      %s136 = sadd.s32 %s135, 1
      %s137 = scalar_select %p134, %s135, %s136
      %p140 = pneg %p134
      %p141 = scmp.eq.s32.totalorder %s35, 3
      %p142 = por %p140, %p141
      %p143 = scmp.ne.s32.totalorder %s135, %s138
      %p144 = scmp.eq.s32.totalorder %s35, 0
      %p145 = por %p143, %p144
      %p146 = scmp.ne.s32.totalorder %s135, %s138
      %p147 = scmp.eq.s32.totalorder %s40, 3
      %p148 = por %p146, %p147
      %p149 = scmp.ne.s32.totalorder %s138, %s139
      %p150 = scmp.eq.s32.totalorder %s40, 0
      %p151 = por %p149, %p150
      %p152 = scmp.ne.s32.totalorder %s138, %s139
      %p153 = scmp.eq.s32.totalorder %s41, 3
      %p154 = por %p152, %p153
      %p156 = scmp.ne.s32.totalorder %s139, %s155
      %p157 = scmp.eq.s32.totalorder %s41, 0
      %p158 = por %p156, %p157
      %s159 = ssub.s32 %s43, %s50
      %p160 = scmp.eq.s32.totalorder %s159, 0
      %s162 = sadd.s32 %s161, 1
      %s163 = scalar_select %p160, %s161, %s162
      %p166 = pneg %p160
      %p167 = scmp.eq.s32.totalorder %s35, 3
      %p168 = por %p166, %p167
      %p169 = scmp.ne.s32.totalorder %s161, %s164
      %p170 = scmp.eq.s32.totalorder %s35, 0
      %p171 = por %p169, %p170
      %p172 = scmp.ne.s32.totalorder %s161, %s164
      %p173 = scmp.eq.s32.totalorder %s40, 3
      %p174 = por %p172, %p173
      %p175 = scmp.ne.s32.totalorder %s164, %s165
      %p176 = scmp.eq.s32.totalorder %s40, 0
      %p177 = por %p175, %p176
      %p178 = scmp.ne.s32.totalorder %s164, %s165
      %p179 = scmp.eq.s32.totalorder %s41, 3
      %p180 = por %p178, %p179
      %p182 = scmp.ne.s32.totalorder %s165, %s181
      %p183 = scmp.eq.s32.totalorder %s41, 0
      %p184 = por %p182, %p183
      %s185 = ssub.s32 %s43, %s50
      %p186 = scmp.eq.s32.totalorder %s185, 0
      %s188 = sadd.s32 %s187, 1
      %s189 = scalar_select %p186, %s187, %s188
      %p192 = pneg %p186
      %p193 = scmp.eq.s32.totalorder %s35, 3
      %p194 = por %p192, %p193
      %p195 = scmp.ne.s32.totalorder %s187, %s190
      %p196 = scmp.eq.s32.totalorder %s35, 0
      %p197 = por %p195, %p196
      %p198 = scmp.ne.s32.totalorder %s187, %s190
      %p199 = scmp.eq.s32.totalorder %s40, 3
      %p200 = por %p198, %p199
      %p201 = scmp.ne.s32.totalorder %s190, %s191
      %p202 = scmp.eq.s32.totalorder %s40, 0
      %p203 = por %p201, %p202
      %p204 = scmp.ne.s32.totalorder %s190, %s191
      %p205 = scmp.eq.s32.totalorder %s41, 3
      %p206 = por %p204, %p205
      %p208 = scmp.ne.s32.totalorder %s191, %s207
      %p209 = scmp.eq.s32.totalorder %s41, 0
      %p210 = por %p208, %p209
      %s211 = ssub.s32 %s43, %s50
      %p212 = scmp.eq.s32.totalorder %s211, 0
      %s214 = sadd.s32 %s213, 1
      %s215 = scalar_select %p212, %s213, %s214
      %p218 = pneg %p212
      %p219 = scmp.eq.s32.totalorder %s35, 3
      %p220 = por %p218, %p219
      %p221 = scmp.ne.s32.totalorder %s213, %s216
      %p222 = scmp.eq.s32.totalorder %s35, 0
      %p223 = por %p221, %p222
      %p224 = scmp.ne.s32.totalorder %s213, %s216
      %p225 = scmp.eq.s32.totalorder %s40, 3
      %p226 = por %p224, %p225
      %p227 = scmp.ne.s32.totalorder %s216, %s217
      %p228 = scmp.eq.s32.totalorder %s40, 0
      %p229 = por %p227, %p228
      %p230 = scmp.ne.s32.totalorder %s216, %s217
      %p231 = scmp.eq.s32.totalorder %s41, 3
      %p232 = por %p230, %p231
      %p234 = scmp.ne.s32.totalorder %s217, %s233
      %p235 = scmp.eq.s32.totalorder %s41, 0
      %p236 = por %p234, %p235
      %s237 = ssub.s32 %s43, %s50
      %p238 = scmp.eq.s32.totalorder %s237, 0
      %s240 = sadd.s32 %s239, 1
      %s241 = scalar_select %p238, %s239, %s240
      %p244 = pneg %p238
      %p245 = scmp.eq.s32.totalorder %s35, 3
      %p246 = por %p244, %p245
      %p247 = scmp.ne.s32.totalorder %s239, %s242
      %p248 = scmp.eq.s32.totalorder %s35, 0
      %p249 = por %p247, %p248
      %p250 = scmp.ne.s32.totalorder %s239, %s242
      %p251 = scmp.eq.s32.totalorder %s40, 3
      %p252 = por %p250, %p251
      %p253 = scmp.ne.s32.totalorder %s242, %s243
      %p254 = scmp.eq.s32.totalorder %s40, 0
      %p255 = por %p253, %p254
      %p256 = scmp.ne.s32.totalorder %s242, %s243
      %p257 = scmp.eq.s32.totalorder %s41, 3
      %p258 = por %p256, %p257
      %p260 = scmp.ne.s32.totalorder %s243, %s259
      %p261 = scmp.eq.s32.totalorder %s41, 0
      %p262 = por %p260, %p261
      %s263 = ssub.s32 %s43, %s50
      %p264 = scmp.eq.s32.totalorder %s263, 0
      %s266 = sadd.s32 %s265, 1
      %s267 = scalar_select %p264, %s265, %s266
      %p270 = pneg %p264
      %p271 = scmp.eq.s32.totalorder %s35, 3
      %p272 = por %p270, %p271
      %p273 = scmp.ne.s32.totalorder %s265, %s268
      %p274 = scmp.eq.s32.totalorder %s35, 0
      %p275 = por %p273, %p274
      %p276 = scmp.ne.s32.totalorder %s265, %s268
      %p277 = scmp.eq.s32.totalorder %s40, 3
      %p278 = por %p276, %p277
      %p279 = scmp.ne.s32.totalorder %s268, %s269
      %p280 = scmp.eq.s32.totalorder %s40, 0
      %p281 = por %p279, %p280
      %p282 = scmp.ne.s32.totalorder %s268, %s269
      %p283 = scmp.eq.s32.totalorder %s41, 3
      %p284 = por %p282, %p283
      %p286 = scmp.ne.s32.totalorder %s269, %s285
      %p287 = scmp.eq.s32.totalorder %s41, 0
      %p288 = por %p286, %p287
      %s289 = ssub.s32 %s43, %s50
      %p290 = scmp.eq.s32.totalorder %s289, 0
      %s292 = sadd.s32 %s291, 1
      %s293 = scalar_select %p290, %s291, %s292
      %p296 = pneg %p290
      %p297 = scmp.eq.s32.totalorder %s35, 3
      %p298 = por %p296, %p297
      %p299 = scmp.ne.s32.totalorder %s291, %s294
      %p300 = scmp.eq.s32.totalorder %s35, 0
      %p301 = por %p299, %p300
      %p302 = scmp.ne.s32.totalorder %s291, %s294
      %p303 = scmp.eq.s32.totalorder %s40, 3
      %p304 = por %p302, %p303
      %p305 = scmp.ne.s32.totalorder %s294, %s295
      %p306 = scmp.eq.s32.totalorder %s40, 0
      %p307 = por %p305, %p306
      %p308 = scmp.ne.s32.totalorder %s294, %s295
      %p309 = scmp.eq.s32.totalorder %s41, 3
      %p310 = por %p308, %p309
      %p312 = scmp.ne.s32.totalorder %s295, %s311
      %p313 = scmp.eq.s32.totalorder %s41, 0
      %p314 = por %p312, %p313
      %s315 = ssub.s32 %s43, %s50
      %p316 = scmp.eq.s32.totalorder %s315, 0
      %s318 = sadd.s32 %s317, 1
      %s319 = scalar_select %p316, %s317, %s318
      %p322 = pneg %p316
      %p323 = scmp.eq.s32.totalorder %s35, 3
      %p324 = por %p322, %p323
      %p325 = scmp.ne.s32.totalorder %s317, %s320
      %p326 = scmp.eq.s32.totalorder %s35, 0
      %p327 = por %p325, %p326
      %p328 = scmp.ne.s32.totalorder %s317, %s320
      %p329 = scmp.eq.s32.totalorder %s40, 3
      %p330 = por %p328, %p329
      %p331 = scmp.ne.s32.totalorder %s320, %s321
      %p332 = scmp.eq.s32.totalorder %s40, 0
      %p333 = por %p331, %p332
      %p334 = scmp.ne.s32.totalorder %s320, %s321
      %p335 = scmp.eq.s32.totalorder %s41, 3
      %p336 = por %p334, %p335
      %p338 = scmp.ne.s32.totalorder %s321, %s337
      %p339 = scmp.eq.s32.totalorder %s41, 0
      %p340 = por %p338, %p339
      %s341 = ssub.s32 %s43, %s50
      %p342 = scmp.eq.s32.totalorder %s341, 0
      %s344 = sadd.s32 %s343, 1
      %s345 = scalar_select %p342, %s343, %s344
      %p348 = pneg %p342
      %p349 = scmp.eq.s32.totalorder %s35, 3
      %p350 = por %p348, %p349
      %p351 = scmp.ne.s32.totalorder %s343, %s346
      %p352 = scmp.eq.s32.totalorder %s35, 0
      %p353 = por %p351, %p352
      %p354 = scmp.ne.s32.totalorder %s343, %s346
      %p355 = scmp.eq.s32.totalorder %s40, 3
      %p356 = por %p354, %p355
      %p357 = scmp.ne.s32.totalorder %s346, %s347
      %p358 = scmp.eq.s32.totalorder %s40, 0
      %p359 = por %p357, %p358
      %p360 = scmp.ne.s32.totalorder %s346, %s347
      %p361 = scmp.eq.s32.totalorder %s41, 3
      %p362 = por %p360, %p361
      %p364 = scmp.ne.s32.totalorder %s347, %s363
      %p365 = scmp.eq.s32.totalorder %s41, 0
      %p366 = por %p364, %p365
      %s367 = ssub.s32 %s43, %s50
      %p368 = scmp.eq.s32.totalorder %s367, 0
      %s370 = sadd.s32 %s369, 1
      %s371 = scalar_select %p368, %s369, %s370
      %p374 = pneg %p368
      %p375 = scmp.eq.s32.totalorder %s35, 3
      %p376 = por %p374, %p375
      %p377 = scmp.ne.s32.totalorder %s369, %s372
      %p378 = scmp.eq.s32.totalorder %s35, 0
      %p379 = por %p377, %p378
      %p380 = scmp.ne.s32.totalorder %s369, %s372
      %p381 = scmp.eq.s32.totalorder %s40, 3
      %p382 = por %p380, %p381
      %p383 = scmp.ne.s32.totalorder %s372, %s373
      %p384 = scmp.eq.s32.totalorder %s40, 0
      %p385 = por %p383, %p384
      %p386 = scmp.ne.s32.totalorder %s372, %s373
      %p387 = scmp.eq.s32.totalorder %s41, 3
      %p388 = por %p386, %p387
      %p390 = scmp.ne.s32.totalorder %s373, %s389
      %p391 = scmp.eq.s32.totalorder %s41, 0
      %p392 = por %p390, %p391
      %s393 = ssub.s32 %s43, %s50
      %p394 = scmp.eq.s32.totalorder %s393, 0
      %s396 = sadd.s32 %s395, 1
      %s397 = scalar_select %p394, %s395, %s396
      %p400 = pneg %p394
      %p401 = scmp.eq.s32.totalorder %s35, 3
      %p402 = por %p400, %p401
      %p403 = scmp.ne.s32.totalorder %s395, %s398
      %p404 = scmp.eq.s32.totalorder %s35, 0
      %p405 = por %p403, %p404
      %p406 = scmp.ne.s32.totalorder %s395, %s398
      %p407 = scmp.eq.s32.totalorder %s40, 3
      %p408 = por %p406, %p407
      %p409 = scmp.ne.s32.totalorder %s398, %s399
      %p410 = scmp.eq.s32.totalorder %s40, 0
      %p411 = por %p409, %p410
      %p412 = scmp.ne.s32.totalorder %s398, %s399
      %p413 = scmp.eq.s32.totalorder %s41, 3
      %p414 = por %p412, %p413
      %p416 = scmp.ne.s32.totalorder %s399, %s415
      %p417 = scmp.eq.s32.totalorder %s41, 0
      %p418 = por %p416, %p417
      %s419 = ssub.s32 %s42, %s54
      %p420 = scmp.eq.s32.totalorder %s419, 0
      %s422 = sadd.s32 %s421, 1
      %s423 = scalar_select %p420, %s421, %s422
      %p426 = pneg %p420
      %p427 = scmp.eq.s32.totalorder %s35, 3
      %p428 = por %p426, %p427
      %p429 = scmp.ne.s32.totalorder %s421, %s424
      %p430 = scmp.eq.s32.totalorder %s35, 0
      %p431 = por %p429, %p430
      %p432 = scmp.ne.s32.totalorder %s421, %s424
      %p433 = scmp.eq.s32.totalorder %s40, 3
      %p434 = por %p432, %p433
      %p435 = scmp.ne.s32.totalorder %s424, %s425
      %p436 = scmp.eq.s32.totalorder %s40, 0
      %p437 = por %p435, %p436
      %p438 = scmp.ne.s32.totalorder %s424, %s425
      %p439 = scmp.eq.s32.totalorder %s41, 3
      %p440 = por %p438, %p439
      %p442 = scmp.ne.s32.totalorder %s425, %s441
      %p443 = scmp.eq.s32.totalorder %s41, 0
      %p444 = por %p442, %p443
      %p445 = scmp.le.s32.totalorder 1, %s35
      %p446 = scmp.lt.s32.totalorder %s35, 5
      %p447 = pnand %p445, %p446
      %p448 = pneg %p447
      // Predicated region
      $region9: #{dals_forward.1} parent=5 // pred_check
        _
      $region10: #{dals_forward.1} parent=5 // pred_check_branch
        %450 = sbr.rel (%p447) target = $region12
      $region11: #{dals_forward.1} parent=5 // pred_region
        %s451 = ssub.s32 %s35, 1
      $region12: #{dals_forward.1} parent=5 // pred_fallthru
        _
      %p452 = scmp.lt.s32.totalorder %s35, 4
      // Predicated region
      $region13: #{dals_forward.1} parent=5 // pred_check
        %p453 = pneg %p452
      $region14: #{dals_forward.1} parent=5 // pred_check_branch
        %455 = sbr.rel (%p453) target = $region16
      $region15: #{dals_forward.1} parent=5 // pred_region
        // Predicated region
        $region17: #{dals_forward.1} parent=15 // pred_check
          %p456 = pneg %p67
        $region18: #{dals_forward.1} parent=15 // pred_check_branch
          %458 = sbr.rel (%p456) target = $region20
        $region19: #{dals_forward.1} parent=15 // pred_region
          %s459 = sand.u32 %s57, 1
          %s460 = scalar_lea.sflag [#allocation5], %s459
          %s461 = sand.u32 %s57, 1
          %s462 = smul.addr %s461, 8
          %s463 = scalar_lea.vmem [#allocation4], %s462
          %s465 = ssub.s32 128, 128
          %466 = vsyncadd %s460, %s465
          %s467 = smul.addr %s42, 128
          %s468 = scalar_lea.hbm %s0, %s467
          %s470 = sshll.u32 %s463, 4
          %s471 = int_to_ptr.vmem [resolvable:$true] %s470
          %473 = dma.hbm_to_vmem [thread:$0]  %s468, 128, %s471, %s460
        $region20: #{dals_forward.1} parent=15 // pred_fallthru
          _
        // Predicated region
        $region21: #{dals_forward.1} parent=15 // pred_check
          %p474 = pneg %p93
        $region22: #{dals_forward.1} parent=15 // pred_check_branch
          %476 = sbr.rel (%p474) target = $region24
        $region23: #{dals_forward.1} parent=15 // pred_region
          %s477 = sand.u32 %s35, 1
          %s478 = scalar_lea.sflag [#allocation8], %s477
          %s479 = sand.u32 %s83, 1
          %s480 = smul.addr %s479, 8
          %s481 = scalar_lea.vmem [#allocation7], %s480
          %s483 = ssub.s32 128, 128
          %484 = vsyncadd %s478, %s483
          %s485 = smul.addr %s42, 128
          %s486 = scalar_lea.hbm %s1, %s485
          %s488 = sshll.u32 %s481, 4
          %s489 = int_to_ptr.vmem [resolvable:$true] %s488
          %491 = dma.hbm_to_vmem [thread:$0]  %s486, 128, %s489, %s478
        $region24: #{dals_forward.1} parent=15 // pred_fallthru
          _
        // Predicated region
        $region25: #{dals_forward.1} parent=15 // pred_check
          %p492 = pneg %p119
        $region26: #{dals_forward.1} parent=15 // pred_check_branch
          %494 = sbr.rel (%p492) target = $region28
        $region27: #{dals_forward.1} parent=15 // pred_region
          %s495 = sand.u32 %s35, 1
          %s496 = scalar_lea.sflag [#allocation8], %s495
          %s497 = sand.u32 %s109, 1
          %s498 = smul.addr %s497, 32
          %s499 = scalar_lea.vmem [#allocation9], %s498
          %s501 = ssub.s32 512, 512
          %502 = vsyncadd %s496, %s501
          %s503 = smul.addr %s43, 4
          %s504 = smul.addr %s503, 128
          %s505 = scalar_lea.hbm %s2, %s504
          %s506 = sshll.u32 %s499, 4
          %s507 = int_to_ptr.vmem [resolvable:$true] %s506
          %512 = dma.hbm_to_vmem [thread:$0]  %s505, 512, %s507, %s496, 128, 128, 8
        $region28: #{dals_forward.1} parent=15 // pred_fallthru
          _
        // Predicated region
        $region29: #{dals_forward.1} parent=15 // pred_check
          %p513 = pneg %p145
        $region30: #{dals_forward.1} parent=15 // pred_check_branch
          %515 = sbr.rel (%p513) target = $region32
        $region31: #{dals_forward.1} parent=15 // pred_region
          %p516 = scmp.lt.s32.totalorder %s43, 1
          %s517 = scalar_select %p516, %s43, 1
          %s518 = scalar_lea.vmem %s3, %s517
        $region32: #{dals_forward.1} parent=15 // pred_fallthru
          _
        // Predicated region
        $region33: #{dals_forward.1} parent=15 // pred_check
          %p519 = pneg %p171
        $region34: #{dals_forward.1} parent=15 // pred_check_branch
          %521 = sbr.rel (%p519) target = $region36
        $region35: #{dals_forward.1} parent=15 // pred_region
          %s522 = sand.u32 %s35, 1
          %s523 = scalar_lea.sflag [#allocation11], %s522
          %s524 = sand.u32 %s161, 1
          %s525 = smul.addr %s524, 32
          %s526 = scalar_lea.vmem [#allocation10], %s525
          %s528 = ssub.s32 512, 512
          %529 = vsyncadd %s523, %s528
          %s530 = smul.addr %s43, 4
          %s531 = smul.addr %s530, 128
          %s532 = scalar_lea.hbm %s4, %s531
          %s533 = sshll.u32 %s526, 4
          %s534 = int_to_ptr.vmem [resolvable:$true] %s533
          %539 = dma.hbm_to_vmem [thread:$0]  %s532, 512, %s534, %s523, 128, 128, 8
        $region36: #{dals_forward.1} parent=15 // pred_fallthru
          _
        // Predicated region
        $region37: #{dals_forward.1} parent=15 // pred_check
          %p540 = pneg %p197
        $region38: #{dals_forward.1} parent=15 // pred_check_branch
          %542 = sbr.rel (%p540) target = $region40
        $region39: #{dals_forward.1} parent=15 // pred_region
          %p543 = scmp.lt.s32.totalorder %s43, 1
          %s544 = scalar_select %p543, %s43, 1
          %s545 = scalar_lea.vmem %s5, %s544
        $region40: #{dals_forward.1} parent=15 // pred_fallthru
          _
        // Predicated region
        $region41: #{dals_forward.1} parent=15 // pred_check
          %p546 = pneg %p223
        $region42: #{dals_forward.1} parent=15 // pred_check_branch
          %548 = sbr.rel (%p546) target = $region44
        $region43: #{dals_forward.1} parent=15 // pred_region
          %s549 = sand.u32 %s35, 1
          %s550 = scalar_lea.sflag [#allocation11], %s549
          %s551 = sand.u32 %s213, 1
          %s552 = smul.addr %s551, 32
          %s553 = scalar_lea.vmem [#allocation12], %s552
          %s555 = ssub.s32 512, 512
          %556 = vsyncadd %s550, %s555
          %s557 = smul.addr %s43, 4
          %s558 = smul.addr %s557, 128
          %s559 = scalar_lea.hbm %s6, %s558
          %s560 = sshll.u32 %s553, 4
          %s561 = int_to_ptr.vmem [resolvable:$true] %s560
          %566 = dma.hbm_to_vmem [thread:$0]  %s559, 512, %s561, %s550, 128, 128, 8
        $region44: #{dals_forward.1} parent=15 // pred_fallthru
          _
        // Predicated region
        $region45: #{dals_forward.1} parent=15 // pred_check
          %p567 = pneg %p249
        $region46: #{dals_forward.1} parent=15 // pred_check_branch
          %569 = sbr.rel (%p567) target = $region48
        $region47: #{dals_forward.1} parent=15 // pred_region
          %p570 = scmp.lt.s32.totalorder %s43, 1
          %s571 = scalar_select %p570, %s43, 1
          %s572 = scalar_lea.vmem %s7, %s571
        $region48: #{dals_forward.1} parent=15 // pred_fallthru
          _
        // Predicated region
        $region49: #{dals_forward.1} parent=15 // pred_check
          %p573 = pneg %p275
        $region50: #{dals_forward.1} parent=15 // pred_check_branch
          %575 = sbr.rel (%p573) target = $region52
        $region51: #{dals_forward.1} parent=15 // pred_region
          %s576 = sand.u32 %s265, 1
          %s577 = scalar_lea.sflag [#allocation14], %s576
          %s578 = sand.u32 %s265, 1
          %s579 = smul.addr %s578, 32
          %s580 = scalar_lea.vmem [#allocation13], %s579
          %s582 = ssub.s32 512, 512
          %583 = vsyncadd %s577, %s582
          %s584 = smul.addr %s43, 4
          %s585 = smul.addr %s584, 128
          %s586 = scalar_lea.hbm %s8, %s585
          %s587 = sshll.u32 %s580, 4
          %s588 = int_to_ptr.vmem [resolvable:$true] %s587
          %593 = dma.hbm_to_vmem [thread:$0]  %s586, 512, %s588, %s577, 128, 128, 8
        $region52: #{dals_forward.1} parent=15 // pred_fallthru
          _
        // Predicated region
        $region53: #{dals_forward.1} parent=15 // pred_check
          %p594 = pneg %p301
        $region54: #{dals_forward.1} parent=15 // pred_check_branch
          %596 = sbr.rel (%p594) target = $region56
        $region55: #{dals_forward.1} parent=15 // pred_region
          %p597 = scmp.lt.s32.totalorder %s43, 1
          %s598 = scalar_select %p597, %s43, 1
          %s599 = scalar_lea.vmem %s9, %s598
        $region56: #{dals_forward.1} parent=15 // pred_fallthru
          _
        // Predicated region
        $region57: #{dals_forward.1} parent=15 // pred_check
          %p600 = pneg %p327
        $region58: #{dals_forward.1} parent=15 // pred_check_branch
          %602 = sbr.rel (%p600) target = $region60
        $region59: #{dals_forward.1} parent=15 // pred_region
          %p603 = scmp.lt.s32.totalorder %s43, 1
          %s604 = scalar_select %p603, %s43, 1
          %s605 = scalar_lea.vmem %s10, %s604
        $region60: #{dals_forward.1} parent=15 // pred_fallthru
          _
        // Predicated region
        $region61: #{dals_forward.1} parent=15 // pred_check
          %p606 = pneg %p353
        $region62: #{dals_forward.1} parent=15 // pred_check_branch
          %608 = sbr.rel (%p606) target = $region64
        $region63: #{dals_forward.1} parent=15 // pred_region
          %p609 = scmp.lt.s32.totalorder %s43, 1
          %s610 = scalar_select %p609, %s43, 1
          %s611 = scalar_lea.vmem %s11, %s610
        $region64: #{dals_forward.1} parent=15 // pred_fallthru
          _
        // Predicated region
        $region65: #{dals_forward.1} parent=15 // pred_check
          %p612 = pneg %p379
        $region66: #{dals_forward.1} parent=15 // pred_check_branch
          %614 = sbr.rel (%p612) target = $region68
        $region67: #{dals_forward.1} parent=15 // pred_region
          %p615 = scmp.lt.s32.totalorder %s43, 1
          %s616 = scalar_select %p615, %s43, 1
          %s617 = scalar_lea.vmem %s12, %s616
        $region68: #{dals_forward.1} parent=15 // pred_fallthru
          _
        // Predicated region
        $region69: #{dals_forward.1} parent=15 // pred_check
          %p618 = pneg %p405
        $region70: #{dals_forward.1} parent=15 // pred_check_branch
          %620 = sbr.rel (%p618) target = $region72
        $region71: #{dals_forward.1} parent=15 // pred_region
          %p621 = scmp.lt.s32.totalorder %s43, 1
          %s622 = scalar_select %p621, %s43, 1
          %s623 = scalar_lea.vmem %s13, %s622
        $region72: #{dals_forward.1} parent=15 // pred_fallthru
          _
      $region16: #{dals_forward.1} parent=5 // pred_fallthru
        _
      %p624 = scmp.le.s32.totalorder 1, %s35
      %p625 = scmp.lt.s32.totalorder %s35, 5
      %p626 = pnand %p624, %p625
      %p627 = pneg %p626
      // Predicated region
      $region73: #{dals_forward.1} parent=5 // pred_check
        _
      $region74: #{dals_forward.1} parent=5 // pred_check_branch
        %629 = sbr.rel (%p626) target = $region76
      $region75: #{dals_forward.1} parent=5 // pred_region
        %s630 = ssub.s32 %s35, 1
        %s631 = sand.u32 %s60, 1
        %s632 = scalar_lea.sflag [#allocation5], %s631
        %s633 = sand.u32 %s60, 1
        %s634 = smul.addr %s633, 8
        %s635 = scalar_lea.vmem [#allocation4], %s634
        // Predicated region
        $region77: #{dals_forward.1} parent=75 // pred_check
          %p636 = pneg %p73
        $region78: #{dals_forward.1} parent=75 // pred_check_branch
          %638 = sbr.rel (%p636) target = $region80
        $region79: #{dals_forward.1} parent=75 // pred_region
          %639 = dma.done %s632, 128
        $region80: #{dals_forward.1} parent=75 // pred_fallthru
          _
        %s640 = sand.u32 %s40, 1
        %s641 = scalar_lea.sflag [#allocation8], %s640
        %s642 = sand.u32 %s86, 1
        %s643 = smul.addr %s642, 8
        %s644 = scalar_lea.vmem [#allocation7], %s643
        // Predicated region
        $region81: #{dals_forward.1} parent=75 // pred_check
          %p645 = pneg %p99
        $region82: #{dals_forward.1} parent=75 // pred_check_branch
          %647 = sbr.rel (%p645) target = $region84
        $region83: #{dals_forward.1} parent=75 // pred_region
          %648 = dma.done %s641, 128
        $region84: #{dals_forward.1} parent=75 // pred_fallthru
          _
        %s649 = sand.u32 %s40, 1
        %s650 = scalar_lea.sflag [#allocation8], %s649
        %s651 = sand.u32 %s112, 1
        %s652 = smul.addr %s651, 32
        %s653 = scalar_lea.vmem [#allocation9], %s652
        // Predicated region
        $region85: #{dals_forward.1} parent=75 // pred_check
          %p654 = pneg %p125
        $region86: #{dals_forward.1} parent=75 // pred_check_branch
          %656 = sbr.rel (%p654) target = $region88
        $region87: #{dals_forward.1} parent=75 // pred_region
          %657 = dma.done %s650, 512
        $region88: #{dals_forward.1} parent=75 // pred_fallthru
          _
        %s658 = sand.u32 %s40, 1
        %s659 = scalar_lea.sflag [#allocation11], %s658
        %s660 = sand.u32 %s164, 1
        %s661 = smul.addr %s660, 32
        %s662 = scalar_lea.vmem [#allocation10], %s661
        // Predicated region
        $region89: #{dals_forward.1} parent=75 // pred_check
          %p663 = pneg %p177
        $region90: #{dals_forward.1} parent=75 // pred_check_branch
          %665 = sbr.rel (%p663) target = $region92
        $region91: #{dals_forward.1} parent=75 // pred_region
          %666 = dma.done %s659, 512
        $region92: #{dals_forward.1} parent=75 // pred_fallthru
          _
        %s667 = sand.u32 %s40, 1
        %s668 = scalar_lea.sflag [#allocation11], %s667
        %s669 = sand.u32 %s216, 1
        %s670 = smul.addr %s669, 32
        %s671 = scalar_lea.vmem [#allocation12], %s670
        // Predicated region
        $region93: #{dals_forward.1} parent=75 // pred_check
          %p672 = pneg %p229
        $region94: #{dals_forward.1} parent=75 // pred_check_branch
          %674 = sbr.rel (%p672) target = $region96
        $region95: #{dals_forward.1} parent=75 // pred_region
          %675 = dma.done %s668, 512
        $region96: #{dals_forward.1} parent=75 // pred_fallthru
          _
        %s676 = sand.u32 %s268, 1
        %s677 = scalar_lea.sflag [#allocation14], %s676
        %s678 = sand.u32 %s268, 1
        %s679 = smul.addr %s678, 32
        %s680 = scalar_lea.vmem [#allocation13], %s679
        // Predicated region
        $region97: #{dals_forward.1} parent=75 // pred_check
          %p681 = pneg %p281
        $region98: #{dals_forward.1} parent=75 // pred_check_branch
          %683 = sbr.rel (%p681) target = $region100
        $region99: #{dals_forward.1} parent=75 // pred_region
          %684 = dma.done %s677, 512
        $region100: #{dals_forward.1} parent=75 // pred_fallthru
          _
        %s685 = sand.u32 %s60, 1
        %s686 = scalar_lea.sflag [#allocation5], %s685
        %s687 = sand.u32 %s60, 1
        %s688 = smul.addr %s687, 8
        %s689 = scalar_lea.vmem [#allocation4], %s688
        %p690 = pneg %p73
        %p691 = pneg %p70
        %s692 = sand.u32 %s40, 1
        %s693 = scalar_lea.sflag [#allocation8], %s692
        %s694 = sand.u32 %s86, 1
        %s695 = smul.addr %s694, 8
        %s696 = scalar_lea.vmem [#allocation7], %s695
        %p697 = pneg %p99
        %p698 = pneg %p96
        %s699 = sand.u32 %s40, 1
        %s700 = scalar_lea.sflag [#allocation8], %s699
        %s701 = sand.u32 %s112, 1
        %s702 = smul.addr %s701, 32
        %s703 = scalar_lea.vmem [#allocation9], %s702
        %p704 = pneg %p125
        %p705 = pneg %p122
        %p706 = scmp.lt.s32.totalorder %s45, 1
        %s707 = scalar_select %p706, %s45, 1
        %s708 = scalar_lea.vmem %s3, %s707
        %p709 = pneg %p151
        %p710 = pneg %p148
        %s711 = sand.u32 %s40, 1
        %s712 = scalar_lea.sflag [#allocation11], %s711
        %s713 = sand.u32 %s164, 1
        %s714 = smul.addr %s713, 32
        %s715 = scalar_lea.vmem [#allocation10], %s714
        %p716 = pneg %p177
        %p717 = pneg %p174
        %p718 = scmp.lt.s32.totalorder %s45, 1
        %s719 = scalar_select %p718, %s45, 1
        %s720 = scalar_lea.vmem %s5, %s719
        %p721 = pneg %p203
        %p722 = pneg %p200
        %s723 = sand.u32 %s40, 1
        %s724 = scalar_lea.sflag [#allocation11], %s723
        %s725 = sand.u32 %s216, 1
        %s726 = smul.addr %s725, 32
        %s727 = scalar_lea.vmem [#allocation12], %s726
        %p728 = pneg %p229
        %p729 = pneg %p226
        %p730 = scmp.lt.s32.totalorder %s45, 1
        %s731 = scalar_select %p730, %s45, 1
        %s732 = scalar_lea.vmem %s7, %s731
        %p733 = pneg %p255
        %p734 = pneg %p252
        %s735 = sand.u32 %s268, 1
        %s736 = scalar_lea.sflag [#allocation14], %s735
        %s737 = sand.u32 %s268, 1
        %s738 = smul.addr %s737, 32
        %s739 = scalar_lea.vmem [#allocation13], %s738
        %p740 = pneg %p281
        %p741 = pneg %p278
        %p742 = scmp.lt.s32.totalorder %s45, 1
        %s743 = scalar_select %p742, %s45, 1
        %s744 = scalar_lea.vmem %s9, %s743
        %p745 = pneg %p307
        %p746 = pneg %p304
        %p747 = scmp.lt.s32.totalorder %s45, 1
        %s748 = scalar_select %p747, %s45, 1
        %s749 = scalar_lea.vmem %s10, %s748
        %p750 = pneg %p333
        %p751 = pneg %p330
        %p752 = scmp.lt.s32.totalorder %s45, 1
        %s753 = scalar_select %p752, %s45, 1
        %s754 = scalar_lea.vmem %s11, %s753
        %p755 = pneg %p359
        %p756 = pneg %p356
        %p757 = scmp.lt.s32.totalorder %s45, 1
        %s758 = scalar_select %p757, %s45, 1
        %s759 = scalar_lea.vmem %s12, %s758
        %p760 = pneg %p385
        %p761 = pneg %p382
        %p762 = scmp.lt.s32.totalorder %s45, 1
        %s763 = scalar_select %p762, %s45, 1
        %s764 = scalar_lea.vmem %s13, %s763
        %p765 = pneg %p411
        %p766 = pneg %p408
        %p767 = pneg %p437
        %p768 = pneg %p434
        %s769 = sand.u32 %s424, 1
        %s770 = scalar_lea.sflag [#allocation6], %s769
        %s771 = sand.u32 %s424, 1
        %s772 = smul.addr %s771, 16
        %s773 = scalar_lea.vmem [#allocation15], %s772
        %p774 = scmp.lt.s32.totalorder %s45, 1
        %s775 = scalar_select %p774, %s45, 1
        %s776 = scalar_lea.vmem %s3, %s775
        %p777 = scmp.lt.s32.totalorder %s45, 1
        %s778 = scalar_select %p777, %s45, 1
        %s779 = scalar_lea.vmem %s5, %s778
        %p780 = scmp.lt.s32.totalorder %s45, 1
        %s781 = scalar_select %p780, %s45, 1
        %s782 = scalar_lea.vmem %s7, %s781
        %p783 = scmp.lt.s32.totalorder %s45, 1
        %s784 = scalar_select %p783, %s45, 1
        %s785 = scalar_lea.vmem %s9, %s784
        %p786 = scmp.lt.s32.totalorder %s45, 1
        %s787 = scalar_select %p786, %s45, 1
        %s788 = scalar_lea.vmem %s10, %s787
        %p789 = scmp.lt.s32.totalorder %s45, 1
        %s790 = scalar_select %p789, %s45, 1
        %s791 = scalar_lea.vmem %s11, %s790
        %p792 = scmp.lt.s32.totalorder %s45, 1
        %s793 = scalar_select %p792, %s45, 1
        %s794 = scalar_lea.vmem %s12, %s793
        %p795 = scmp.lt.s32.totalorder %s45, 1
        %s796 = scalar_select %p795, %s45, 1
        %s797 = scalar_lea.vmem %s13, %s796
        %p798 = scmp.eq.s32.totalorder %s45, 0
        // Predicated region
        $region101: #{dals_forward.1} parent=75 // pred_check
          %p799 = pneg %p798
        $region102: #{dals_forward.1} parent=75 // pred_check_branch
          %801 = sbr.rel (%p799) target = $region104
        $region103: #{dals_forward.1} parent=75 // pred_region
          %v802 = vld [vmem:[%s635] sm:$0xff]
          %vm803 = vcmask 261120
          %804 = vst.msk [vmem:[#allocation2] sm:$0xff] %vm803, %v802
          %v805 = vld [vmem:[%s644] sm:$0xff]
          %806 = vst.msk [vmem:[#allocation3] sm:$0xff] %vm803, %v805
        $region104: #{dals_forward.1} parent=75 // pred_fallthru
          _
        %v807 = vld [vmem:[#allocation2] sm:$0xff]
        %v808 = vld [vmem:[#allocation3] sm:$0xff]
        %v809 = vld [vmem:[%s653] sm:$0xff]
        %v810 = vld [vmem:[%s653 + $0x8] sm:$0xff]
        %v811 = vld [vmem:[%s653 + $0x10] sm:$0xff]
        %v812 = vld [vmem:[%s653 + $0x18] sm:$0xff]
        %v813 = vld [vmem:[%s776] sm:$0x1]
        %v815 = vlaneseq
        %v816 = vshrl.u32 %v815, 7
        %v817 = vsub.s32 0, %v816
        %v818 = vrot.slane %v813, %v817
        %vm820 = vcmask 261120
        %v822 = vsel %vm820, %v807, 0
        %824 = vmatprep.subr.mxu0 0.0
        %825 = vmatpush1.msra.mxu0 %v809
        %826 = vmatprep.subr.mxu0 0.0
        %827 = vmatpush1.msra.mxu0 %v810
        %828 = vmatprep.subr.mxu0 0.0
        %829 = vmatpush1.msra.mxu0 %v811
        %830 = vmatprep.subr.mxu0 0.0
        %831 = vmatpush1.msra.mxu0 %v812
        %832 = vmatprep.subr.mxu0 0.0
        %833 = vmatpush1.msra.mxu0 0.0
        %834 = vmatprep.subr.mxu0 0.0
        %835 = vmatpush1.msra.mxu0 0.0
        %836 = vmatprep.subr.mxu0 0.0
        %837 = vmatpush1.msra.mxu0 0.0
        %838 = vmatprep.subr.mxu0 0.0
        %839 = vmatpush1.msra.mxu0 0.0
        %840 = vmatprep.subr.mxu0 0.0
        %841 = vmatpush1.msra.mxu0 0.0
        %842 = vmatprep.subr.mxu0 0.0
        %843 = vmatpush1.msra.mxu0 0.0
        %844 = vmatprep.subr.mxu0 0.0
        %845 = vmatpush1.msra.mxu0 0.0
        %846 = vmatprep.subr.mxu0 0.0
        %847 = vmatpush1.msra.mxu0 0.0
        %848 = vmatprep.subr.mxu0 0.0
        %849 = vmatpush1.msra.mxu0 0.0
        %850 = vmatprep.subr.mxu0 0.0
        %851 = vmatpush1.msra.mxu0 0.0
        %852 = vmatprep.subr.mxu0 0.0
        %853 = vmatpush1.msra.mxu0 0.0
        %854 = vmatprep.subr.mxu0 0.0
        %855 = vmatpush1.msra.mxu0 0.0
        %856 = vmatprep.subr.mxu0 0.0
        %857 = vmatpush1.msra.mxu0 0.0
        %858 = vmatprep.subr.mxu0 0.0
        %859 = vmatpush1.msra.mxu0 0.0
        %860 = vmatprep.subr.mxu0 0.0
        %861 = vmatpush1.msra.mxu0 0.0
        %862 = vmatprep.subr.mxu0 0.0
        %863 = vmatpush1.msra.mxu0 0.0
        %864 = vmatprep.subr.mxu0 0.0
        %865 = vmatpush1.msra.mxu0 0.0
        %866 = vmatprep.subr.mxu0 0.0
        %867 = vmatpush1.msra.mxu0 0.0
        %868 = vmatprep.subr.mxu0 0.0
        %869 = vmatpush1.msra.mxu0 0.0
        %870 = vmatprep.subr.mxu0 0.0
        %871 = vmatpush1.msra.mxu0 0.0
        %872 = vmatprep.subr.mxu0 0.0
        %873 = vmatpush1.msra.mxu0 0.0
        %874 = vmatprep.subr.mxu0 0.0
        %875 = vmatpush1.msra.mxu0 0.0
        %876 = vmatprep.subr.mxu0 0.0
        %877 = vmatpush1.msra.mxu0 0.0
        %878 = vmatprep.subr.mxu0 0.0
        %879 = vmatpush1.msra.mxu0 0.0
        %880 = vmatprep.subr.mxu0 0.0
        %881 = vmatpush1.msra.mxu0 0.0
        %882 = vmatprep.subr.mxu0 0.0
        %883 = vmatpush1.msra.mxu0 0.0
        %884 = vmatprep.subr.mxu0 0.0
        %885 = vmatpush1.msra.mxu0 0.0
        %886 = vmatprep.subr.mxu0 0.0
        %887 = vmatpush1.msra.mxu0 0.0
        %888 = vmatprep.mubr.f32.mxu0 0.0
        %889 = vmatmul.mubr.f32.gmra.mrb[0].mxu0 %v822
        %v890 = vpop.f32.mrb[0].mxu0
        %v891 = vadd.f32 %v818, %v890
        %v892 = vpop.f32.mrb[0].mxu0
        %893 = vdwg.mxu0
        %v894 = vld [vmem:[%s662] sm:$0xff]
        %v895 = vld [vmem:[%s662 + $0x8] sm:$0xff]
        %v896 = vld [vmem:[%s662 + $0x10] sm:$0xff]
        %v897 = vld [vmem:[%s662 + $0x18] sm:$0xff]
        %v898 = vld [vmem:[%s779] sm:$0x1]
        %v900 = vlaneseq
        %v901 = vshrl.u32 %v900, 7
        %v902 = vsub.s32 0, %v901
        %v903 = vrot.slane %v898, %v902
        %v906 = vsel %vm820, %v808, 0
        %908 = vmatprep.subr.mxu0 0.0
        %909 = vmatpush1.msra.mxu0 %v894
        %910 = vmatprep.subr.mxu0 0.0
        %911 = vmatpush1.msra.mxu0 %v895
        %912 = vmatprep.subr.mxu0 0.0
        %913 = vmatpush1.msra.mxu0 %v896
        %914 = vmatprep.subr.mxu0 0.0
        %915 = vmatpush1.msra.mxu0 %v897
        %916 = vmatprep.subr.mxu0 0.0
        %917 = vmatpush1.msra.mxu0 0.0
        %918 = vmatprep.subr.mxu0 0.0
        %919 = vmatpush1.msra.mxu0 0.0
        %920 = vmatprep.subr.mxu0 0.0
        %921 = vmatpush1.msra.mxu0 0.0
        %922 = vmatprep.subr.mxu0 0.0
        %923 = vmatpush1.msra.mxu0 0.0
        %924 = vmatprep.subr.mxu0 0.0
        %925 = vmatpush1.msra.mxu0 0.0
        %926 = vmatprep.subr.mxu0 0.0
        %927 = vmatpush1.msra.mxu0 0.0
        %928 = vmatprep.subr.mxu0 0.0
        %929 = vmatpush1.msra.mxu0 0.0
        %930 = vmatprep.subr.mxu0 0.0
        %931 = vmatpush1.msra.mxu0 0.0
        %932 = vmatprep.subr.mxu0 0.0
        %933 = vmatpush1.msra.mxu0 0.0
        %934 = vmatprep.subr.mxu0 0.0
        %935 = vmatpush1.msra.mxu0 0.0
        %936 = vmatprep.subr.mxu0 0.0
        %937 = vmatpush1.msra.mxu0 0.0
        %938 = vmatprep.subr.mxu0 0.0
        %939 = vmatpush1.msra.mxu0 0.0
        %940 = vmatprep.subr.mxu0 0.0
        %941 = vmatpush1.msra.mxu0 0.0
        %942 = vmatprep.subr.mxu0 0.0
        %943 = vmatpush1.msra.mxu0 0.0
        %944 = vmatprep.subr.mxu0 0.0
        %945 = vmatpush1.msra.mxu0 0.0
        %946 = vmatprep.subr.mxu0 0.0
        %947 = vmatpush1.msra.mxu0 0.0
        %948 = vmatprep.subr.mxu0 0.0
        %949 = vmatpush1.msra.mxu0 0.0
        %950 = vmatprep.subr.mxu0 0.0
        %951 = vmatpush1.msra.mxu0 0.0
        %952 = vmatprep.subr.mxu0 0.0
        %953 = vmatpush1.msra.mxu0 0.0
        %954 = vmatprep.subr.mxu0 0.0
        %955 = vmatpush1.msra.mxu0 0.0
        %956 = vmatprep.subr.mxu0 0.0
        %957 = vmatpush1.msra.mxu0 0.0
        %958 = vmatprep.subr.mxu0 0.0
        %959 = vmatpush1.msra.mxu0 0.0
        %960 = vmatprep.subr.mxu0 0.0
        %961 = vmatpush1.msra.mxu0 0.0
        %962 = vmatprep.subr.mxu0 0.0
        %963 = vmatpush1.msra.mxu0 0.0
        %964 = vmatprep.subr.mxu0 0.0
        %965 = vmatpush1.msra.mxu0 0.0
        %966 = vmatprep.subr.mxu0 0.0
        %967 = vmatpush1.msra.mxu0 0.0
        %968 = vmatprep.subr.mxu0 0.0
        %969 = vmatpush1.msra.mxu0 0.0
        %970 = vmatprep.subr.mxu0 0.0
        %971 = vmatpush1.msra.mxu0 0.0
        %972 = vmatprep.mubr.f32.mxu0 0.0
        %973 = vmatmul.mubr.f32.gmra.mrb[0].mxu0 %v906
        %v974 = vpop.f32.mrb[0].mxu0
        %v975 = vadd.f32 %v903, %v974
        %v976 = vpop.f32.mrb[0].mxu0
        %977 = vdwg.mxu0
        %v978 = vld [vmem:[%s671] sm:$0xff]
        %v979 = vld [vmem:[%s671 + $0x8] sm:$0xff]
        %v980 = vld [vmem:[%s671 + $0x10] sm:$0xff]
        %v981 = vld [vmem:[%s671 + $0x18] sm:$0xff]
        %v982 = vld [vmem:[%s782] sm:$0x1]
        %v983 = vld [vmem:[%s788] sm:$0x1]
        %v984 = vld [vmem:[%s791] sm:$0x1]
        %986 = vrot.lane.b32.xlu0 %v975, 96
        %v987 = vpop.permute.xlu0 %986
        %vm988 = vcmask 64512
        %v990 = vsel %vm988, %v891, 0
        %v992 = vsel %vm988, %v987, 0
        %994 = vmatprep.subr.mxu0 0.0
        %995 = vmatpush1.xpose.msra.mxu0 %v992
        %996 = vmatprep.subr.mxu0 0.0
        %997 = vmatpush1.xpose.msra.mxu0 0.0
        %998 = vmatprep.subr.mxu0 0.0
        %999 = vmatpush1.xpose.msra.mxu0 0.0
        %1000 = vmatprep.subr.mxu0 0.0
        %1001 = vmatpush1.xpose.msra.mxu0 0.0
        %1002 = vmatprep.subr.mxu0 0.0
        %1003 = vmatpush1.xpose.msra.mxu0 0.0
        %1004 = vmatprep.subr.mxu0 0.0
        %1005 = vmatpush1.xpose.msra.mxu0 0.0
        %1006 = vmatprep.subr.mxu0 0.0
        %1007 = vmatpush1.xpose.msra.mxu0 0.0
        %1008 = vmatprep.subr.mxu0 0.0
        %1009 = vmatpush1.xpose.msra.mxu0 0.0
        %1010 = vmatprep.subr.mxu0 0.0
        %1011 = vmatpush1.xpose.msra.mxu0 0.0
        %1012 = vmatprep.subr.mxu0 0.0
        %1013 = vmatpush1.xpose.msra.mxu0 0.0
        %1014 = vmatprep.subr.mxu0 0.0
        %1015 = vmatpush1.xpose.msra.mxu0 0.0
        %1016 = vmatprep.subr.mxu0 0.0
        %1017 = vmatpush1.xpose.msra.mxu0 0.0
        %1018 = vmatprep.subr.mxu0 0.0
        %1019 = vmatpush1.xpose.msra.mxu0 0.0
        %1020 = vmatprep.subr.mxu0 0.0
        %1021 = vmatpush1.xpose.msra.mxu0 0.0
        %1022 = vmatprep.subr.mxu0 0.0
        %1023 = vmatpush1.xpose.msra.mxu0 0.0
        %1024 = vmatprep.subr.mxu0 0.0
        %1025 = vmatpush1.xpose.msra.mxu0 0.0
        %1026 = vmatprep.subr.mxu0 0.0
        %1027 = vmatpush1.xpose.msra.mxu0 0.0
        %1028 = vmatprep.subr.mxu0 0.0
        %1029 = vmatpush1.xpose.msra.mxu0 0.0
        %1030 = vmatprep.subr.mxu0 0.0
        %1031 = vmatpush1.xpose.msra.mxu0 0.0
        %1032 = vmatprep.subr.mxu0 0.0
        %1033 = vmatpush1.xpose.msra.mxu0 0.0
        %1034 = vmatprep.subr.mxu0 0.0
        %1035 = vmatpush1.xpose.msra.mxu0 0.0
        %1036 = vmatprep.subr.mxu0 0.0
        %1037 = vmatpush1.xpose.msra.mxu0 0.0
        %1038 = vmatprep.subr.mxu0 0.0
        %1039 = vmatpush1.xpose.msra.mxu0 0.0
        %1040 = vmatprep.subr.mxu0 0.0
        %1041 = vmatpush1.xpose.msra.mxu0 0.0
        %1042 = vmatprep.subr.mxu0 0.0
        %1043 = vmatpush1.xpose.msra.mxu0 0.0
        %1044 = vmatprep.subr.mxu0 0.0
        %1045 = vmatpush1.xpose.msra.mxu0 0.0
        %1046 = vmatprep.subr.mxu0 0.0
        %1047 = vmatpush1.xpose.msra.mxu0 0.0
        %1048 = vmatprep.subr.mxu0 0.0
        %1049 = vmatpush1.xpose.msra.mxu0 0.0
        %1050 = vmatprep.subr.mxu0 0.0
        %1051 = vmatpush1.xpose.msra.mxu0 0.0
        %1052 = vmatprep.subr.mxu0 0.0
        %1053 = vmatpush1.xpose.msra.mxu0 0.0
        %1054 = vmatprep.subr.mxu0 0.0
        %1055 = vmatpush1.xpose.msra.mxu0 0.0
        %1056 = vmatprep.subr.mxu0 0.0
        %1057 = vmatpush1.xpose.msra.mxu0 0.0
        %1058 = vmatprep.mubr.f32.mxu0 0.0
        %1059 = vmatmul.mubr.f32.gmra.mrb[0].mxu0 %v990
        %v1060 = vpop.f32.mrb[0].mxu0
        %v1061 = vadd.f32 0.0, %v1060
        %v1062 = vpop.f32.mrb[0].mxu0
        %1063 = vdwg.mxu0
        %v1064 = vsel %vm988, %v1061, -inf
        %1065 = vmax.xlane.f32.xlu0 %v1064
        %v1066 = vpop.xlane.xlu0 %1065
        %v1067 = vsub.f32 %v1061, %v1066
        %v1068 = vmul.f32 %v1067, 1.442695
        %v1069 = vpow.pop %v1068
        %v1070 = vsel %vm988, %v1069, 0.0
        %1071 = vadd.xlane.f32.xlu0 %v1070
        %v1072 = vpop.xlane.xlu0 %1071
        %1073 = vrot.lane.b32.xlu0 %v975, 64
        %v1074 = vpop.permute.xlu0 %1073
        %v1077 = vsel %vm988, %v1069, 0
        %1079 = vmatprep.subr.mxu0 0.0
        %1080 = vmatpush1.msra.mxu0 %v1074
        %1081 = vmatprep.subr.mxu0 0.0
        %1082 = vmatpush1.msra.mxu0 0.0
        %1083 = vmatprep.subr.mxu0 0.0
        %1084 = vmatpush1.msra.mxu0 0.0
        %1085 = vmatprep.subr.mxu0 0.0
        %1086 = vmatpush1.msra.mxu0 0.0
        %1087 = vmatprep.subr.mxu0 0.0
        %1088 = vmatpush1.msra.mxu0 0.0
        %1089 = vmatprep.subr.mxu0 0.0
        %1090 = vmatpush1.msra.mxu0 0.0
        %1091 = vmatprep.subr.mxu0 0.0
        %1092 = vmatpush1.msra.mxu0 0.0
        %1093 = vmatprep.subr.mxu0 0.0
        %1094 = vmatpush1.msra.mxu0 0.0
        %1095 = vmatprep.subr.mxu0 0.0
        %1096 = vmatpush1.msra.mxu0 0.0
        %1097 = vmatprep.subr.mxu0 0.0
        %1098 = vmatpush1.msra.mxu0 0.0
        %1099 = vmatprep.subr.mxu0 0.0
        %1100 = vmatpush1.msra.mxu0 0.0
        %1101 = vmatprep.subr.mxu0 0.0
        %1102 = vmatpush1.msra.mxu0 0.0
        %1103 = vmatprep.subr.mxu0 0.0
        %1104 = vmatpush1.msra.mxu0 0.0
        %1105 = vmatprep.subr.mxu0 0.0
        %1106 = vmatpush1.msra.mxu0 0.0
        %1107 = vmatprep.subr.mxu0 0.0
        %1108 = vmatpush1.msra.mxu0 0.0
        %1109 = vmatprep.subr.mxu0 0.0
        %1110 = vmatpush1.msra.mxu0 0.0
        %1111 = vmatprep.subr.mxu0 0.0
        %1112 = vmatpush1.msra.mxu0 0.0
        %1113 = vmatprep.subr.mxu0 0.0
        %1114 = vmatpush1.msra.mxu0 0.0
        %1115 = vmatprep.subr.mxu0 0.0
        %1116 = vmatpush1.msra.mxu0 0.0
        %1117 = vmatprep.subr.mxu0 0.0
        %1118 = vmatpush1.msra.mxu0 0.0
        %1119 = vmatprep.subr.mxu0 0.0
        %1120 = vmatpush1.msra.mxu0 0.0
        %1121 = vmatprep.subr.mxu0 0.0
        %1122 = vmatpush1.msra.mxu0 0.0
        %1123 = vmatprep.subr.mxu0 0.0
        %1124 = vmatpush1.msra.mxu0 0.0
        %1125 = vmatprep.subr.mxu0 0.0
        %1126 = vmatpush1.msra.mxu0 0.0
        %1127 = vmatprep.subr.mxu0 0.0
        %1128 = vmatpush1.msra.mxu0 0.0
        %1129 = vmatprep.subr.mxu0 0.0
        %1130 = vmatpush1.msra.mxu0 0.0
        %1131 = vmatprep.subr.mxu0 0.0
        %1132 = vmatpush1.msra.mxu0 0.0
        %1133 = vmatprep.subr.mxu0 0.0
        %1134 = vmatpush1.msra.mxu0 0.0
        %1135 = vmatprep.subr.mxu0 0.0
        %1136 = vmatpush1.msra.mxu0 0.0
        %1137 = vmatprep.subr.mxu0 0.0
        %1138 = vmatpush1.msra.mxu0 0.0
        %1139 = vmatprep.subr.mxu0 0.0
        %1140 = vmatpush1.msra.mxu0 0.0
        %1141 = vmatprep.subr.mxu0 0.0
        %1142 = vmatpush1.msra.mxu0 0.0
        %1143 = vmatprep.mubr.f32.mxu0 0.0
        %1144 = vmatmul.mubr.f32.gmra.mrb[0].mxu0 %v1077
        %v1145 = vpop.f32.mrb[0].mxu0
        %v1146 = vadd.f32 0.0, %v1145
        %v1147 = vpop.f32.mrb[0].mxu0
        %1148 = vdwg.mxu0
        %v1149 = vrcp.pop %v1072
        %v1150 = vmul.f32 %v1146, %v1149
        %1151 = vrot.lane.b32.xlu0 %v891, 120
        %v1152 = vpop.permute.xlu0 %1151
        %1153 = vrot.lane.b32.xlu0 %v975, 88
        %v1154 = vpop.permute.xlu0 %1153
        %v1155 = vsel %vm988, %v1152, 0
        %v1157 = vsel %vm988, %v1154, 0
        %1159 = vmatprep.subr.mxu0 0.0
        %1160 = vmatpush1.xpose.msra.mxu0 %v1157
        %1161 = vmatprep.subr.mxu0 0.0
        %1162 = vmatpush1.xpose.msra.mxu0 0.0
        %1163 = vmatprep.subr.mxu0 0.0
        %1164 = vmatpush1.xpose.msra.mxu0 0.0
        %1165 = vmatprep.subr.mxu0 0.0
        %1166 = vmatpush1.xpose.msra.mxu0 0.0
        %1167 = vmatprep.subr.mxu0 0.0
        %1168 = vmatpush1.xpose.msra.mxu0 0.0
        %1169 = vmatprep.subr.mxu0 0.0
        %1170 = vmatpush1.xpose.msra.mxu0 0.0
        %1171 = vmatprep.subr.mxu0 0.0
        %1172 = vmatpush1.xpose.msra.mxu0 0.0
        %1173 = vmatprep.subr.mxu0 0.0
        %1174 = vmatpush1.xpose.msra.mxu0 0.0
        %1175 = vmatprep.subr.mxu0 0.0
        %1176 = vmatpush1.xpose.msra.mxu0 0.0
        %1177 = vmatprep.subr.mxu0 0.0
        %1178 = vmatpush1.xpose.msra.mxu0 0.0
        %1179 = vmatprep.subr.mxu0 0.0
        %1180 = vmatpush1.xpose.msra.mxu0 0.0
        %1181 = vmatprep.subr.mxu0 0.0
        %1182 = vmatpush1.xpose.msra.mxu0 0.0
        %1183 = vmatprep.subr.mxu0 0.0
        %1184 = vmatpush1.xpose.msra.mxu0 0.0
        %1185 = vmatprep.subr.mxu0 0.0
        %1186 = vmatpush1.xpose.msra.mxu0 0.0
        %1187 = vmatprep.subr.mxu0 0.0
        %1188 = vmatpush1.xpose.msra.mxu0 0.0
        %1189 = vmatprep.subr.mxu0 0.0
        %1190 = vmatpush1.xpose.msra.mxu0 0.0
        %1191 = vmatprep.subr.mxu0 0.0
        %1192 = vmatpush1.xpose.msra.mxu0 0.0
        %1193 = vmatprep.subr.mxu0 0.0
        %1194 = vmatpush1.xpose.msra.mxu0 0.0
        %1195 = vmatprep.subr.mxu0 0.0
        %1196 = vmatpush1.xpose.msra.mxu0 0.0
        %1197 = vmatprep.subr.mxu0 0.0
        %1198 = vmatpush1.xpose.msra.mxu0 0.0
        %1199 = vmatprep.subr.mxu0 0.0
        %1200 = vmatpush1.xpose.msra.mxu0 0.0
        %1201 = vmatprep.subr.mxu0 0.0
        %1202 = vmatpush1.xpose.msra.mxu0 0.0
        %1203 = vmatprep.subr.mxu0 0.0
        %1204 = vmatpush1.xpose.msra.mxu0 0.0
        %1205 = vmatprep.subr.mxu0 0.0
        %1206 = vmatpush1.xpose.msra.mxu0 0.0
        %1207 = vmatprep.subr.mxu0 0.0
        %1208 = vmatpush1.xpose.msra.mxu0 0.0
        %1209 = vmatprep.subr.mxu0 0.0
        %1210 = vmatpush1.xpose.msra.mxu0 0.0
        %1211 = vmatprep.subr.mxu0 0.0
        %1212 = vmatpush1.xpose.msra.mxu0 0.0
        %1213 = vmatprep.subr.mxu0 0.0
        %1214 = vmatpush1.xpose.msra.mxu0 0.0
        %1215 = vmatprep.subr.mxu0 0.0
        %1216 = vmatpush1.xpose.msra.mxu0 0.0
        %1217 = vmatprep.subr.mxu0 0.0
        %1218 = vmatpush1.xpose.msra.mxu0 0.0
        %1219 = vmatprep.subr.mxu0 0.0
        %1220 = vmatpush1.xpose.msra.mxu0 0.0
        %1221 = vmatprep.subr.mxu0 0.0
        %1222 = vmatpush1.xpose.msra.mxu0 0.0
        %1223 = vmatprep.mubr.f32.mxu0 0.0
        %1224 = vmatmul.mubr.f32.gmra.mrb[0].mxu0 %v1155
        %v1225 = vpop.f32.mrb[0].mxu0
        %v1226 = vadd.f32 0.0, %v1225
        %v1227 = vpop.f32.mrb[0].mxu0
        %1228 = vdwg.mxu0
        %v1229 = vsel %vm988, %v1226, -inf
        %1230 = vmax.xlane.f32.xlu0 %v1229
        %v1231 = vpop.xlane.xlu0 %1230
        %v1232 = vsub.f32 %v1226, %v1231
        %v1233 = vmul.f32 %v1232, 1.442695
        %v1234 = vpow.pop %v1233
        %v1235 = vsel %vm988, %v1234, 0.0
        %1236 = vadd.xlane.f32.xlu0 %v1235
        %v1237 = vpop.xlane.xlu0 %1236
        %1238 = vrot.lane.b32.xlu0 %v975, 56
        %v1239 = vpop.permute.xlu0 %1238
        %v1242 = vsel %vm988, %v1234, 0
        %1244 = vmatprep.subr.mxu0 0.0
        %1245 = vmatpush1.msra.mxu0 %v1239
        %1246 = vmatprep.subr.mxu0 0.0
        %1247 = vmatpush1.msra.mxu0 0.0
        %1248 = vmatprep.subr.mxu0 0.0
        %1249 = vmatpush1.msra.mxu0 0.0
        %1250 = vmatprep.subr.mxu0 0.0
        %1251 = vmatpush1.msra.mxu0 0.0
        %1252 = vmatprep.subr.mxu0 0.0
        %1253 = vmatpush1.msra.mxu0 0.0
        %1254 = vmatprep.subr.mxu0 0.0
        %1255 = vmatpush1.msra.mxu0 0.0
        %1256 = vmatprep.subr.mxu0 0.0
        %1257 = vmatpush1.msra.mxu0 0.0
        %1258 = vmatprep.subr.mxu0 0.0
        %1259 = vmatpush1.msra.mxu0 0.0
        %1260 = vmatprep.subr.mxu0 0.0
        %1261 = vmatpush1.msra.mxu0 0.0
        %1262 = vmatprep.subr.mxu0 0.0
        %1263 = vmatpush1.msra.mxu0 0.0
        %1264 = vmatprep.subr.mxu0 0.0
        %1265 = vmatpush1.msra.mxu0 0.0
        %1266 = vmatprep.subr.mxu0 0.0
        %1267 = vmatpush1.msra.mxu0 0.0
        %1268 = vmatprep.subr.mxu0 0.0
        %1269 = vmatpush1.msra.mxu0 0.0
        %1270 = vmatprep.subr.mxu0 0.0
        %1271 = vmatpush1.msra.mxu0 0.0
        %1272 = vmatprep.subr.mxu0 0.0
        %1273 = vmatpush1.msra.mxu0 0.0
        %1274 = vmatprep.subr.mxu0 0.0
        %1275 = vmatpush1.msra.mxu0 0.0
        %1276 = vmatprep.subr.mxu0 0.0
        %1277 = vmatpush1.msra.mxu0 0.0
        %1278 = vmatprep.subr.mxu0 0.0
        %1279 = vmatpush1.msra.mxu0 0.0
        %1280 = vmatprep.subr.mxu0 0.0
        %1281 = vmatpush1.msra.mxu0 0.0
        %1282 = vmatprep.subr.mxu0 0.0
        %1283 = vmatpush1.msra.mxu0 0.0
        %1284 = vmatprep.subr.mxu0 0.0
        %1285 = vmatpush1.msra.mxu0 0.0
        %1286 = vmatprep.subr.mxu0 0.0
        %1287 = vmatpush1.msra.mxu0 0.0
        %1288 = vmatprep.subr.mxu0 0.0
        %1289 = vmatpush1.msra.mxu0 0.0
        %1290 = vmatprep.subr.mxu0 0.0
        %1291 = vmatpush1.msra.mxu0 0.0
        %1292 = vmatprep.subr.mxu0 0.0
        %1293 = vmatpush1.msra.mxu0 0.0
        %1294 = vmatprep.subr.mxu0 0.0
        %1295 = vmatpush1.msra.mxu0 0.0
        %1296 = vmatprep.subr.mxu0 0.0
        %1297 = vmatpush1.msra.mxu0 0.0
        %1298 = vmatprep.subr.mxu0 0.0
        %1299 = vmatpush1.msra.mxu0 0.0
        %1300 = vmatprep.subr.mxu0 0.0
        %1301 = vmatpush1.msra.mxu0 0.0
        %1302 = vmatprep.subr.mxu0 0.0
        %1303 = vmatpush1.msra.mxu0 0.0
        %1304 = vmatprep.subr.mxu0 0.0
        %1305 = vmatpush1.msra.mxu0 0.0
        %1306 = vmatprep.subr.mxu0 0.0
        %1307 = vmatpush1.msra.mxu0 0.0
        %1308 = vmatprep.mubr.f32.mxu0 0.0
        %1309 = vmatmul.mubr.f32.gmra.mrb[0].mxu0 %v1242
        %v1310 = vpop.f32.mrb[0].mxu0
        %v1311 = vadd.f32 0.0, %v1310
        %v1312 = vpop.f32.mrb[0].mxu0
        %1313 = vdwg.mxu0
        %v1314 = vrcp.pop %v1237
        %v1315 = vmul.f32 %v1311, %v1314
        %1316 = vrot.lane.b32.xlu0 %v891, 112
        %v1317 = vpop.permute.xlu0 %1316
        %1318 = vrot.lane.b32.xlu0 %v975, 80
        %v1319 = vpop.permute.xlu0 %1318
        %v1320 = vsel %vm988, %v1317, 0
        %v1322 = vsel %vm988, %v1319, 0
        %1324 = vmatprep.subr.mxu0 0.0
        %1325 = vmatpush1.xpose.msra.mxu0 %v1322
        %1326 = vmatprep.subr.mxu0 0.0
        %1327 = vmatpush1.xpose.msra.mxu0 0.0
        %1328 = vmatprep.subr.mxu0 0.0
        %1329 = vmatpush1.xpose.msra.mxu0 0.0
        %1330 = vmatprep.subr.mxu0 0.0
        %1331 = vmatpush1.xpose.msra.mxu0 0.0
        %1332 = vmatprep.subr.mxu0 0.0
        %1333 = vmatpush1.xpose.msra.mxu0 0.0
        %1334 = vmatprep.subr.mxu0 0.0
        %1335 = vmatpush1.xpose.msra.mxu0 0.0
        %1336 = vmatprep.subr.mxu0 0.0
        %1337 = vmatpush1.xpose.msra.mxu0 0.0
        %1338 = vmatprep.subr.mxu0 0.0
        %1339 = vmatpush1.xpose.msra.mxu0 0.0
        %1340 = vmatprep.subr.mxu0 0.0
        %1341 = vmatpush1.xpose.msra.mxu0 0.0
        %1342 = vmatprep.subr.mxu0 0.0
        %1343 = vmatpush1.xpose.msra.mxu0 0.0
        %1344 = vmatprep.subr.mxu0 0.0
        %1345 = vmatpush1.xpose.msra.mxu0 0.0
        %1346 = vmatprep.subr.mxu0 0.0
        %1347 = vmatpush1.xpose.msra.mxu0 0.0
        %1348 = vmatprep.subr.mxu0 0.0
        %1349 = vmatpush1.xpose.msra.mxu0 0.0
        %1350 = vmatprep.subr.mxu0 0.0
        %1351 = vmatpush1.xpose.msra.mxu0 0.0
        %1352 = vmatprep.subr.mxu0 0.0
        %1353 = vmatpush1.xpose.msra.mxu0 0.0
        %1354 = vmatprep.subr.mxu0 0.0
        %1355 = vmatpush1.xpose.msra.mxu0 0.0
        %1356 = vmatprep.subr.mxu0 0.0
        %1357 = vmatpush1.xpose.msra.mxu0 0.0
        %1358 = vmatprep.subr.mxu0 0.0
        %1359 = vmatpush1.xpose.msra.mxu0 0.0
        %1360 = vmatprep.subr.mxu0 0.0
        %1361 = vmatpush1.xpose.msra.mxu0 0.0
        %1362 = vmatprep.subr.mxu0 0.0
        %1363 = vmatpush1.xpose.msra.mxu0 0.0
        %1364 = vmatprep.subr.mxu0 0.0
        %1365 = vmatpush1.xpose.msra.mxu0 0.0
        %1366 = vmatprep.subr.mxu0 0.0
        %1367 = vmatpush1.xpose.msra.mxu0 0.0
        %1368 = vmatprep.subr.mxu0 0.0
        %1369 = vmatpush1.xpose.msra.mxu0 0.0
        %1370 = vmatprep.subr.mxu0 0.0
        %1371 = vmatpush1.xpose.msra.mxu0 0.0
        %1372 = vmatprep.subr.mxu0 0.0
        %1373 = vmatpush1.xpose.msra.mxu0 0.0
        %1374 = vmatprep.subr.mxu0 0.0
        %1375 = vmatpush1.xpose.msra.mxu0 0.0
        %1376 = vmatprep.subr.mxu0 0.0
        %1377 = vmatpush1.xpose.msra.mxu0 0.0
        %1378 = vmatprep.subr.mxu0 0.0
        %1379 = vmatpush1.xpose.msra.mxu0 0.0
        %1380 = vmatprep.subr.mxu0 0.0
        %1381 = vmatpush1.xpose.msra.mxu0 0.0
        %1382 = vmatprep.subr.mxu0 0.0
        %1383 = vmatpush1.xpose.msra.mxu0 0.0
        %1384 = vmatprep.subr.mxu0 0.0
        %1385 = vmatpush1.xpose.msra.mxu0 0.0
        %1386 = vmatprep.subr.mxu0 0.0
        %1387 = vmatpush1.xpose.msra.mxu0 0.0
        %1388 = vmatprep.mubr.f32.mxu0 0.0
        %1389 = vmatmul.mubr.f32.gmra.mrb[0].mxu0 %v1320
        %v1390 = vpop.f32.mrb[0].mxu0
        %v1391 = vadd.f32 0.0, %v1390
        %v1392 = vpop.f32.mrb[0].mxu0
        %1393 = vdwg.mxu0
        %v1394 = vsel %vm988, %v1391, -inf
        %1395 = vmax.xlane.f32.xlu0 %v1394
        %v1396 = vpop.xlane.xlu0 %1395
        %v1397 = vsub.f32 %v1391, %v1396
        %v1398 = vmul.f32 %v1397, 1.442695
        %v1399 = vpow.pop %v1398
        %v1400 = vsel %vm988, %v1399, 0.0
        %1401 = vadd.xlane.f32.xlu0 %v1400
        %v1402 = vpop.xlane.xlu0 %1401
        %1403 = vrot.lane.b32.xlu0 %v975, 48
        %v1404 = vpop.permute.xlu0 %1403
        %v1407 = vsel %vm988, %v1399, 0
        %1409 = vmatprep.subr.mxu0 0.0
        %1410 = vmatpush1.msra.mxu0 %v1404
        %1411 = vmatprep.subr.mxu0 0.0
        %1412 = vmatpush1.msra.mxu0 0.0
        %1413 = vmatprep.subr.mxu0 0.0
        %1414 = vmatpush1.msra.mxu0 0.0
        %1415 = vmatprep.subr.mxu0 0.0
        %1416 = vmatpush1.msra.mxu0 0.0
        %1417 = vmatprep.subr.mxu0 0.0
        %1418 = vmatpush1.msra.mxu0 0.0
        %1419 = vmatprep.subr.mxu0 0.0
        %1420 = vmatpush1.msra.mxu0 0.0
        %1421 = vmatprep.subr.mxu0 0.0
        %1422 = vmatpush1.msra.mxu0 0.0
        %1423 = vmatprep.subr.mxu0 0.0
        %1424 = vmatpush1.msra.mxu0 0.0
        %1425 = vmatprep.subr.mxu0 0.0
        %1426 = vmatpush1.msra.mxu0 0.0
        %1427 = vmatprep.subr.mxu0 0.0
        %1428 = vmatpush1.msra.mxu0 0.0
        %1429 = vmatprep.subr.mxu0 0.0
        %1430 = vmatpush1.msra.mxu0 0.0
        %1431 = vmatprep.subr.mxu0 0.0
        %1432 = vmatpush1.msra.mxu0 0.0
        %1433 = vmatprep.subr.mxu0 0.0
        %1434 = vmatpush1.msra.mxu0 0.0
        %1435 = vmatprep.subr.mxu0 0.0
        %1436 = vmatpush1.msra.mxu0 0.0
        %1437 = vmatprep.subr.mxu0 0.0
        %1438 = vmatpush1.msra.mxu0 0.0
        %1439 = vmatprep.subr.mxu0 0.0
        %1440 = vmatpush1.msra.mxu0 0.0
        %1441 = vmatprep.subr.mxu0 0.0
        %1442 = vmatpush1.msra.mxu0 0.0
        %1443 = vmatprep.subr.mxu0 0.0
        %1444 = vmatpush1.msra.mxu0 0.0
        %1445 = vmatprep.subr.mxu0 0.0
        %1446 = vmatpush1.msra.mxu0 0.0
        %1447 = vmatprep.subr.mxu0 0.0
        %1448 = vmatpush1.msra.mxu0 0.0
        %1449 = vmatprep.subr.mxu0 0.0
        %1450 = vmatpush1.msra.mxu0 0.0
        %1451 = vmatprep.subr.mxu0 0.0
        %1452 = vmatpush1.msra.mxu0 0.0
        %1453 = vmatprep.subr.mxu0 0.0
        %1454 = vmatpush1.msra.mxu0 0.0
        %1455 = vmatprep.subr.mxu0 0.0
        %1456 = vmatpush1.msra.mxu0 0.0
        %1457 = vmatprep.subr.mxu0 0.0
        %1458 = vmatpush1.msra.mxu0 0.0
        %1459 = vmatprep.subr.mxu0 0.0
        %1460 = vmatpush1.msra.mxu0 0.0
        %1461 = vmatprep.subr.mxu0 0.0
        %1462 = vmatpush1.msra.mxu0 0.0
        %1463 = vmatprep.subr.mxu0 0.0
        %1464 = vmatpush1.msra.mxu0 0.0
        %1465 = vmatprep.subr.mxu0 0.0
        %1466 = vmatpush1.msra.mxu0 0.0
        %1467 = vmatprep.subr.mxu0 0.0
        %1468 = vmatpush1.msra.mxu0 0.0
        %1469 = vmatprep.subr.mxu0 0.0
        %1470 = vmatpush1.msra.mxu0 0.0
        %1471 = vmatprep.subr.mxu0 0.0
        %1472 = vmatpush1.msra.mxu0 0.0
        %1473 = vmatprep.mubr.f32.mxu0 0.0
        %1474 = vmatmul.mubr.f32.gmra.mrb[0].mxu0 %v1407
        %v1475 = vpop.f32.mrb[0].mxu0
        %v1476 = vadd.f32 0.0, %v1475
        %v1477 = vpop.f32.mrb[0].mxu0
        %1478 = vdwg.mxu0
        %v1479 = vrcp.pop %v1402
        %v1480 = vmul.f32 %v1476, %v1479
        %1481 = vrot.lane.b32.xlu0 %v891, 104
        %v1482 = vpop.permute.xlu0 %1481
        %1483 = vrot.lane.b32.xlu0 %v975, 72
        %v1484 = vpop.permute.xlu0 %1483
        %v1485 = vsel %vm988, %v1482, 0
        %v1487 = vsel %vm988, %v1484, 0
        %1489 = vmatprep.subr.mxu0 0.0
        %1490 = vmatpush1.xpose.msra.mxu0 %v1487
        %1491 = vmatprep.subr.mxu0 0.0
        %1492 = vmatpush1.xpose.msra.mxu0 0.0
        %1493 = vmatprep.subr.mxu0 0.0
        %1494 = vmatpush1.xpose.msra.mxu0 0.0
        %1495 = vmatprep.subr.mxu0 0.0
        %1496 = vmatpush1.xpose.msra.mxu0 0.0
        %1497 = vmatprep.subr.mxu0 0.0
        %1498 = vmatpush1.xpose.msra.mxu0 0.0
        %1499 = vmatprep.subr.mxu0 0.0
        %1500 = vmatpush1.xpose.msra.mxu0 0.0
        %1501 = vmatprep.subr.mxu0 0.0
        %1502 = vmatpush1.xpose.msra.mxu0 0.0
        %1503 = vmatprep.subr.mxu0 0.0
        %1504 = vmatpush1.xpose.msra.mxu0 0.0
        %1505 = vmatprep.subr.mxu0 0.0
        %1506 = vmatpush1.xpose.msra.mxu0 0.0
        %1507 = vmatprep.subr.mxu0 0.0
        %1508 = vmatpush1.xpose.msra.mxu0 0.0
        %1509 = vmatprep.subr.mxu0 0.0
        %1510 = vmatpush1.xpose.msra.mxu0 0.0
        %1511 = vmatprep.subr.mxu0 0.0
        %1512 = vmatpush1.xpose.msra.mxu0 0.0
        %1513 = vmatprep.subr.mxu0 0.0
        %1514 = vmatpush1.xpose.msra.mxu0 0.0
        %1515 = vmatprep.subr.mxu0 0.0
        %1516 = vmatpush1.xpose.msra.mxu0 0.0
        %1517 = vmatprep.subr.mxu0 0.0
        %1518 = vmatpush1.xpose.msra.mxu0 0.0
        %1519 = vmatprep.subr.mxu0 0.0
        %1520 = vmatpush1.xpose.msra.mxu0 0.0
        %1521 = vmatprep.subr.mxu0 0.0
        %1522 = vmatpush1.xpose.msra.mxu0 0.0
        %1523 = vmatprep.subr.mxu0 0.0
        %1524 = vmatpush1.xpose.msra.mxu0 0.0
        %1525 = vmatprep.subr.mxu0 0.0
        %1526 = vmatpush1.xpose.msra.mxu0 0.0
        %1527 = vmatprep.subr.mxu0 0.0
        %1528 = vmatpush1.xpose.msra.mxu0 0.0
        %1529 = vmatprep.subr.mxu0 0.0
        %1530 = vmatpush1.xpose.msra.mxu0 0.0
        %1531 = vmatprep.subr.mxu0 0.0
        %1532 = vmatpush1.xpose.msra.mxu0 0.0
        %1533 = vmatprep.subr.mxu0 0.0
        %1534 = vmatpush1.xpose.msra.mxu0 0.0
        %1535 = vmatprep.subr.mxu0 0.0
        %1536 = vmatpush1.xpose.msra.mxu0 0.0
        %1537 = vmatprep.subr.mxu0 0.0
        %1538 = vmatpush1.xpose.msra.mxu0 0.0
        %1539 = vmatprep.subr.mxu0 0.0
        %1540 = vmatpush1.xpose.msra.mxu0 0.0
        %1541 = vmatprep.subr.mxu0 0.0
        %1542 = vmatpush1.xpose.msra.mxu0 0.0
        %1543 = vmatprep.subr.mxu0 0.0
        %1544 = vmatpush1.xpose.msra.mxu0 0.0
        %1545 = vmatprep.subr.mxu0 0.0
        %1546 = vmatpush1.xpose.msra.mxu0 0.0
        %1547 = vmatprep.subr.mxu0 0.0
        %1548 = vmatpush1.xpose.msra.mxu0 0.0
        %1549 = vmatprep.subr.mxu0 0.0
        %1550 = vmatpush1.xpose.msra.mxu0 0.0
        %1551 = vmatprep.subr.mxu0 0.0
        %1552 = vmatpush1.xpose.msra.mxu0 0.0
        %1553 = vmatprep.mubr.f32.mxu0 0.0
        %1554 = vmatmul.mubr.f32.gmra.mrb[0].mxu0 %v1485
        %v1555 = vpop.f32.mrb[0].mxu0
        %v1556 = vadd.f32 0.0, %v1555
        %v1557 = vpop.f32.mrb[0].mxu0
        %1558 = vdwg.mxu0
        %v1559 = vsel %vm988, %v1556, -inf
        %1560 = vmax.xlane.f32.xlu0 %v1559
        %v1561 = vpop.xlane.xlu0 %1560
        %v1562 = vsub.f32 %v1556, %v1561
        %v1563 = vmul.f32 %v1562, 1.442695
        %v1564 = vpow.pop %v1563
        %v1565 = vsel %vm988, %v1564, 0.0
        %1566 = vadd.xlane.f32.xlu0 %v1565
        %v1567 = vpop.xlane.xlu0 %1566
        %1568 = vrot.lane.b32.xlu0 %v975, 40
        %v1569 = vpop.permute.xlu0 %1568
        %v1572 = vsel %vm988, %v1564, 0
        %1574 = vmatprep.subr.mxu0 0.0
        %1575 = vmatpush1.msra.mxu0 %v1569
        %1576 = vmatprep.subr.mxu0 0.0
        %1577 = vmatpush1.msra.mxu0 0.0
        %1578 = vmatprep.subr.mxu0 0.0
        %1579 = vmatpush1.msra.mxu0 0.0
        %1580 = vmatprep.subr.mxu0 0.0
        %1581 = vmatpush1.msra.mxu0 0.0
        %1582 = vmatprep.subr.mxu0 0.0
        %1583 = vmatpush1.msra.mxu0 0.0
        %1584 = vmatprep.subr.mxu0 0.0
        %1585 = vmatpush1.msra.mxu0 0.0
        %1586 = vmatprep.subr.mxu0 0.0
        %1587 = vmatpush1.msra.mxu0 0.0
        %1588 = vmatprep.subr.mxu0 0.0
        %1589 = vmatpush1.msra.mxu0 0.0
        %1590 = vmatprep.subr.mxu0 0.0
        %1591 = vmatpush1.msra.mxu0 0.0
        %1592 = vmatprep.subr.mxu0 0.0
        %1593 = vmatpush1.msra.mxu0 0.0
        %1594 = vmatprep.subr.mxu0 0.0
        %1595 = vmatpush1.msra.mxu0 0.0
        %1596 = vmatprep.subr.mxu0 0.0
        %1597 = vmatpush1.msra.mxu0 0.0
        %1598 = vmatprep.subr.mxu0 0.0
        %1599 = vmatpush1.msra.mxu0 0.0
        %1600 = vmatprep.subr.mxu0 0.0
        %1601 = vmatpush1.msra.mxu0 0.0
        %1602 = vmatprep.subr.mxu0 0.0
        %1603 = vmatpush1.msra.mxu0 0.0
        %1604 = vmatprep.subr.mxu0 0.0
        %1605 = vmatpush1.msra.mxu0 0.0
        %1606 = vmatprep.subr.mxu0 0.0
        %1607 = vmatpush1.msra.mxu0 0.0
        %1608 = vmatprep.subr.mxu0 0.0
        %1609 = vmatpush1.msra.mxu0 0.0
        %1610 = vmatprep.subr.mxu0 0.0
        %1611 = vmatpush1.msra.mxu0 0.0
        %1612 = vmatprep.subr.mxu0 0.0
        %1613 = vmatpush1.msra.mxu0 0.0
        %1614 = vmatprep.subr.mxu0 0.0
        %1615 = vmatpush1.msra.mxu0 0.0
        %1616 = vmatprep.subr.mxu0 0.0
        %1617 = vmatpush1.msra.mxu0 0.0
        %1618 = vmatprep.subr.mxu0 0.0
        %1619 = vmatpush1.msra.mxu0 0.0
        %1620 = vmatprep.subr.mxu0 0.0
        %1621 = vmatpush1.msra.mxu0 0.0
        %1622 = vmatprep.subr.mxu0 0.0
        %1623 = vmatpush1.msra.mxu0 0.0
        %1624 = vmatprep.subr.mxu0 0.0
        %1625 = vmatpush1.msra.mxu0 0.0
        %1626 = vmatprep.subr.mxu0 0.0
        %1627 = vmatpush1.msra.mxu0 0.0
        %1628 = vmatprep.subr.mxu0 0.0
        %1629 = vmatpush1.msra.mxu0 0.0
        %1630 = vmatprep.subr.mxu0 0.0
        %1631 = vmatpush1.msra.mxu0 0.0
        %1632 = vmatprep.subr.mxu0 0.0
        %1633 = vmatpush1.msra.mxu0 0.0
        %1634 = vmatprep.subr.mxu0 0.0
        %1635 = vmatpush1.msra.mxu0 0.0
        %1636 = vmatprep.subr.mxu0 0.0
        %1637 = vmatpush1.msra.mxu0 0.0
        %1638 = vmatprep.mubr.f32.mxu0 0.0
        %1639 = vmatmul.mubr.f32.gmra.mrb[0].mxu0 %v1572
        %v1640 = vpop.f32.mrb[0].mxu0
        %v1641 = vadd.f32 0.0, %v1640
        %v1642 = vpop.f32.mrb[0].mxu0
        %1643 = vdwg.mxu0
        %v1644 = vrcp.pop %v1567
        %v1645 = vmul.f32 %v1641, %v1644
        %1647 = vrot.lane.b32.xlu0 %v1315, 8
        %v1648 = vpop.permute.xlu0 %1647
        %1651 = vrot.lane.b32.xlu0 %v1480, 16
        %v1652 = vpop.permute.xlu0 %1651
        %1655 = vrot.lane.b32.xlu0 %v1645, 24
        %v1656 = vpop.permute.xlu0 %1655
        %v1658 = vsel %vm988, %v1150, %v1648
        %vm1659 = vcmask 130048
        %v1660 = vsel %vm1659, %v1658, %v1652
        %vm1661 = vcmask 195584
        %v1662 = vsel %vm1661, %v1660, %v1656
        %v1664 = vlaneseq
        %v1665 = vshrl.u32 %v1664, 7
        %v1666 = vsub.s32 0, %v1665
        %v1667 = vrot.slane %v982, %v1666
        %v1669 = vadd.f32 %v807, %v1667
        %v1671 = vsel %vm820, %v1662, 0
        %1673 = vmatprep.subr.mxu0 0.0
        %1674 = vmatpush1.msra.mxu0 %v978
        %1675 = vmatprep.subr.mxu0 0.0
        %1676 = vmatpush1.msra.mxu0 %v979
        %1677 = vmatprep.subr.mxu0 0.0
        %1678 = vmatpush1.msra.mxu0 %v980
        %1679 = vmatprep.subr.mxu0 0.0
        %1680 = vmatpush1.msra.mxu0 %v981
        %1681 = vmatprep.subr.mxu0 0.0
        %1682 = vmatpush1.msra.mxu0 0.0
        %1683 = vmatprep.subr.mxu0 0.0
        %1684 = vmatpush1.msra.mxu0 0.0
        %1685 = vmatprep.subr.mxu0 0.0
        %1686 = vmatpush1.msra.mxu0 0.0
        %1687 = vmatprep.subr.mxu0 0.0
        %1688 = vmatpush1.msra.mxu0 0.0
        %1689 = vmatprep.subr.mxu0 0.0
        %1690 = vmatpush1.msra.mxu0 0.0
        %1691 = vmatprep.subr.mxu0 0.0
        %1692 = vmatpush1.msra.mxu0 0.0
        %1693 = vmatprep.subr.mxu0 0.0
        %1694 = vmatpush1.msra.mxu0 0.0
        %1695 = vmatprep.subr.mxu0 0.0
        %1696 = vmatpush1.msra.mxu0 0.0
        %1697 = vmatprep.subr.mxu0 0.0
        %1698 = vmatpush1.msra.mxu0 0.0
        %1699 = vmatprep.subr.mxu0 0.0
        %1700 = vmatpush1.msra.mxu0 0.0
        %1701 = vmatprep.subr.mxu0 0.0
        %1702 = vmatpush1.msra.mxu0 0.0
        %1703 = vmatprep.subr.mxu0 0.0
        %1704 = vmatpush1.msra.mxu0 0.0
        %1705 = vmatprep.subr.mxu0 0.0
        %1706 = vmatpush1.msra.mxu0 0.0
        %1707 = vmatprep.subr.mxu0 0.0
        %1708 = vmatpush1.msra.mxu0 0.0
        %1709 = vmatprep.subr.mxu0 0.0
        %1710 = vmatpush1.msra.mxu0 0.0
        %1711 = vmatprep.subr.mxu0 0.0
        %1712 = vmatpush1.msra.mxu0 0.0
        %1713 = vmatprep.subr.mxu0 0.0
        %1714 = vmatpush1.msra.mxu0 0.0
        %1715 = vmatprep.subr.mxu0 0.0
        %1716 = vmatpush1.msra.mxu0 0.0
        %1717 = vmatprep.subr.mxu0 0.0
        %1718 = vmatpush1.msra.mxu0 0.0
        %1719 = vmatprep.subr.mxu0 0.0
        %1720 = vmatpush1.msra.mxu0 0.0
        %1721 = vmatprep.subr.mxu0 0.0
        %1722 = vmatpush1.msra.mxu0 0.0
        %1723 = vmatprep.subr.mxu0 0.0
        %1724 = vmatpush1.msra.mxu0 0.0
        %1725 = vmatprep.subr.mxu0 0.0
        %1726 = vmatpush1.msra.mxu0 0.0
        %1727 = vmatprep.subr.mxu0 0.0
        %1728 = vmatpush1.msra.mxu0 0.0
        %1729 = vmatprep.subr.mxu0 0.0
        %1730 = vmatpush1.msra.mxu0 0.0
        %1731 = vmatprep.subr.mxu0 0.0
        %1732 = vmatpush1.msra.mxu0 0.0
        %1733 = vmatprep.subr.mxu0 0.0
        %1734 = vmatpush1.msra.mxu0 0.0
        %1735 = vmatprep.subr.mxu0 0.0
        %1736 = vmatpush1.msra.mxu0 0.0
        %1737 = vmatprep.mubr.f32.mxu0 0.0
        %1738 = vmatmul.mubr.f32.gmra.mrb[0].mxu0 %v1671
        %v1739 = vpop.f32.mrb[0].mxu0
        %v1740 = vadd.f32 0.0, %v1739
        %v1741 = vpop.f32.mrb[0].mxu0
        %1742 = vdwg.mxu0
        %v1743 = vadd.f32 %v1669, %v1740
        %v1744 = vsel %vm820, %v1743, 0.0
        %1745 = vadd.xlane.f32.xlu0 %v1744
        %v1746 = vpop.xlane.xlu0 %1745
        %v1747 = vrcp.pop 32.0
        %v1748 = vmul.f32 %v1746, %v1747
        %v1749 = vsub.f32 %v1743, %v1748
        %v1750 = vmul.f32 %v1749, %v1749
        %v1751 = vsel %vm820, %v1750, 0.0
        %1752 = vadd.xlane.f32.xlu0 %v1751
        %v1753 = vpop.xlane.xlu0 %1752
        %v1754 = vmul.f32 %v1753, %v1747
        %v1755 = vadd.f32 %v1754, 1e-05
        %v1756 = vrsqrt.pop %v1755
        %v1757 = vmul.f32 %v1749, %v1756
        %v1759 = vlaneseq
        %v1760 = vshrl.u32 %v1759, 7
        %v1761 = vsub.s32 0, %v1760
        %v1762 = vrot.slane %v983, %v1761
        %v1764 = vmul.f32 %v1757, %v1762
        %v1766 = vlaneseq
        %v1767 = vshrl.u32 %v1766, 7
        %v1768 = vsub.s32 0, %v1767
        %v1769 = vrot.slane %v984, %v1768
        %v1771 = vadd.f32 %v1764, %v1769
        %v1772 = vld [vmem:[%s680] sm:$0xff]
        %v1773 = vld [vmem:[%s680 + $0x8] sm:$0xff]
        %v1774 = vld [vmem:[%s680 + $0x10] sm:$0xff]
        %v1775 = vld [vmem:[%s680 + $0x18] sm:$0xff]
        %v1776 = vld [vmem:[%s785] sm:$0x1]
        %v1777 = vld [vmem:[%s794] sm:$0x1]
        %v1778 = vld [vmem:[%s797] sm:$0x1]
        %1779 = vrot.lane.b32.xlu0 %v891, 96
        %v1780 = vpop.permute.xlu0 %1779
        %v1781 = vsel %vm988, %v975, 0
        %v1783 = vsel %vm988, %v1780, 0
        %1785 = vmatprep.subr.mxu0 0.0
        %1786 = vmatpush1.xpose.msra.mxu0 %v1783
        %1787 = vmatprep.subr.mxu0 0.0
        %1788 = vmatpush1.xpose.msra.mxu0 0.0
        %1789 = vmatprep.subr.mxu0 0.0
        %1790 = vmatpush1.xpose.msra.mxu0 0.0
        %1791 = vmatprep.subr.mxu0 0.0
        %1792 = vmatpush1.xpose.msra.mxu0 0.0
        %1793 = vmatprep.subr.mxu0 0.0
        %1794 = vmatpush1.xpose.msra.mxu0 0.0
        %1795 = vmatprep.subr.mxu0 0.0
        %1796 = vmatpush1.xpose.msra.mxu0 0.0
        %1797 = vmatprep.subr.mxu0 0.0
        %1798 = vmatpush1.xpose.msra.mxu0 0.0
        %1799 = vmatprep.subr.mxu0 0.0
        %1800 = vmatpush1.xpose.msra.mxu0 0.0
        %1801 = vmatprep.subr.mxu0 0.0
        %1802 = vmatpush1.xpose.msra.mxu0 0.0
        %1803 = vmatprep.subr.mxu0 0.0
        %1804 = vmatpush1.xpose.msra.mxu0 0.0
        %1805 = vmatprep.subr.mxu0 0.0
        %1806 = vmatpush1.xpose.msra.mxu0 0.0
        %1807 = vmatprep.subr.mxu0 0.0
        %1808 = vmatpush1.xpose.msra.mxu0 0.0
        %1809 = vmatprep.subr.mxu0 0.0
        %1810 = vmatpush1.xpose.msra.mxu0 0.0
        %1811 = vmatprep.subr.mxu0 0.0
        %1812 = vmatpush1.xpose.msra.mxu0 0.0
        %1813 = vmatprep.subr.mxu0 0.0
        %1814 = vmatpush1.xpose.msra.mxu0 0.0
        %1815 = vmatprep.subr.mxu0 0.0
        %1816 = vmatpush1.xpose.msra.mxu0 0.0
        %1817 = vmatprep.subr.mxu0 0.0
        %1818 = vmatpush1.xpose.msra.mxu0 0.0
        %1819 = vmatprep.subr.mxu0 0.0
        %1820 = vmatpush1.xpose.msra.mxu0 0.0
        %1821 = vmatprep.subr.mxu0 0.0
        %1822 = vmatpush1.xpose.msra.mxu0 0.0
        %1823 = vmatprep.subr.mxu0 0.0
        %1824 = vmatpush1.xpose.msra.mxu0 0.0
        %1825 = vmatprep.subr.mxu0 0.0
        %1826 = vmatpush1.xpose.msra.mxu0 0.0
        %1827 = vmatprep.subr.mxu0 0.0
        %1828 = vmatpush1.xpose.msra.mxu0 0.0
        %1829 = vmatprep.subr.mxu0 0.0
        %1830 = vmatpush1.xpose.msra.mxu0 0.0
        %1831 = vmatprep.subr.mxu0 0.0
        %1832 = vmatpush1.xpose.msra.mxu0 0.0
        %1833 = vmatprep.subr.mxu0 0.0
        %1834 = vmatpush1.xpose.msra.mxu0 0.0
        %1835 = vmatprep.subr.mxu0 0.0
        %1836 = vmatpush1.xpose.msra.mxu0 0.0
        %1837 = vmatprep.subr.mxu0 0.0
        %1838 = vmatpush1.xpose.msra.mxu0 0.0
        %1839 = vmatprep.subr.mxu0 0.0
        %1840 = vmatpush1.xpose.msra.mxu0 0.0
        %1841 = vmatprep.subr.mxu0 0.0
        %1842 = vmatpush1.xpose.msra.mxu0 0.0
        %1843 = vmatprep.subr.mxu0 0.0
        %1844 = vmatpush1.xpose.msra.mxu0 0.0
        %1845 = vmatprep.subr.mxu0 0.0
        %1846 = vmatpush1.xpose.msra.mxu0 0.0
        %1847 = vmatprep.subr.mxu0 0.0
        %1848 = vmatpush1.xpose.msra.mxu0 0.0
        %1849 = vmatprep.mubr.f32.mxu0 0.0
        %1850 = vmatmul.mubr.f32.gmra.mrb[0].mxu0 %v1781
        %v1851 = vpop.f32.mrb[0].mxu0
        %v1852 = vadd.f32 0.0, %v1851
        %v1853 = vpop.f32.mrb[0].mxu0
        %1854 = vdwg.mxu0
        %v1855 = vsel %vm988, %v1852, -inf
        %1856 = vmax.xlane.f32.xlu0 %v1855
        %v1857 = vpop.xlane.xlu0 %1856
        %v1858 = vsub.f32 %v1852, %v1857
        %v1859 = vmul.f32 %v1858, 1.442695
        %v1860 = vpow.pop %v1859
        %v1861 = vsel %vm988, %v1860, 0.0
        %1862 = vadd.xlane.f32.xlu0 %v1861
        %v1863 = vpop.xlane.xlu0 %1862
        %1864 = vrot.lane.b32.xlu0 %v891, 64
        %v1865 = vpop.permute.xlu0 %1864
        %v1868 = vsel %vm988, %v1860, 0
        %1870 = vmatprep.subr.mxu0 0.0
        %1871 = vmatpush1.msra.mxu0 %v1865
        %1872 = vmatprep.subr.mxu0 0.0
        %1873 = vmatpush1.msra.mxu0 0.0
        %1874 = vmatprep.subr.mxu0 0.0
        %1875 = vmatpush1.msra.mxu0 0.0
        %1876 = vmatprep.subr.mxu0 0.0
        %1877 = vmatpush1.msra.mxu0 0.0
        %1878 = vmatprep.subr.mxu0 0.0
        %1879 = vmatpush1.msra.mxu0 0.0
        %1880 = vmatprep.subr.mxu0 0.0
        %1881 = vmatpush1.msra.mxu0 0.0
        %1882 = vmatprep.subr.mxu0 0.0
        %1883 = vmatpush1.msra.mxu0 0.0
        %1884 = vmatprep.subr.mxu0 0.0
        %1885 = vmatpush1.msra.mxu0 0.0
        %1886 = vmatprep.subr.mxu0 0.0
        %1887 = vmatpush1.msra.mxu0 0.0
        %1888 = vmatprep.subr.mxu0 0.0
        %1889 = vmatpush1.msra.mxu0 0.0
        %1890 = vmatprep.subr.mxu0 0.0
        %1891 = vmatpush1.msra.mxu0 0.0
        %1892 = vmatprep.subr.mxu0 0.0
        %1893 = vmatpush1.msra.mxu0 0.0
        %1894 = vmatprep.subr.mxu0 0.0
        %1895 = vmatpush1.msra.mxu0 0.0
        %1896 = vmatprep.subr.mxu0 0.0
        %1897 = vmatpush1.msra.mxu0 0.0
        %1898 = vmatprep.subr.mxu0 0.0
        %1899 = vmatpush1.msra.mxu0 0.0
        %1900 = vmatprep.subr.mxu0 0.0
        %1901 = vmatpush1.msra.mxu0 0.0
        %1902 = vmatprep.subr.mxu0 0.0
        %1903 = vmatpush1.msra.mxu0 0.0
        %1904 = vmatprep.subr.mxu0 0.0
        %1905 = vmatpush1.msra.mxu0 0.0
        %1906 = vmatprep.subr.mxu0 0.0
        %1907 = vmatpush1.msra.mxu0 0.0
        %1908 = vmatprep.subr.mxu0 0.0
        %1909 = vmatpush1.msra.mxu0 0.0
        %1910 = vmatprep.subr.mxu0 0.0
        %1911 = vmatpush1.msra.mxu0 0.0
        %1912 = vmatprep.subr.mxu0 0.0
        %1913 = vmatpush1.msra.mxu0 0.0
        %1914 = vmatprep.subr.mxu0 0.0
        %1915 = vmatpush1.msra.mxu0 0.0
        %1916 = vmatprep.subr.mxu0 0.0
        %1917 = vmatpush1.msra.mxu0 0.0
        %1918 = vmatprep.subr.mxu0 0.0
        %1919 = vmatpush1.msra.mxu0 0.0
        %1920 = vmatprep.subr.mxu0 0.0
        %1921 = vmatpush1.msra.mxu0 0.0
        %1922 = vmatprep.subr.mxu0 0.0
        %1923 = vmatpush1.msra.mxu0 0.0
        %1924 = vmatprep.subr.mxu0 0.0
        %1925 = vmatpush1.msra.mxu0 0.0
        %1926 = vmatprep.subr.mxu0 0.0
        %1927 = vmatpush1.msra.mxu0 0.0
        %1928 = vmatprep.subr.mxu0 0.0
        %1929 = vmatpush1.msra.mxu0 0.0
        %1930 = vmatprep.subr.mxu0 0.0
        %1931 = vmatpush1.msra.mxu0 0.0
        %1932 = vmatprep.subr.mxu0 0.0
        %1933 = vmatpush1.msra.mxu0 0.0
        %1934 = vmatprep.mubr.f32.mxu0 0.0
        %1935 = vmatmul.mubr.f32.gmra.mrb[0].mxu0 %v1868
        %v1936 = vpop.f32.mrb[0].mxu0
        %v1937 = vadd.f32 0.0, %v1936
        %v1938 = vpop.f32.mrb[0].mxu0
        %1939 = vdwg.mxu0
        %v1940 = vrcp.pop %v1863
        %v1941 = vmul.f32 %v1937, %v1940
        %1942 = vrot.lane.b32.xlu0 %v975, 120
        %v1943 = vpop.permute.xlu0 %1942
        %1944 = vrot.lane.b32.xlu0 %v891, 88
        %v1945 = vpop.permute.xlu0 %1944
        %v1946 = vsel %vm988, %v1943, 0
        %v1948 = vsel %vm988, %v1945, 0
        %1950 = vmatprep.subr.mxu0 0.0
        %1951 = vmatpush1.xpose.msra.mxu0 %v1948
        %1952 = vmatprep.subr.mxu0 0.0
        %1953 = vmatpush1.xpose.msra.mxu0 0.0
        %1954 = vmatprep.subr.mxu0 0.0
        %1955 = vmatpush1.xpose.msra.mxu0 0.0
        %1956 = vmatprep.subr.mxu0 0.0
        %1957 = vmatpush1.xpose.msra.mxu0 0.0
        %1958 = vmatprep.subr.mxu0 0.0
        %1959 = vmatpush1.xpose.msra.mxu0 0.0
        %1960 = vmatprep.subr.mxu0 0.0
        %1961 = vmatpush1.xpose.msra.mxu0 0.0
        %1962 = vmatprep.subr.mxu0 0.0
        %1963 = vmatpush1.xpose.msra.mxu0 0.0
        %1964 = vmatprep.subr.mxu0 0.0
        %1965 = vmatpush1.xpose.msra.mxu0 0.0
        %1966 = vmatprep.subr.mxu0 0.0
        %1967 = vmatpush1.xpose.msra.mxu0 0.0
        %1968 = vmatprep.subr.mxu0 0.0
        %1969 = vmatpush1.xpose.msra.mxu0 0.0
        %1970 = vmatprep.subr.mxu0 0.0
        %1971 = vmatpush1.xpose.msra.mxu0 0.0
        %1972 = vmatprep.subr.mxu0 0.0
        %1973 = vmatpush1.xpose.msra.mxu0 0.0
        %1974 = vmatprep.subr.mxu0 0.0
        %1975 = vmatpush1.xpose.msra.mxu0 0.0
        %1976 = vmatprep.subr.mxu0 0.0
        %1977 = vmatpush1.xpose.msra.mxu0 0.0
        %1978 = vmatprep.subr.mxu0 0.0
        %1979 = vmatpush1.xpose.msra.mxu0 0.0
        %1980 = vmatprep.subr.mxu0 0.0
        %1981 = vmatpush1.xpose.msra.mxu0 0.0
        %1982 = vmatprep.subr.mxu0 0.0
        %1983 = vmatpush1.xpose.msra.mxu0 0.0
        %1984 = vmatprep.subr.mxu0 0.0
        %1985 = vmatpush1.xpose.msra.mxu0 0.0
        %1986 = vmatprep.subr.mxu0 0.0
        %1987 = vmatpush1.xpose.msra.mxu0 0.0
        %1988 = vmatprep.subr.mxu0 0.0
        %1989 = vmatpush1.xpose.msra.mxu0 0.0
        %1990 = vmatprep.subr.mxu0 0.0
        %1991 = vmatpush1.xpose.msra.mxu0 0.0
        %1992 = vmatprep.subr.mxu0 0.0
        %1993 = vmatpush1.xpose.msra.mxu0 0.0
        %1994 = vmatprep.subr.mxu0 0.0
        %1995 = vmatpush1.xpose.msra.mxu0 0.0
        %1996 = vmatprep.subr.mxu0 0.0
        %1997 = vmatpush1.xpose.msra.mxu0 0.0
        %1998 = vmatprep.subr.mxu0 0.0
        %1999 = vmatpush1.xpose.msra.mxu0 0.0
        %2000 = vmatprep.subr.mxu0 0.0
        %2001 = vmatpush1.xpose.msra.mxu0 0.0
        %2002 = vmatprep.subr.mxu0 0.0
        %2003 = vmatpush1.xpose.msra.mxu0 0.0
        %2004 = vmatprep.subr.mxu0 0.0
        %2005 = vmatpush1.xpose.msra.mxu0 0.0
        %2006 = vmatprep.subr.mxu0 0.0
        %2007 = vmatpush1.xpose.msra.mxu0 0.0
        %2008 = vmatprep.subr.mxu0 0.0
        %2009 = vmatpush1.xpose.msra.mxu0 0.0
        %2010 = vmatprep.subr.mxu0 0.0
        %2011 = vmatpush1.xpose.msra.mxu0 0.0
        %2012 = vmatprep.subr.mxu0 0.0
        %2013 = vmatpush1.xpose.msra.mxu0 0.0
        %2014 = vmatprep.mubr.f32.mxu0 0.0
        %2015 = vmatmul.mubr.f32.gmra.mrb[0].mxu0 %v1946
        %v2016 = vpop.f32.mrb[0].mxu0
        %v2017 = vadd.f32 0.0, %v2016
        %v2018 = vpop.f32.mrb[0].mxu0
        %2019 = vdwg.mxu0
        %v2020 = vsel %vm988, %v2017, -inf
        %2021 = vmax.xlane.f32.xlu0 %v2020
        %v2022 = vpop.xlane.xlu0 %2021
        %v2023 = vsub.f32 %v2017, %v2022
        %v2024 = vmul.f32 %v2023, 1.442695
        %v2025 = vpow.pop %v2024
        %v2026 = vsel %vm988, %v2025, 0.0
        %2027 = vadd.xlane.f32.xlu0 %v2026
        %v2028 = vpop.xlane.xlu0 %2027
        %2029 = vrot.lane.b32.xlu0 %v891, 56
        %v2030 = vpop.permute.xlu0 %2029
        %v2033 = vsel %vm988, %v2025, 0
        %2035 = vmatprep.subr.mxu0 0.0
        %2036 = vmatpush1.msra.mxu0 %v2030
        %2037 = vmatprep.subr.mxu0 0.0
        %2038 = vmatpush1.msra.mxu0 0.0
        %2039 = vmatprep.subr.mxu0 0.0
        %2040 = vmatpush1.msra.mxu0 0.0
        %2041 = vmatprep.subr.mxu0 0.0
        %2042 = vmatpush1.msra.mxu0 0.0
        %2043 = vmatprep.subr.mxu0 0.0
        %2044 = vmatpush1.msra.mxu0 0.0
        %2045 = vmatprep.subr.mxu0 0.0
        %2046 = vmatpush1.msra.mxu0 0.0
        %2047 = vmatprep.subr.mxu0 0.0
        %2048 = vmatpush1.msra.mxu0 0.0
        %2049 = vmatprep.subr.mxu0 0.0
        %2050 = vmatpush1.msra.mxu0 0.0
        %2051 = vmatprep.subr.mxu0 0.0
        %2052 = vmatpush1.msra.mxu0 0.0
        %2053 = vmatprep.subr.mxu0 0.0
        %2054 = vmatpush1.msra.mxu0 0.0
        %2055 = vmatprep.subr.mxu0 0.0
        %2056 = vmatpush1.msra.mxu0 0.0
        %2057 = vmatprep.subr.mxu0 0.0
        %2058 = vmatpush1.msra.mxu0 0.0
        %2059 = vmatprep.subr.mxu0 0.0
        %2060 = vmatpush1.msra.mxu0 0.0
        %2061 = vmatprep.subr.mxu0 0.0
        %2062 = vmatpush1.msra.mxu0 0.0
        %2063 = vmatprep.subr.mxu0 0.0
        %2064 = vmatpush1.msra.mxu0 0.0
        %2065 = vmatprep.subr.mxu0 0.0
        %2066 = vmatpush1.msra.mxu0 0.0
        %2067 = vmatprep.subr.mxu0 0.0
        %2068 = vmatpush1.msra.mxu0 0.0
        %2069 = vmatprep.subr.mxu0 0.0
        %2070 = vmatpush1.msra.mxu0 0.0
        %2071 = vmatprep.subr.mxu0 0.0
        %2072 = vmatpush1.msra.mxu0 0.0
        %2073 = vmatprep.subr.mxu0 0.0
        %2074 = vmatpush1.msra.mxu0 0.0
        %2075 = vmatprep.subr.mxu0 0.0
        %2076 = vmatpush1.msra.mxu0 0.0
        %2077 = vmatprep.subr.mxu0 0.0
        %2078 = vmatpush1.msra.mxu0 0.0
        %2079 = vmatprep.subr.mxu0 0.0
        %2080 = vmatpush1.msra.mxu0 0.0
        %2081 = vmatprep.subr.mxu0 0.0
        %2082 = vmatpush1.msra.mxu0 0.0
        %2083 = vmatprep.subr.mxu0 0.0
        %2084 = vmatpush1.msra.mxu0 0.0
        %2085 = vmatprep.subr.mxu0 0.0
        %2086 = vmatpush1.msra.mxu0 0.0
        %2087 = vmatprep.subr.mxu0 0.0
        %2088 = vmatpush1.msra.mxu0 0.0
        %2089 = vmatprep.subr.mxu0 0.0
        %2090 = vmatpush1.msra.mxu0 0.0
        %2091 = vmatprep.subr.mxu0 0.0
        %2092 = vmatpush1.msra.mxu0 0.0
        %2093 = vmatprep.subr.mxu0 0.0
        %2094 = vmatpush1.msra.mxu0 0.0
        %2095 = vmatprep.subr.mxu0 0.0
        %2096 = vmatpush1.msra.mxu0 0.0
        %2097 = vmatprep.subr.mxu0 0.0
        %2098 = vmatpush1.msra.mxu0 0.0
        %2099 = vmatprep.mubr.f32.mxu0 0.0
        %2100 = vmatmul.mubr.f32.gmra.mrb[0].mxu0 %v2033
        %v2101 = vpop.f32.mrb[0].mxu0
        %v2102 = vadd.f32 0.0, %v2101
        %v2103 = vpop.f32.mrb[0].mxu0
        %2104 = vdwg.mxu0
        %v2105 = vrcp.pop %v2028
        %v2106 = vmul.f32 %v2102, %v2105
        %2107 = vrot.lane.b32.xlu0 %v975, 112
        %v2108 = vpop.permute.xlu0 %2107
        %2109 = vrot.lane.b32.xlu0 %v891, 80
        %v2110 = vpop.permute.xlu0 %2109
        %v2111 = vsel %vm988, %v2108, 0
        %v2113 = vsel %vm988, %v2110, 0
        %2115 = vmatprep.subr.mxu0 0.0
        %2116 = vmatpush1.xpose.msra.mxu0 %v2113
        %2117 = vmatprep.subr.mxu0 0.0
        %2118 = vmatpush1.xpose.msra.mxu0 0.0
        %2119 = vmatprep.subr.mxu0 0.0
        %2120 = vmatpush1.xpose.msra.mxu0 0.0
        %2121 = vmatprep.subr.mxu0 0.0
        %2122 = vmatpush1.xpose.msra.mxu0 0.0
        %2123 = vmatprep.subr.mxu0 0.0
        %2124 = vmatpush1.xpose.msra.mxu0 0.0
        %2125 = vmatprep.subr.mxu0 0.0
        %2126 = vmatpush1.xpose.msra.mxu0 0.0
        %2127 = vmatprep.subr.mxu0 0.0
        %2128 = vmatpush1.xpose.msra.mxu0 0.0
        %2129 = vmatprep.subr.mxu0 0.0
        %2130 = vmatpush1.xpose.msra.mxu0 0.0
        %2131 = vmatprep.subr.mxu0 0.0
        %2132 = vmatpush1.xpose.msra.mxu0 0.0
        %2133 = vmatprep.subr.mxu0 0.0
        %2134 = vmatpush1.xpose.msra.mxu0 0.0
        %2135 = vmatprep.subr.mxu0 0.0
        %2136 = vmatpush1.xpose.msra.mxu0 0.0
        %2137 = vmatprep.subr.mxu0 0.0
        %2138 = vmatpush1.xpose.msra.mxu0 0.0
        %2139 = vmatprep.subr.mxu0 0.0
        %2140 = vmatpush1.xpose.msra.mxu0 0.0
        %2141 = vmatprep.subr.mxu0 0.0
        %2142 = vmatpush1.xpose.msra.mxu0 0.0
        %2143 = vmatprep.subr.mxu0 0.0
        %2144 = vmatpush1.xpose.msra.mxu0 0.0
        %2145 = vmatprep.subr.mxu0 0.0
        %2146 = vmatpush1.xpose.msra.mxu0 0.0
        %2147 = vmatprep.subr.mxu0 0.0
        %2148 = vmatpush1.xpose.msra.mxu0 0.0
        %2149 = vmatprep.subr.mxu0 0.0
        %2150 = vmatpush1.xpose.msra.mxu0 0.0
        %2151 = vmatprep.subr.mxu0 0.0
        %2152 = vmatpush1.xpose.msra.mxu0 0.0
        %2153 = vmatprep.subr.mxu0 0.0
        %2154 = vmatpush1.xpose.msra.mxu0 0.0
        %2155 = vmatprep.subr.mxu0 0.0
        %2156 = vmatpush1.xpose.msra.mxu0 0.0
        %2157 = vmatprep.subr.mxu0 0.0
        %2158 = vmatpush1.xpose.msra.mxu0 0.0
        %2159 = vmatprep.subr.mxu0 0.0
        %2160 = vmatpush1.xpose.msra.mxu0 0.0
        %2161 = vmatprep.subr.mxu0 0.0
        %2162 = vmatpush1.xpose.msra.mxu0 0.0
        %2163 = vmatprep.subr.mxu0 0.0
        %2164 = vmatpush1.xpose.msra.mxu0 0.0
        %2165 = vmatprep.subr.mxu0 0.0
        %2166 = vmatpush1.xpose.msra.mxu0 0.0
        %2167 = vmatprep.subr.mxu0 0.0
        %2168 = vmatpush1.xpose.msra.mxu0 0.0
        %2169 = vmatprep.subr.mxu0 0.0
        %2170 = vmatpush1.xpose.msra.mxu0 0.0
        %2171 = vmatprep.subr.mxu0 0.0
        %2172 = vmatpush1.xpose.msra.mxu0 0.0
        %2173 = vmatprep.subr.mxu0 0.0
        %2174 = vmatpush1.xpose.msra.mxu0 0.0
        %2175 = vmatprep.subr.mxu0 0.0
        %2176 = vmatpush1.xpose.msra.mxu0 0.0
        %2177 = vmatprep.subr.mxu0 0.0
        %2178 = vmatpush1.xpose.msra.mxu0 0.0
        %2179 = vmatprep.mubr.f32.mxu0 0.0
        %2180 = vmatmul.mubr.f32.gmra.mrb[0].mxu0 %v2111
        %v2181 = vpop.f32.mrb[0].mxu0
        %v2182 = vadd.f32 0.0, %v2181
        %v2183 = vpop.f32.mrb[0].mxu0
        %2184 = vdwg.mxu0
        %v2185 = vsel %vm988, %v2182, -inf
        %2186 = vmax.xlane.f32.xlu0 %v2185
        %v2187 = vpop.xlane.xlu0 %2186
        %v2188 = vsub.f32 %v2182, %v2187
        %v2189 = vmul.f32 %v2188, 1.442695
        %v2190 = vpow.pop %v2189
        %v2191 = vsel %vm988, %v2190, 0.0
        %2192 = vadd.xlane.f32.xlu0 %v2191
        %v2193 = vpop.xlane.xlu0 %2192
        %2194 = vrot.lane.b32.xlu0 %v891, 48
        %v2195 = vpop.permute.xlu0 %2194
        %v2198 = vsel %vm988, %v2190, 0
        %2200 = vmatprep.subr.mxu0 0.0
        %2201 = vmatpush1.msra.mxu0 %v2195
        %2202 = vmatprep.subr.mxu0 0.0
        %2203 = vmatpush1.msra.mxu0 0.0
        %2204 = vmatprep.subr.mxu0 0.0
        %2205 = vmatpush1.msra.mxu0 0.0
        %2206 = vmatprep.subr.mxu0 0.0
        %2207 = vmatpush1.msra.mxu0 0.0
        %2208 = vmatprep.subr.mxu0 0.0
        %2209 = vmatpush1.msra.mxu0 0.0
        %2210 = vmatprep.subr.mxu0 0.0
        %2211 = vmatpush1.msra.mxu0 0.0
        %2212 = vmatprep.subr.mxu0 0.0
        %2213 = vmatpush1.msra.mxu0 0.0
        %2214 = vmatprep.subr.mxu0 0.0
        %2215 = vmatpush1.msra.mxu0 0.0
        %2216 = vmatprep.subr.mxu0 0.0
        %2217 = vmatpush1.msra.mxu0 0.0
        %2218 = vmatprep.subr.mxu0 0.0
        %2219 = vmatpush1.msra.mxu0 0.0
        %2220 = vmatprep.subr.mxu0 0.0
        %2221 = vmatpush1.msra.mxu0 0.0
        %2222 = vmatprep.subr.mxu0 0.0
        %2223 = vmatpush1.msra.mxu0 0.0
        %2224 = vmatprep.subr.mxu0 0.0
        %2225 = vmatpush1.msra.mxu0 0.0
        %2226 = vmatprep.subr.mxu0 0.0
        %2227 = vmatpush1.msra.mxu0 0.0
        %2228 = vmatprep.subr.mxu0 0.0
        %2229 = vmatpush1.msra.mxu0 0.0
        %2230 = vmatprep.subr.mxu0 0.0
        %2231 = vmatpush1.msra.mxu0 0.0
        %2232 = vmatprep.subr.mxu0 0.0
        %2233 = vmatpush1.msra.mxu0 0.0
        %2234 = vmatprep.subr.mxu0 0.0
        %2235 = vmatpush1.msra.mxu0 0.0
        %2236 = vmatprep.subr.mxu0 0.0
        %2237 = vmatpush1.msra.mxu0 0.0
        %2238 = vmatprep.subr.mxu0 0.0
        %2239 = vmatpush1.msra.mxu0 0.0
        %2240 = vmatprep.subr.mxu0 0.0
        %2241 = vmatpush1.msra.mxu0 0.0
        %2242 = vmatprep.subr.mxu0 0.0
        %2243 = vmatpush1.msra.mxu0 0.0
        %2244 = vmatprep.subr.mxu0 0.0
        %2245 = vmatpush1.msra.mxu0 0.0
        %2246 = vmatprep.subr.mxu0 0.0
        %2247 = vmatpush1.msra.mxu0 0.0
        %2248 = vmatprep.subr.mxu0 0.0
        %2249 = vmatpush1.msra.mxu0 0.0
        %2250 = vmatprep.subr.mxu0 0.0
        %2251 = vmatpush1.msra.mxu0 0.0
        %2252 = vmatprep.subr.mxu0 0.0
        %2253 = vmatpush1.msra.mxu0 0.0
        %2254 = vmatprep.subr.mxu0 0.0
        %2255 = vmatpush1.msra.mxu0 0.0
        %2256 = vmatprep.subr.mxu0 0.0
        %2257 = vmatpush1.msra.mxu0 0.0
        %2258 = vmatprep.subr.mxu0 0.0
        %2259 = vmatpush1.msra.mxu0 0.0
        %2260 = vmatprep.subr.mxu0 0.0
        %2261 = vmatpush1.msra.mxu0 0.0
        %2262 = vmatprep.subr.mxu0 0.0
        %2263 = vmatpush1.msra.mxu0 0.0
        %2264 = vmatprep.mubr.f32.mxu0 0.0
        %2265 = vmatmul.mubr.f32.gmra.mrb[0].mxu0 %v2198
        %v2266 = vpop.f32.mrb[0].mxu0
        %v2267 = vadd.f32 0.0, %v2266
        %v2268 = vpop.f32.mrb[0].mxu0
        %2269 = vdwg.mxu0
        %v2270 = vrcp.pop %v2193
        %v2271 = vmul.f32 %v2267, %v2270
        %2272 = vrot.lane.b32.xlu0 %v975, 104
        %v2273 = vpop.permute.xlu0 %2272
        %2274 = vrot.lane.b32.xlu0 %v891, 72
        %v2275 = vpop.permute.xlu0 %2274
        %v2276 = vsel %vm988, %v2273, 0
        %v2278 = vsel %vm988, %v2275, 0
        %2280 = vmatprep.subr.mxu0 0.0
        %2281 = vmatpush1.xpose.msra.mxu0 %v2278
        %2282 = vmatprep.subr.mxu0 0.0
        %2283 = vmatpush1.xpose.msra.mxu0 0.0
        %2284 = vmatprep.subr.mxu0 0.0
        %2285 = vmatpush1.xpose.msra.mxu0 0.0
        %2286 = vmatprep.subr.mxu0 0.0
        %2287 = vmatpush1.xpose.msra.mxu0 0.0
        %2288 = vmatprep.subr.mxu0 0.0
        %2289 = vmatpush1.xpose.msra.mxu0 0.0
        %2290 = vmatprep.subr.mxu0 0.0
        %2291 = vmatpush1.xpose.msra.mxu0 0.0
        %2292 = vmatprep.subr.mxu0 0.0
        %2293 = vmatpush1.xpose.msra.mxu0 0.0
        %2294 = vmatprep.subr.mxu0 0.0
        %2295 = vmatpush1.xpose.msra.mxu0 0.0
        %2296 = vmatprep.subr.mxu0 0.0
        %2297 = vmatpush1.xpose.msra.mxu0 0.0
        %2298 = vmatprep.subr.mxu0 0.0
        %2299 = vmatpush1.xpose.msra.mxu0 0.0
        %2300 = vmatprep.subr.mxu0 0.0
        %2301 = vmatpush1.xpose.msra.mxu0 0.0
        %2302 = vmatprep.subr.mxu0 0.0
        %2303 = vmatpush1.xpose.msra.mxu0 0.0
        %2304 = vmatprep.subr.mxu0 0.0
        %2305 = vmatpush1.xpose.msra.mxu0 0.0
        %2306 = vmatprep.subr.mxu0 0.0
        %2307 = vmatpush1.xpose.msra.mxu0 0.0
        %2308 = vmatprep.subr.mxu0 0.0
        %2309 = vmatpush1.xpose.msra.mxu0 0.0
        %2310 = vmatprep.subr.mxu0 0.0
        %2311 = vmatpush1.xpose.msra.mxu0 0.0
        %2312 = vmatprep.subr.mxu0 0.0
        %2313 = vmatpush1.xpose.msra.mxu0 0.0
        %2314 = vmatprep.subr.mxu0 0.0
        %2315 = vmatpush1.xpose.msra.mxu0 0.0
        %2316 = vmatprep.subr.mxu0 0.0
        %2317 = vmatpush1.xpose.msra.mxu0 0.0
        %2318 = vmatprep.subr.mxu0 0.0
        %2319 = vmatpush1.xpose.msra.mxu0 0.0
        %2320 = vmatprep.subr.mxu0 0.0
        %2321 = vmatpush1.xpose.msra.mxu0 0.0
        %2322 = vmatprep.subr.mxu0 0.0
        %2323 = vmatpush1.xpose.msra.mxu0 0.0
        %2324 = vmatprep.subr.mxu0 0.0
        %2325 = vmatpush1.xpose.msra.mxu0 0.0
        %2326 = vmatprep.subr.mxu0 0.0
        %2327 = vmatpush1.xpose.msra.mxu0 0.0
        %2328 = vmatprep.subr.mxu0 0.0
        %2329 = vmatpush1.xpose.msra.mxu0 0.0
        %2330 = vmatprep.subr.mxu0 0.0
        %2331 = vmatpush1.xpose.msra.mxu0 0.0
        %2332 = vmatprep.subr.mxu0 0.0
        %2333 = vmatpush1.xpose.msra.mxu0 0.0
        %2334 = vmatprep.subr.mxu0 0.0
        %2335 = vmatpush1.xpose.msra.mxu0 0.0
        %2336 = vmatprep.subr.mxu0 0.0
        %2337 = vmatpush1.xpose.msra.mxu0 0.0
        %2338 = vmatprep.subr.mxu0 0.0
        %2339 = vmatpush1.xpose.msra.mxu0 0.0
        %2340 = vmatprep.subr.mxu0 0.0
        %2341 = vmatpush1.xpose.msra.mxu0 0.0
        %2342 = vmatprep.subr.mxu0 0.0
        %2343 = vmatpush1.xpose.msra.mxu0 0.0
        %2344 = vmatprep.mubr.f32.mxu0 0.0
        %2345 = vmatmul.mubr.f32.gmra.mrb[0].mxu0 %v2276
        %v2346 = vpop.f32.mrb[0].mxu0
        %v2347 = vadd.f32 0.0, %v2346
        %v2348 = vpop.f32.mrb[0].mxu0
        %2349 = vdwg.mxu0
        %v2350 = vsel %vm988, %v2347, -inf
        %2351 = vmax.xlane.f32.xlu0 %v2350
        %v2352 = vpop.xlane.xlu0 %2351
        %v2353 = vsub.f32 %v2347, %v2352
        %v2354 = vmul.f32 %v2353, 1.442695
        %v2355 = vpow.pop %v2354
        %v2356 = vsel %vm988, %v2355, 0.0
        %2357 = vadd.xlane.f32.xlu0 %v2356
        %v2358 = vpop.xlane.xlu0 %2357
        %2359 = vrot.lane.b32.xlu0 %v891, 40
        %v2360 = vpop.permute.xlu0 %2359
        %v2363 = vsel %vm988, %v2355, 0
        %2365 = vmatprep.subr.mxu0 0.0
        %2366 = vmatpush1.msra.mxu0 %v2360
        %2367 = vmatprep.subr.mxu0 0.0
        %2368 = vmatpush1.msra.mxu0 0.0
        %2369 = vmatprep.subr.mxu0 0.0
        %2370 = vmatpush1.msra.mxu0 0.0
        %2371 = vmatprep.subr.mxu0 0.0
        %2372 = vmatpush1.msra.mxu0 0.0
        %2373 = vmatprep.subr.mxu0 0.0
        %2374 = vmatpush1.msra.mxu0 0.0
        %2375 = vmatprep.subr.mxu0 0.0
        %2376 = vmatpush1.msra.mxu0 0.0
        %2377 = vmatprep.subr.mxu0 0.0
        %2378 = vmatpush1.msra.mxu0 0.0
        %2379 = vmatprep.subr.mxu0 0.0
        %2380 = vmatpush1.msra.mxu0 0.0
        %2381 = vmatprep.subr.mxu0 0.0
        %2382 = vmatpush1.msra.mxu0 0.0
        %2383 = vmatprep.subr.mxu0 0.0
        %2384 = vmatpush1.msra.mxu0 0.0
        %2385 = vmatprep.subr.mxu0 0.0
        %2386 = vmatpush1.msra.mxu0 0.0
        %2387 = vmatprep.subr.mxu0 0.0
        %2388 = vmatpush1.msra.mxu0 0.0
        %2389 = vmatprep.subr.mxu0 0.0
        %2390 = vmatpush1.msra.mxu0 0.0
        %2391 = vmatprep.subr.mxu0 0.0
        %2392 = vmatpush1.msra.mxu0 0.0
        %2393 = vmatprep.subr.mxu0 0.0
        %2394 = vmatpush1.msra.mxu0 0.0
        %2395 = vmatprep.subr.mxu0 0.0
        %2396 = vmatpush1.msra.mxu0 0.0
        %2397 = vmatprep.subr.mxu0 0.0
        %2398 = vmatpush1.msra.mxu0 0.0
        %2399 = vmatprep.subr.mxu0 0.0
        %2400 = vmatpush1.msra.mxu0 0.0
        %2401 = vmatprep.subr.mxu0 0.0
        %2402 = vmatpush1.msra.mxu0 0.0
        %2403 = vmatprep.subr.mxu0 0.0
        %2404 = vmatpush1.msra.mxu0 0.0
        %2405 = vmatprep.subr.mxu0 0.0
        %2406 = vmatpush1.msra.mxu0 0.0
        %2407 = vmatprep.subr.mxu0 0.0
        %2408 = vmatpush1.msra.mxu0 0.0
        %2409 = vmatprep.subr.mxu0 0.0
        %2410 = vmatpush1.msra.mxu0 0.0
        %2411 = vmatprep.subr.mxu0 0.0
        %2412 = vmatpush1.msra.mxu0 0.0
        %2413 = vmatprep.subr.mxu0 0.0
        %2414 = vmatpush1.msra.mxu0 0.0
        %2415 = vmatprep.subr.mxu0 0.0
        %2416 = vmatpush1.msra.mxu0 0.0
        %2417 = vmatprep.subr.mxu0 0.0
        %2418 = vmatpush1.msra.mxu0 0.0
        %2419 = vmatprep.subr.mxu0 0.0
        %2420 = vmatpush1.msra.mxu0 0.0
        %2421 = vmatprep.subr.mxu0 0.0
        %2422 = vmatpush1.msra.mxu0 0.0
        %2423 = vmatprep.subr.mxu0 0.0
        %2424 = vmatpush1.msra.mxu0 0.0
        %2425 = vmatprep.subr.mxu0 0.0
        %2426 = vmatpush1.msra.mxu0 0.0
        %2427 = vmatprep.subr.mxu0 0.0
        %2428 = vmatpush1.msra.mxu0 0.0
        %2429 = vmatprep.mubr.f32.mxu0 0.0
        %2430 = vmatmul.mubr.f32.gmra.mrb[0].mxu0 %v2363
        %v2431 = vpop.f32.mrb[0].mxu0
        %v2432 = vadd.f32 0.0, %v2431
        %v2433 = vpop.f32.mrb[0].mxu0
        %2434 = vdwg.mxu0
        %v2435 = vrcp.pop %v2358
        %v2436 = vmul.f32 %v2432, %v2435
        %2438 = vrot.lane.b32.xlu0 %v2106, 8
        %v2439 = vpop.permute.xlu0 %2438
        %2442 = vrot.lane.b32.xlu0 %v2271, 16
        %v2443 = vpop.permute.xlu0 %2442
        %2446 = vrot.lane.b32.xlu0 %v2436, 24
        %v2447 = vpop.permute.xlu0 %2446
        %v2449 = vsel %vm988, %v1941, %v2439
        %v2450 = vsel %vm1659, %v2449, %v2443
        %v2451 = vsel %vm1661, %v2450, %v2447
        %v2453 = vlaneseq
        %v2454 = vshrl.u32 %v2453, 7
        %v2455 = vsub.s32 0, %v2454
        %v2456 = vrot.slane %v1776, %v2455
        %v2458 = vadd.f32 %v808, %v2456
        %v2460 = vsel %vm820, %v2451, 0
        %2462 = vmatprep.subr.mxu0 0.0
        %2463 = vmatpush1.msra.mxu0 %v1772
        %2464 = vmatprep.subr.mxu0 0.0
        %2465 = vmatpush1.msra.mxu0 %v1773
        %2466 = vmatprep.subr.mxu0 0.0
        %2467 = vmatpush1.msra.mxu0 %v1774
        %2468 = vmatprep.subr.mxu0 0.0
        %2469 = vmatpush1.msra.mxu0 %v1775
        %2470 = vmatprep.subr.mxu0 0.0
        %2471 = vmatpush1.msra.mxu0 0.0
        %2472 = vmatprep.subr.mxu0 0.0
        %2473 = vmatpush1.msra.mxu0 0.0
        %2474 = vmatprep.subr.mxu0 0.0
        %2475 = vmatpush1.msra.mxu0 0.0
        %2476 = vmatprep.subr.mxu0 0.0
        %2477 = vmatpush1.msra.mxu0 0.0
        %2478 = vmatprep.subr.mxu0 0.0
        %2479 = vmatpush1.msra.mxu0 0.0
        %2480 = vmatprep.subr.mxu0 0.0
        %2481 = vmatpush1.msra.mxu0 0.0
        %2482 = vmatprep.subr.mxu0 0.0
        %2483 = vmatpush1.msra.mxu0 0.0
        %2484 = vmatprep.subr.mxu0 0.0
        %2485 = vmatpush1.msra.mxu0 0.0
        %2486 = vmatprep.subr.mxu0 0.0
        %2487 = vmatpush1.msra.mxu0 0.0
        %2488 = vmatprep.subr.mxu0 0.0
        %2489 = vmatpush1.msra.mxu0 0.0
        %2490 = vmatprep.subr.mxu0 0.0
        %2491 = vmatpush1.msra.mxu0 0.0
        %2492 = vmatprep.subr.mxu0 0.0
        %2493 = vmatpush1.msra.mxu0 0.0
        %2494 = vmatprep.subr.mxu0 0.0
        %2495 = vmatpush1.msra.mxu0 0.0
        %2496 = vmatprep.subr.mxu0 0.0
        %2497 = vmatpush1.msra.mxu0 0.0
        %2498 = vmatprep.subr.mxu0 0.0
        %2499 = vmatpush1.msra.mxu0 0.0
        %2500 = vmatprep.subr.mxu0 0.0
        %2501 = vmatpush1.msra.mxu0 0.0
        %2502 = vmatprep.subr.mxu0 0.0
        %2503 = vmatpush1.msra.mxu0 0.0
        %2504 = vmatprep.subr.mxu0 0.0
        %2505 = vmatpush1.msra.mxu0 0.0
        %2506 = vmatprep.subr.mxu0 0.0
        %2507 = vmatpush1.msra.mxu0 0.0
        %2508 = vmatprep.subr.mxu0 0.0
        %2509 = vmatpush1.msra.mxu0 0.0
        %2510 = vmatprep.subr.mxu0 0.0
        %2511 = vmatpush1.msra.mxu0 0.0
        %2512 = vmatprep.subr.mxu0 0.0
        %2513 = vmatpush1.msra.mxu0 0.0
        %2514 = vmatprep.subr.mxu0 0.0
        %2515 = vmatpush1.msra.mxu0 0.0
        %2516 = vmatprep.subr.mxu0 0.0
        %2517 = vmatpush1.msra.mxu0 0.0
        %2518 = vmatprep.subr.mxu0 0.0
        %2519 = vmatpush1.msra.mxu0 0.0
        %2520 = vmatprep.subr.mxu0 0.0
        %2521 = vmatpush1.msra.mxu0 0.0
        %2522 = vmatprep.subr.mxu0 0.0
        %2523 = vmatpush1.msra.mxu0 0.0
        %2524 = vmatprep.subr.mxu0 0.0
        %2525 = vmatpush1.msra.mxu0 0.0
        %2526 = vmatprep.mubr.f32.mxu0 0.0
        %2527 = vmatmul.mubr.f32.gmra.mrb[0].mxu0 %v2460
        %v2528 = vpop.f32.mrb[0].mxu0
        %v2529 = vadd.f32 0.0, %v2528
        %v2530 = vpop.f32.mrb[0].mxu0
        %2531 = vdwg.mxu0
        %v2532 = vadd.f32 %v2458, %v2529
        %v2533 = vsel %vm820, %v2532, 0.0
        %2534 = vadd.xlane.f32.xlu0 %v2533
        %v2535 = vpop.xlane.xlu0 %2534
        %v2536 = vmul.f32 %v2535, %v1747
        %v2537 = vsub.f32 %v2532, %v2536
        %v2538 = vmul.f32 %v2537, %v2537
        %v2539 = vsel %vm820, %v2538, 0.0
        %2540 = vadd.xlane.f32.xlu0 %v2539
        %v2541 = vpop.xlane.xlu0 %2540
        %v2542 = vmul.f32 %v2541, %v1747
        %v2543 = vadd.f32 %v2542, 1e-05
        %v2544 = vrsqrt.pop %v2543
        %v2545 = vmul.f32 %v2537, %v2544
        %v2547 = vlaneseq
        %v2548 = vshrl.u32 %v2547, 7
        %v2549 = vsub.s32 0, %v2548
        %v2550 = vrot.slane %v1777, %v2549
        %v2552 = vmul.f32 %v2545, %v2550
        %v2554 = vlaneseq
        %v2555 = vshrl.u32 %v2554, 7
        %v2556 = vsub.s32 0, %v2555
        %v2557 = vrot.slane %v1778, %v2556
        %v2559 = vadd.f32 %v2552, %v2557
        %2560 = vst.msk [vmem:[#allocation2] sm:$0xff] %vm820, %v1771
        %2561 = vst.msk [vmem:[#allocation3] sm:$0xff] %vm820, %v2559
        %p2562 = scmp.eq.s32.totalorder %s45, 1
        // Predicated region
        $region105: #{dals_forward.1} parent=75 // pred_check
          %p2563 = pneg %p2562
        $region106: #{dals_forward.1} parent=75 // pred_check_branch
          %2565 = sbr.rel (%p2563) target = $region108
        $region107: #{dals_forward.1} parent=75 // pred_region
          %2566 = vst.msk [vmem:[%s773] sm:$0xff] %vm820, %v1771
          %s2567 = scalar_lea.vmem %s773, 8 [#allocation15]
          %2568 = vst.msk [vmem:[%s2567] sm:$0xff] %vm820, %v2559
        $region108: #{dals_forward.1} parent=75 // pred_fallthru
          _
        %s2569 = sand.u32 %s424, 1
        %s2570 = scalar_lea.sflag [#allocation6], %s2569
        %s2571 = sand.u32 %s424, 1
        %s2572 = smul.addr %s2571, 16
        %s2573 = scalar_lea.vmem [#allocation15], %s2572
        // Predicated region
        $region109: #{dals_forward.1} parent=75 // pred_check
          %p2574 = pneg %p434
        $region110: #{dals_forward.1} parent=75 // pred_check_branch
          %2576 = sbr.rel (%p2574) target = $region112
        $region111: #{dals_forward.1} parent=75 // pred_region
          %s2578 = ssub.s32 256, 256
          %2579 = vsyncadd %s2570, %s2578
          %s2580 = smul.addr %s44, 2
          %s2581 = smul.addr %s2580, 128
          %s2582 = scalar_lea.hbm %s14, %s2581
          %s2583 = sshll.u32 %s2573, 4
          %s2584 = int_to_ptr.vmem [resolvable:$true] %s2583
          %2589 = dma.vmem_to_hbm [thread:$0]  %s2584, 256, %s2582, %s2570, 128, 128, 8
        $region112: #{dals_forward.1} parent=75 // pred_fallthru
          _
      $region76: #{dals_forward.1} parent=5 // pred_fallthru
        _
      %p2590 = scmp.le.s32.totalorder 2, %s35
      // Predicated region
      $region113: #{dals_forward.1} parent=5 // pred_check
        %p2591 = pneg %p2590
      $region114: #{dals_forward.1} parent=5 // pred_check_branch
        %2593 = sbr.rel (%p2591) target = $region116
      $region115: #{dals_forward.1} parent=5 // pred_region
        %s2594 = ssub.s32 %s35, 2
        // Predicated region
        $region117: #{dals_forward.1} parent=115 // pred_check
          %p2595 = pneg %p440
        $region118: #{dals_forward.1} parent=115 // pred_check_branch
          %2597 = sbr.rel (%p2595) target = $region120
        $region119: #{dals_forward.1} parent=115 // pred_region
          %s2598 = sand.u32 %s425, 1
          %s2599 = scalar_lea.sflag [#allocation6], %s2598
          %s2600 = sand.u32 %s425, 1
          %s2601 = smul.addr %s2600, 16
          %s2602 = scalar_lea.vmem [#allocation15], %s2601
          %2603 = dma.done %s2599, 256
        $region120: #{dals_forward.1} parent=115 // pred_fallthru
          _
      $region116: #{dals_forward.1} parent=5 // pred_fallthru
        _
    $region6: #{dals_forward.1} parent=1 // loop_footer
      %s39 = sadd.s32 1, %s35
    $region7: #{dals_forward.1} parent=1 // loop_footer_branch
      %34 = sbr.rel target = $region3
    $region8: #{dals_forward.1} parent=1 // loop_exit
      _
    %2604 = vsyncpa [#allocation5], 1
    %s2605 = scalar_lea.sflag [#allocation5], 1
    %2606 = vsyncpa %s2605, 1
    %2607 = vsyncpa [#allocation8], 1
    %s2608 = scalar_lea.sflag [#allocation8], 1
    %2609 = vsyncpa %s2608, 1
    %2610 = vsyncpa [#allocation11], 1
    %s2611 = scalar_lea.sflag [#allocation11], 1
    %2612 = vsyncpa %s2611, 1
    %2613 = vsyncpa [#allocation14], 1
    %s2614 = scalar_lea.sflag [#allocation14], 1
    %2615 = vsyncpa %s2614, 1
    %2616 = vsyncpa [#allocation6], 1
    %s2617 = scalar_lea.sflag [#allocation6], 1
    %2618 = vsyncpa %s2617, 1

</llo_original>
